<compile_context>
chip_gen: v5e
topology: v5e:2x2
jax: 0.10.0
libtpu: 0.0.40
codegen_flags: <defaults>
</compile_context>

<pallas_src>
import functools
import math

import jax
import jax.numpy as jnp
from jax.experimental import pallas as pl
from jax.experimental.pallas import tpu as pltpu

_BN_EPS = 1e-5


# -----------------------------------------------------------------------------
# Pallas kernel
# -----------------------------------------------------------------------------
def _conv_norm_kernel(xp_ref, w_ref, scale_ref, shift_ref, o_ref, *,
                      kh, kw, cin, toh, ow):
    """Reflection-padded conv tile, direct (no HBM im2col).

    xp_ref   : (1, Hp, Wp, Cin)    bf16  full padded sample (VMEM resident)
    w_ref    : (KH*KW*Cin, TC)     bf16  weight slab for current cout tile
    scale_ref: (1, TC)             f32   folded norm scale
    shift_ref: (1, TC)             f32   folded norm shift (+ conv bias)
    o_ref    : (1, TOH, OW, TC)    f32
    """
    i = pl.program_id(1)                       # output-row tile index
    row0 = i * toh
    tc = o_ref.shape[-1]

    acc = jnp.zeros((toh * ow, tc), jnp.float32)
    # Unrolled taps: each tap is a shifted VMEM window -> K=Cin MXU GEMM,
    # accumulated in f32 (bf16 operands, f32 accumulation).
    for dy in range(kh):
        for dx in range(kw):
            a = xp_ref[0, pl.ds(row0 + dy, toh), pl.ds(dx, ow), :]
            a = a.reshape(toh * ow, cin)
            t = dy * kw + dx
            wt = w_ref[pl.ds(t * cin, cin), :]
            acc += jnp.dot(a, wt, preferred_element_type=jnp.float32)

    # f32 epilogue: folded bias + eval-mode norm (scale/shift per out channel).
    y = acc * scale_ref[...] + shift_ref[...]
    o_ref[...] = y.reshape(1, toh, ow, tc).astype(o_ref.dtype)


# -----------------------------------------------------------------------------
# Helpers
# -----------------------------------------------------------------------------
def _pick_row_tile(oh, ow, max_elems=512):
    """Largest divisor of OH such that the (TOH*OW, TC) tile stays modest."""
    best = 1
    for d in range(1, oh + 1):
        if oh % d == 0 and d * ow <= max_elems:
            best = d
    return best


def _pick_cout_tile(cout):
    """Full-extent cout block when modest (zero channel padding); 128/256-wide
    tiles only for very wide layers."""
    if cout <= 512 or cout % 128 != 0:
        return cout
    return 256 if cout % 256 == 0 else 128


def _fold_scale_shift(params, norm):
    """Fold conv bias + eval-mode norm into per-output-channel scale/shift."""
    cout = params["w"].shape[0]
    bias = params["b"].astype(jnp.float32)
    if norm == "BN":
        s = params["gamma"] / jnp.sqrt(params["var"] + _BN_EPS)
        return s, params["beta"] + (bias - params["mean"]) * s
    if norm == "IN":
        # nn.InstanceNorm2d(out, track_running_stats=True): affine=False,
        # eval mode uses running statistics.
        s = 1.0 / jnp.sqrt(params["var"] + _BN_EPS)
        return s, (bias - params["mean"]) * s
    return jnp.ones((cout,), jnp.float32), bias


# -----------------------------------------------------------------------------
# ConvNorm forward (Pallas)
# -----------------------------------------------------------------------------
def conv_norm_forward(x_nchw, params, *, kernel_size, stride=1, norm=False):
    """ConvNorm.forward.  x_nchw: (N, Cin, H, W) f32 -> (N, Cout, OH, OW) f32."""
    if stride != 1:
        # TODO(synk): stride != 1 not implemented (module default stride=1).
        raise NotImplementedError("ConvNorm stride != 1 not supported")

    w = params["w"]                                    # (Cout, Cin, KH, KW)
    cout, cin, kh, kw = w.shape
    assert kh == kernel_size and kw == kernel_size

    scale, shift = _fold_scale_shift(params, norm)
    scale = scale.reshape(1, cout).astype(jnp.float32)
    shift = shift.reshape(1, cout).astype(jnp.float32)

    # NCHW -> NHWC, reflection pad, bf16 operands.
    p = kernel_size // 2
    x = jnp.transpose(x_nchw, (0, 2, 3, 1)).astype(jnp.float32)
    xp = jnp.pad(x, ((0, 0), (p, p), (p, p), (0, 0)), mode="reflect")
    xp = xp.astype(jnp.bfloat16)
    n, hp, wp, _ = xp.shape
    oh, ow = hp - kh + 1, wp - kw + 1

    # Weight (Cout, Cin, KH, KW) -> (KH*KW*Cin, Cout), bf16.
    wg = jnp.transpose(w, (2, 3, 1, 0)).reshape(kh * kw * cin, cout)
    wg = wg.astype(jnp.bfloat16)

    toh = _pick_row_tile(oh, ow)
    tc = _pick_cout_tile(cout)
    grid = (n, oh // toh, cout // tc)

    out = pl.pallas_call(
        functools.partial(_conv_norm_kernel,
                          kh=kh, kw=kw, cin=cin, toh=toh, ow=ow),
        out_shape=jax.ShapeDtypeStruct((n, oh, ow, cout), jnp.float32),
        grid_spec=pltpu.PrefetchScalarGridSpec(
            num_scalar_prefetch=0,
            grid=grid,
            in_specs=[
                # full padded sample; last two dims are full extent
                pl.BlockSpec((1, hp, wp, cin), lambda b_, i, j: (b_, 0, 0, 0)),
                pl.BlockSpec((kh * kw * cin, tc), lambda b_, i, j: (0, j)),
                pl.BlockSpec((1, tc), lambda b_, i, j: (0, j)),
                pl.BlockSpec((1, tc), lambda b_, i, j: (0, j)),
            ],
            out_specs=pl.BlockSpec((1, toh, ow, tc),
                                   lambda b_, i, j: (b_, i, 0, j)),
        ),
        compiler_params=pltpu.CompilerParams(
            dimension_semantics=("parallel", "parallel", "parallel")),
    )(xp, wg, scale, shift)

    return jnp.transpose(out, (0, 3, 1, 2))            # NHWC -> NCHW


# -----------------------------------------------------------------------------
# Pure-JAX reference (for correctness check)
# -----------------------------------------------------------------------------
def conv_norm_reference(x_nchw, params, *, kernel_size, stride=1, norm=False):
    w = params["w"]
    p = kernel_size // 2
    x = jnp.transpose(x_nchw, (0, 2, 3, 1)).astype(jnp.float32)
    xp = jnp.pad(x, ((0, 0), (p, p), (p, p), (0, 0)), mode="reflect")
    # Match the kernel's bf16 operand rounding so tolerances stay tight.
    xp = xp.astype(jnp.bfloat16).astype(jnp.float32)
    wr = w.astype(jnp.bfloat16).astype(jnp.float32)
    y = jax.lax.conv_general_dilated(
        xp, jnp.transpose(wr, (2, 3, 1, 0)),           # HWIO
        window_strides=(stride, stride), padding="VALID",
        dimension_numbers=("NHWC", "HWIO", "NHWC"),
        precision=jax.lax.Precision.HIGHEST)
    scale, shift = _fold_scale_shift(params, norm)
    y = y * scale[None, None, None, :] + shift[None, None, None, :]
    return jnp.transpose(y, (0, 3, 1, 2))


# -----------------------------------------------------------------------------
# Main
# -----------------------------------------------------------------------------
if __name__ == "__main__":
    N, CIN, H, W = 2, 32, 16, 16
    COUT = 64

    def make_params(key, cin, cout, k):
        ks = jax.random.split(key, 6)
        fan_in = cin * k * k
        return {
            "w": jax.random.normal(ks[0], (cout, cin, k, k), jnp.float32)
                 / math.sqrt(fan_in),
            "b": 0.1 * jax.random.normal(ks[1], (cout,), jnp.float32),
            "gamma": 1.0 + 0.1 * jax.random.normal(ks[2], (cout,), jnp.float32),
            "beta": 0.1 * jax.random.normal(ks[3], (cout,), jnp.float32),
            "mean": 0.1 * jax.random.normal(ks[4], (cout,), jnp.float32),
            "var": jnp.abs(1.0 + 0.1 * jax.random.normal(ks[5], (cout,),
                                                         jnp.float32)),
        }

    key = jax.random.PRNGKey(0)
    kx, k1, k2, k3 = jax.random.split(key, 4)
    x = jax.random.normal(kx, (N, CIN, H, W), jnp.float32)

    configs = [
        (3, False, make_params(k1, CIN, COUT, 3)),   # ConvNorm(32, 64, 3)
        (5, "BN", make_params(k2, CIN, COUT, 5)),    # ConvNorm(32, 64, 5, norm='BN')
        (3, "IN", make_params(k3, CIN, COUT, 3)),    # ConvNorm(32, 64, 3, norm='IN')
    ]

    for ksize, norm, prm in configs:
        fwd = jax.jit(functools.partial(conv_norm_forward,
                                        kernel_size=ksize, norm=norm))
        out = jax.block_until_ready(fwd(x, prm))
        assert out.shape == (N, COUT, H, W), out.shape
        assert jnp.all(jnp.isfinite(out))
        ref = conv_norm_reference(x, prm, kernel_size=ksize, norm=norm)
        max_err = float(jnp.max(jnp.abs(out - ref)))
        assert max_err < 1e-2, (ksize, norm, max_err)

    print("KERNEL_OK")
</pallas_src>

<mosaic_0001>
module attributes {stable_mosaic.version = 11 : i64} {
  func.func @_conv_norm_kernel(%arg0: i32, %arg1: i32, %arg2: i32, %arg3: memref<1x18x18x32xbf16, #tpu.memory_space<vmem>>, %arg4: memref<288x64xbf16, #tpu.memory_space<vmem>>, %arg5: memref<1x64xf32, #tpu.memory_space<vmem>>, %arg6: memref<1x64xf32, #tpu.memory_space<vmem>>, %arg7: memref<1x16x16x64xf32, #tpu.memory_space<vmem>>) attributes {dimension_semantics = [#tpu.dimension_semantics<parallel>, #tpu.dimension_semantics<parallel>, #tpu.dimension_semantics<parallel>], iteration_bounds = array<i64: 2, 1, 1>, scalar_prefetch = 0 : i64, scratch_operands = 0 : i64, tpu.core_type = #tpu.core_type<tc>, window_params = [{transform_indices = @transform_0, window_bounds = array<i64: 1, 18, 18, 32>}, {transform_indices = @transform_1, window_bounds = array<i64: 288, 64>}, {transform_indices = @transform_2, window_bounds = array<i64: 1, 64>}, {transform_indices = @transform_3, window_bounds = array<i64: 1, 64>}, {transform_indices = @transform_4, window_bounds = array<i64: 1, 16, 16, 64>}]} {
    %c16_i32 = arith.constant 16 : i32
    %0 = arith.muli %arg1, %c16_i32 : i32
    %cst = arith.constant 0.000000e+00 : f32
    %1 = vector.broadcast %cst : f32 to vector<256x64xf32>
    %c0_i32 = arith.constant 0 : i32
    %2 = arith.addi %0, %c0_i32 : i32
    %c0 = arith.constant 0 : index
    %3 = arith.index_cast %2 : i32 to index
    %c0_0 = arith.constant 0 : index
    %c0_1 = arith.constant 0 : index
    %4 = vector.load %arg3[%c0, %3, %c0_0, %c0_1] : memref<1x18x18x32xbf16, #tpu.memory_space<vmem>>, vector<1x16x16x32xbf16>
    %5 = vector.shape_cast %4 : vector<1x16x16x32xbf16> to vector<16x16x32xbf16>
    %6 = vector.shape_cast %5 : vector<16x16x32xbf16> to vector<256x32xbf16>
    %c0_2 = arith.constant 0 : index
    %c0_3 = arith.constant 0 : index
    %7 = vector.load %arg4[%c0_2, %c0_3] : memref<288x64xbf16, #tpu.memory_space<vmem>>, vector<32x64xbf16>
    %cst_4 = arith.constant dense<0.000000e+00> : vector<256x64xf32>
    %8 = tpu.matmul %6, %7, %cst_4 {dimension_numbers = #tpu.dot_dimension_numbers<[1], [0], [0], [1], [0, 0, 1, 1], [], []>} : vector<256x32xbf16>, vector<32x64xbf16>, vector<256x64xf32> -> vector<256x64xf32>
    %9 = arith.addf %1, %8 : vector<256x64xf32>
    %c0_i32_5 = arith.constant 0 : i32
    %10 = arith.addi %0, %c0_i32_5 : i32
    %c0_6 = arith.constant 0 : index
    %11 = arith.index_cast %10 : i32 to index
    %c1 = arith.constant 1 : index
    %c0_7 = arith.constant 0 : index
    %12 = vector.load %arg3[%c0_6, %11, %c1, %c0_7] : memref<1x18x18x32xbf16, #tpu.memory_space<vmem>>, vector<1x16x16x32xbf16>
    %13 = vector.shape_cast %12 : vector<1x16x16x32xbf16> to vector<16x16x32xbf16>
    %14 = vector.shape_cast %13 : vector<16x16x32xbf16> to vector<256x32xbf16>
    %c32 = arith.constant 32 : index
    %c0_8 = arith.constant 0 : index
    %15 = vector.load %arg4[%c32, %c0_8] : memref<288x64xbf16, #tpu.memory_space<vmem>>, vector<32x64xbf16>
    %cst_9 = arith.constant dense<0.000000e+00> : vector<256x64xf32>
    %16 = tpu.matmul %14, %15, %cst_9 {dimension_numbers = #tpu.dot_dimension_numbers<[1], [0], [0], [1], [0, 0, 1, 1], [], []>} : vector<256x32xbf16>, vector<32x64xbf16>, vector<256x64xf32> -> vector<256x64xf32>
    %17 = arith.addf %9, %16 : vector<256x64xf32>
    %c0_i32_10 = arith.constant 0 : i32
    %18 = arith.addi %0, %c0_i32_10 : i32
    %c0_11 = arith.constant 0 : index
    %19 = arith.index_cast %18 : i32 to index
    %c2 = arith.constant 2 : index
    %c0_12 = arith.constant 0 : index
    %20 = vector.load %arg3[%c0_11, %19, %c2, %c0_12] : memref<1x18x18x32xbf16, #tpu.memory_space<vmem>>, vector<1x16x16x32xbf16>
    %21 = vector.shape_cast %20 : vector<1x16x16x32xbf16> to vector<16x16x32xbf16>
    %22 = vector.shape_cast %21 : vector<16x16x32xbf16> to vector<256x32xbf16>
    %c64 = arith.constant 64 : index
    %c0_13 = arith.constant 0 : index
    %23 = vector.load %arg4[%c64, %c0_13] : memref<288x64xbf16, #tpu.memory_space<vmem>>, vector<32x64xbf16>
    %cst_14 = arith.constant dense<0.000000e+00> : vector<256x64xf32>
    %24 = tpu.matmul %22, %23, %cst_14 {dimension_numbers = #tpu.dot_dimension_numbers<[1], [0], [0], [1], [0, 0, 1, 1], [], []>} : vector<256x32xbf16>, vector<32x64xbf16>, vector<256x64xf32> -> vector<256x64xf32>
    %25 = arith.addf %17, %24 : vector<256x64xf32>
    %c1_i32 = arith.constant 1 : i32
    %26 = arith.addi %0, %c1_i32 : i32
    %c0_15 = arith.constant 0 : index
    %27 = arith.index_cast %26 : i32 to index
    %c0_16 = arith.constant 0 : index
    %c0_17 = arith.constant 0 : index
    %28 = vector.load %arg3[%c0_15, %27, %c0_16, %c0_17] : memref<1x18x18x32xbf16, #tpu.memory_space<vmem>>, vector<1x16x16x32xbf16>
    %29 = vector.shape_cast %28 : vector<1x16x16x32xbf16> to vector<16x16x32xbf16>
    %30 = vector.shape_cast %29 : vector<16x16x32xbf16> to vector<256x32xbf16>
    %c96 = arith.constant 96 : index
    %c0_18 = arith.constant 0 : index
    %31 = vector.load %arg4[%c96, %c0_18] : memref<288x64xbf16, #tpu.memory_space<vmem>>, vector<32x64xbf16>
    %cst_19 = arith.constant dense<0.000000e+00> : vector<256x64xf32>
    %32 = tpu.matmul %30, %31, %cst_19 {dimension_numbers = #tpu.dot_dimension_numbers<[1], [0], [0], [1], [0, 0, 1, 1], [], []>} : vector<256x32xbf16>, vector<32x64xbf16>, vector<256x64xf32> -> vector<256x64xf32>
    %33 = arith.addf %25, %32 : vector<256x64xf32>
    %c1_i32_20 = arith.constant 1 : i32
    %34 = arith.addi %0, %c1_i32_20 : i32
    %c0_21 = arith.constant 0 : index
    %35 = arith.index_cast %34 : i32 to index
    %c1_22 = arith.constant 1 : index
    %c0_23 = arith.constant 0 : index
    %36 = vector.load %arg3[%c0_21, %35, %c1_22, %c0_23] : memref<1x18x18x32xbf16, #tpu.memory_space<vmem>>, vector<1x16x16x32xbf16>
    %37 = vector.shape_cast %36 : vector<1x16x16x32xbf16> to vector<16x16x32xbf16>
    %38 = vector.shape_cast %37 : vector<16x16x32xbf16> to vector<256x32xbf16>
    %c128 = arith.constant 128 : index
    %c0_24 = arith.constant 0 : index
    %39 = vector.load %arg4[%c128, %c0_24] : memref<288x64xbf16, #tpu.memory_space<vmem>>, vector<32x64xbf16>
    %cst_25 = arith.constant dense<0.000000e+00> : vector<256x64xf32>
    %40 = tpu.matmul %38, %39, %cst_25 {dimension_numbers = #tpu.dot_dimension_numbers<[1], [0], [0], [1], [0, 0, 1, 1], [], []>} : vector<256x32xbf16>, vector<32x64xbf16>, vector<256x64xf32> -> vector<256x64xf32>
    %41 = arith.addf %33, %40 : vector<256x64xf32>
    %c1_i32_26 = arith.constant 1 : i32
    %42 = arith.addi %0, %c1_i32_26 : i32
    %c0_27 = arith.constant 0 : index
    %43 = arith.index_cast %42 : i32 to index
    %c2_28 = arith.constant 2 : index
    %c0_29 = arith.constant 0 : index
    %44 = vector.load %arg3[%c0_27, %43, %c2_28, %c0_29] : memref<1x18x18x32xbf16, #tpu.memory_space<vmem>>, vector<1x16x16x32xbf16>
    %45 = vector.shape_cast %44 : vector<1x16x16x32xbf16> to vector<16x16x32xbf16>
    %46 = vector.shape_cast %45 : vector<16x16x32xbf16> to vector<256x32xbf16>
    %c160 = arith.constant 160 : index
    %c0_30 = arith.constant 0 : index
    %47 = vector.load %arg4[%c160, %c0_30] : memref<288x64xbf16, #tpu.memory_space<vmem>>, vector<32x64xbf16>
    %cst_31 = arith.constant dense<0.000000e+00> : vector<256x64xf32>
    %48 = tpu.matmul %46, %47, %cst_31 {dimension_numbers = #tpu.dot_dimension_numbers<[1], [0], [0], [1], [0, 0, 1, 1], [], []>} : vector<256x32xbf16>, vector<32x64xbf16>, vector<256x64xf32> -> vector<256x64xf32>
    %49 = arith.addf %41, %48 : vector<256x64xf32>
    %c2_i32 = arith.constant 2 : i32
    %50 = arith.addi %0, %c2_i32 : i32
    %c0_32 = arith.constant 0 : index
    %51 = arith.index_cast %50 : i32 to index
    %c0_33 = arith.constant 0 : index
    %c0_34 = arith.constant 0 : index
    %52 = vector.load %arg3[%c0_32, %51, %c0_33, %c0_34] : memref<1x18x18x32xbf16, #tpu.memory_space<vmem>>, vector<1x16x16x32xbf16>
    %53 = vector.shape_cast %52 : vector<1x16x16x32xbf16> to vector<16x16x32xbf16>
    %54 = vector.shape_cast %53 : vector<16x16x32xbf16> to vector<256x32xbf16>
    %c192 = arith.constant 192 : index
    %c0_35 = arith.constant 0 : index
    %55 = vector.load %arg4[%c192, %c0_35] : memref<288x64xbf16, #tpu.memory_space<vmem>>, vector<32x64xbf16>
    %cst_36 = arith.constant dense<0.000000e+00> : vector<256x64xf32>
    %56 = tpu.matmul %54, %55, %cst_36 {dimension_numbers = #tpu.dot_dimension_numbers<[1], [0], [0], [1], [0, 0, 1, 1], [], []>} : vector<256x32xbf16>, vector<32x64xbf16>, vector<256x64xf32> -> vector<256x64xf32>
    %57 = arith.addf %49, %56 : vector<256x64xf32>
    %c2_i32_37 = arith.constant 2 : i32
    %58 = arith.addi %0, %c2_i32_37 : i32
    %c0_38 = arith.constant 0 : index
    %59 = arith.index_cast %58 : i32 to index
    %c1_39 = arith.constant 1 : index
    %c0_40 = arith.constant 0 : index
    %60 = vector.load %arg3[%c0_38, %59, %c1_39, %c0_40] : memref<1x18x18x32xbf16, #tpu.memory_space<vmem>>, vector<1x16x16x32xbf16>
    %61 = vector.shape_cast %60 : vector<1x16x16x32xbf16> to vector<16x16x32xbf16>
    %62 = vector.shape_cast %61 : vector<16x16x32xbf16> to vector<256x32xbf16>
    %c224 = arith.constant 224 : index
    %c0_41 = arith.constant 0 : index
    %63 = vector.load %arg4[%c224, %c0_41] : memref<288x64xbf16, #tpu.memory_space<vmem>>, vector<32x64xbf16>
    %cst_42 = arith.constant dense<0.000000e+00> : vector<256x64xf32>
    %64 = tpu.matmul %62, %63, %cst_42 {dimension_numbers = #tpu.dot_dimension_numbers<[1], [0], [0], [1], [0, 0, 1, 1], [], []>} : vector<256x32xbf16>, vector<32x64xbf16>, vector<256x64xf32> -> vector<256x64xf32>
    %65 = arith.addf %57, %64 : vector<256x64xf32>
    %c2_i32_43 = arith.constant 2 : i32
    %66 = arith.addi %0, %c2_i32_43 : i32
    %c0_44 = arith.constant 0 : index
    %67 = arith.index_cast %66 : i32 to index
    %c2_45 = arith.constant 2 : index
    %c0_46 = arith.constant 0 : index
    %68 = vector.load %arg3[%c0_44, %67, %c2_45, %c0_46] : memref<1x18x18x32xbf16, #tpu.memory_space<vmem>>, vector<1x16x16x32xbf16>
    %69 = vector.shape_cast %68 : vector<1x16x16x32xbf16> to vector<16x16x32xbf16>
    %70 = vector.shape_cast %69 : vector<16x16x32xbf16> to vector<256x32xbf16>
    %c256 = arith.constant 256 : index
    %c0_47 = arith.constant 0 : index
    %71 = vector.load %arg4[%c256, %c0_47] : memref<288x64xbf16, #tpu.memory_space<vmem>>, vector<32x64xbf16>
    %cst_48 = arith.constant dense<0.000000e+00> : vector<256x64xf32>
    %72 = tpu.matmul %70, %71, %cst_48 {dimension_numbers = #tpu.dot_dimension_numbers<[1], [0], [0], [1], [0, 0, 1, 1], [], []>} : vector<256x32xbf16>, vector<32x64xbf16>, vector<256x64xf32> -> vector<256x64xf32>
    %73 = arith.addf %65, %72 : vector<256x64xf32>
    %c0_49 = arith.constant 0 : index
    %c0_50 = arith.constant 0 : index
    %74 = vector.load %arg5[%c0_49, %c0_50] : memref<1x64xf32, #tpu.memory_space<vmem>>, vector<1x64xf32>
    %75 = vector.broadcast %74 : vector<1x64xf32> to vector<256x64xf32>
    %76 = arith.mulf %73, %75 : vector<256x64xf32>
    %c0_51 = arith.constant 0 : index
    %c0_52 = arith.constant 0 : index
    %77 = vector.load %arg6[%c0_51, %c0_52] : memref<1x64xf32, #tpu.memory_space<vmem>>, vector<1x64xf32>
    %78 = vector.broadcast %77 : vector<1x64xf32> to vector<256x64xf32>
    %79 = arith.addf %76, %78 : vector<256x64xf32>
    %80 = vector.shape_cast %79 : vector<256x64xf32> to vector<1x16x16x64xf32>
    %c0_53 = arith.constant 0 : index
    %c0_54 = arith.constant 0 : index
    %c0_55 = arith.constant 0 : index
    %c0_56 = arith.constant 0 : index
    %81 = vector.load %arg7[%c0_53, %c0_54, %c0_55, %c0_56] : memref<1x16x16x64xf32, #tpu.memory_space<vmem>>, vector<1x16x16x64xf32>
    tpu.vector_store %arg7[%c0_53, %c0_54, %c0_55, %c0_56], %80 {strides = array<i32>} : memref<1x16x16x64xf32, #tpu.memory_space<vmem>>, vector<1x16x16x64xf32>,
    return
  }
  func.func @transform_0(%arg0: i32, %arg1: i32, %arg2: i32) -> (i32, i32, i32, i32) {
    %c0_i32 = arith.constant 0 : i32
    %c0_i32_0 = arith.constant 0 : i32
    %c0_i32_1 = arith.constant 0 : i32
    %c0_i32_2 = arith.constant 0 : i32
    return %arg0, %c0_i32, %c0_i32_0, %c0_i32_1 : i32, i32, i32, i32
  }
  func.func @transform_1(%arg0: i32, %arg1: i32, %arg2: i32) -> (i32, i32) {
    %c0_i32 = arith.constant 0 : i32
    %c0_i32_0 = arith.constant 0 : i32
    return %c0_i32, %arg2 : i32, i32
  }
  func.func @transform_2(%arg0: i32, %arg1: i32, %arg2: i32) -> (i32, i32) {
    %c0_i32 = arith.constant 0 : i32
    %c0_i32_0 = arith.constant 0 : i32
    return %c0_i32, %arg2 : i32, i32
  }
  func.func @transform_3(%arg0: i32, %arg1: i32, %arg2: i32) -> (i32, i32) {
    %c0_i32 = arith.constant 0 : i32
    %c0_i32_0 = arith.constant 0 : i32
    return %c0_i32, %arg2 : i32, i32
  }
  func.func @transform_4(%arg0: i32, %arg1: i32, %arg2: i32) -> (i32, i32, i32, i32) {
    %c0_i32 = arith.constant 0 : i32
    %c0_i32_0 = arith.constant 0 : i32
    return %arg0, %arg1, %c0_i32, %arg2 : i32, i32, i32, i32
  }
}

</mosaic_0001>

<llo_original>
// kernel: conv_norm_forward.1
$region0: #{conv_norm_forward.1}
  #allocation0 [shape = 'u32[]', space=smem, size = 0x4, offset = 0x4, fixed_abs, tag = 'smem constant byte address 0x4 - core index']
  #allocation1 [shape = 'u32[72,128]{1,0:T(1,128)}', space=vmem, size = 0x9000, scoped, tag = 'internal scratch']
  %s0 = inlined_call_operand.vmem [shape: bf16[2,18,18,32], index: 0, kind: input, shape index: {}]
  %s1 = inlined_call_operand.vmem [shape: bf16[288,64], index: 1, kind: input, shape index: {}]
  %s2 = inlined_call_operand.vmem [shape: f32[1,64], index: 2, kind: input, shape index: {}]
  %s3 = inlined_call_operand.vmem [shape: f32[1,64], index: 3, kind: input, shape index: {}]
  %s4 = inlined_call_operand.hbm [shape: f32[2,16,16,64], index: 4, kind: output, shape index: {}]
  %s5 = sld [smem:[#allocation0]]
  $region49: #{conv_norm_forward.1} parent=0
    _
  %s7 = ssub.s32 1, %s5
  %s8 = scalar_select 0, %s7, %s5
  $region1: #{conv_norm_forward.1} parent=0
    #allocation2 [shape = 'u8[262144]{0}', space=vmem, size = 0x40000, scoped, tag = 'output window, operand 0']
    #allocation3 [shape = 's32[2]{0}', space=sflag, size = 0x8, scoped, tag = 'scoped memory for conv_norm_forward.1']
    %9 = vsyncpa [#allocation3], 0
    %s10 = scalar_lea.sflag [#allocation3], 1
    %11 = vsyncpa %s10, 0
    loop: start=0, step=1, limit=4
    $region2: #{conv_norm_forward.1} parent=1 // loop_pre_header
      _
    $region3: #{conv_norm_forward.1} parent=1 // loop_header
      %s13 = sphi 0, %s17
      %p14 = scmp.ge.s32.totalorder %s13, 4
      %s20 = sphi 0, %s39
      %s21 = sphi 0, %s35
      %s22 = sphi 0, %s31
      %s23 = sphi 0, %s20
      %s24 = sphi 0, %s21
      %s25 = sphi 0, %s22
      %s26 = sphi 0, %s23
      %s27 = sphi 0, %s24
      %s28 = sphi 0, %s25
      %s42 = sphi 0, %s44
      %s45 = sphi 0, %s42
      %s46 = sphi 0, %s45
      %s62 = sphi 0, %s46
      %s68 = sphi 0, %s70
      %s71 = sphi 0, %s68
      %s72 = sphi 0, %s71
      %s88 = sphi 0, %s72
      %s94 = sphi 0, %s96
      %s97 = sphi 0, %s94
      %s98 = sphi 0, %s97
      %s114 = sphi 0, %s98
      %s120 = sphi 0, %s122
      %s123 = sphi 0, %s120
      %s124 = sphi 0, %s123
      %s140 = sphi 0, %s124
      %s150 = sphi 0, %s152
      %s153 = sphi 0, %s150
      %s154 = sphi 0, %s153
      %s170 = sphi 0, %s154
    $region4: #{conv_norm_forward.1} parent=1 // loop_header_branch
      %16 = sbr.rel (%p14) target = $region8
    $region5: #{conv_norm_forward.1} parent=1 // loop_body
      %s18 = ssub.s32 %s13, 1
      %s19 = ssub.s32 %s13, 2
      %s29 = sadd.s32 1, %s22
      %p30 = scmp.ge.s32.totalorder %s29, 1
      %s31 = scalar_select %p30, 0, %s29
      %s32 = sadd.s32 1, %s21
      %s33 = scalar_select %p30, %s32, %s21
      %p34 = scmp.ge.s32.totalorder %s33, 1
      %s35 = scalar_select %p34, 0, %s33
      %s36 = sadd.s32 1, %s20
      %s37 = scalar_select %p34, %s36, %s20
      %p38 = scmp.ge.s32.totalorder %s37, 2
      %s39 = scalar_select %p38, 0, %s37
      %s40 = ssub.s32 %s20, %s39
      %p41 = scmp.eq.s32.totalorder %s40, 0
      %s43 = sadd.s32 %s42, 1
      %s44 = scalar_select %p41, %s42, %s43
      %p47 = pneg %p41
      %p48 = scmp.eq.s32.totalorder %s13, 1
      %p49 = por %p47, %p48
      %p50 = scmp.ne.s32.totalorder %s42, %s45
      %p51 = scmp.eq.s32.totalorder %s13, 0
      %p52 = por %p50, %p51
      %p53 = scmp.ne.s32.totalorder %s42, %s45
      %p54 = scmp.eq.s32.totalorder %s18, 1
      %p55 = por %p53, %p54
      %p56 = scmp.ne.s32.totalorder %s45, %s46
      %p57 = scmp.eq.s32.totalorder %s18, 0
      %p58 = por %p56, %p57
      %p59 = scmp.ne.s32.totalorder %s45, %s46
      %p60 = scmp.eq.s32.totalorder %s19, 1
      %p61 = por %p59, %p60
      %p63 = scmp.ne.s32.totalorder %s46, %s62
      %p64 = scmp.eq.s32.totalorder %s19, 0
      %p65 = por %p63, %p64
      %s66 = ssub.s32 %s22, %s31
      %p67 = scmp.eq.s32.totalorder %s66, 0
      %s69 = sadd.s32 %s68, 1
      %s70 = scalar_select %p67, %s68, %s69
      %p73 = pneg %p67
      %p74 = scmp.eq.s32.totalorder %s13, 1
      %p75 = por %p73, %p74
      %p76 = scmp.ne.s32.totalorder %s68, %s71
      %p77 = scmp.eq.s32.totalorder %s13, 0
      %p78 = por %p76, %p77
      %p79 = scmp.ne.s32.totalorder %s68, %s71
      %p80 = scmp.eq.s32.totalorder %s18, 1
      %p81 = por %p79, %p80
      %p82 = scmp.ne.s32.totalorder %s71, %s72
      %p83 = scmp.eq.s32.totalorder %s18, 0
      %p84 = por %p82, %p83
      %p85 = scmp.ne.s32.totalorder %s71, %s72
      %p86 = scmp.eq.s32.totalorder %s19, 1
      %p87 = por %p85, %p86
      %p89 = scmp.ne.s32.totalorder %s72, %s88
      %p90 = scmp.eq.s32.totalorder %s19, 0
      %p91 = por %p89, %p90
      %s92 = ssub.s32 %s22, %s31
      %p93 = scmp.eq.s32.totalorder %s92, 0
      %s95 = sadd.s32 %s94, 1
      %s96 = scalar_select %p93, %s94, %s95
      %p99 = pneg %p93
      %p100 = scmp.eq.s32.totalorder %s13, 1
      %p101 = por %p99, %p100
      %p102 = scmp.ne.s32.totalorder %s94, %s97
      %p103 = scmp.eq.s32.totalorder %s13, 0
      %p104 = por %p102, %p103
      %p105 = scmp.ne.s32.totalorder %s94, %s97
      %p106 = scmp.eq.s32.totalorder %s18, 1
      %p107 = por %p105, %p106
      %p108 = scmp.ne.s32.totalorder %s97, %s98
      %p109 = scmp.eq.s32.totalorder %s18, 0
      %p110 = por %p108, %p109
      %p111 = scmp.ne.s32.totalorder %s97, %s98
      %p112 = scmp.eq.s32.totalorder %s19, 1
      %p113 = por %p111, %p112
      %p115 = scmp.ne.s32.totalorder %s98, %s114
      %p116 = scmp.eq.s32.totalorder %s19, 0
      %p117 = por %p115, %p116
      %s118 = ssub.s32 %s22, %s31
      %p119 = scmp.eq.s32.totalorder %s118, 0
      %s121 = sadd.s32 %s120, 1
      %s122 = scalar_select %p119, %s120, %s121
      %p125 = pneg %p119
      %p126 = scmp.eq.s32.totalorder %s13, 1
      %p127 = por %p125, %p126
      %p128 = scmp.ne.s32.totalorder %s120, %s123
      %p129 = scmp.eq.s32.totalorder %s13, 0
      %p130 = por %p128, %p129
      %p131 = scmp.ne.s32.totalorder %s120, %s123
      %p132 = scmp.eq.s32.totalorder %s18, 1
      %p133 = por %p131, %p132
      %p134 = scmp.ne.s32.totalorder %s123, %s124
      %p135 = scmp.eq.s32.totalorder %s18, 0
      %p136 = por %p134, %p135
      %p137 = scmp.ne.s32.totalorder %s123, %s124
      %p138 = scmp.eq.s32.totalorder %s19, 1
      %p139 = por %p137, %p138
      %p141 = scmp.ne.s32.totalorder %s124, %s140
      %p142 = scmp.eq.s32.totalorder %s19, 0
      %p143 = por %p141, %p142
      %s144 = ssub.s32 %s20, %s39
      %s145 = ssub.s32 %s21, %s35
      %s146 = sor.u32 %s144, %s145
      %s147 = ssub.s32 %s22, %s31
      %s148 = sor.u32 %s146, %s147
      %p149 = scmp.eq.s32.totalorder %s148, 0
      %s151 = sadd.s32 %s150, 1
      %s152 = scalar_select %p149, %s150, %s151
      %p155 = pneg %p149
      %p156 = scmp.eq.s32.totalorder %s13, 1
      %p157 = por %p155, %p156
      %p158 = scmp.ne.s32.totalorder %s150, %s153
      %p159 = scmp.eq.s32.totalorder %s13, 0
      %p160 = por %p158, %p159
      %p161 = scmp.ne.s32.totalorder %s150, %s153
      %p162 = scmp.eq.s32.totalorder %s18, 1
      %p163 = por %p161, %p162
      %p164 = scmp.ne.s32.totalorder %s153, %s154
      %p165 = scmp.eq.s32.totalorder %s18, 0
      %p166 = por %p164, %p165
      %p167 = scmp.ne.s32.totalorder %s153, %s154
      %p168 = scmp.eq.s32.totalorder %s19, 1
      %p169 = por %p167, %p168
      %p171 = scmp.ne.s32.totalorder %s154, %s170
      %p172 = scmp.eq.s32.totalorder %s19, 0
      %p173 = por %p171, %p172
      %p174 = scmp.le.s32.totalorder 1, %s13
      %p175 = scmp.lt.s32.totalorder %s13, 3
      %p176 = pnand %p174, %p175
      %p177 = pneg %p176
      // Predicated region
      $region9: #{conv_norm_forward.1} parent=5 // pred_check
        _
      $region10: #{conv_norm_forward.1} parent=5 // pred_check_branch
        %179 = sbr.rel (%p176) target = $region12
      $region11: #{conv_norm_forward.1} parent=5 // pred_region
        %s180 = ssub.s32 %s13, 1
        // Predicated region
        $region13: #{conv_norm_forward.1} parent=11 // pred_check
          %p181 = pneg %p84
        $region14: #{conv_norm_forward.1} parent=11 // pred_check_branch
          %183 = sbr.rel (%p181) target = $region16
        $region15: #{conv_norm_forward.1} parent=11 // pred_region
          %p184 = scmp.lt.s32.totalorder %s25, 0
          %s185 = scalar_select %p184, %s25, 0
          %s186 = smul.addr %s185, 4
          %s187 = scalar_lea.vmem %s1, %s186
        $region16: #{conv_norm_forward.1} parent=11 // pred_fallthru
          _
        // Predicated region
        $region17: #{conv_norm_forward.1} parent=11 // pred_check
          %p188 = pneg %p110
        $region18: #{conv_norm_forward.1} parent=11 // pred_check_branch
          %190 = sbr.rel (%p188) target = $region20
        $region19: #{conv_norm_forward.1} parent=11 // pred_region
          %p191 = scmp.lt.s32.totalorder %s25, 0
          %s192 = scalar_select %p191, %s25, 0
          %s193 = scalar_lea.vmem %s2, %s192
        $region20: #{conv_norm_forward.1} parent=11 // pred_fallthru
          _
        // Predicated region
        $region21: #{conv_norm_forward.1} parent=11 // pred_check
          %p194 = pneg %p136
        $region22: #{conv_norm_forward.1} parent=11 // pred_check_branch
          %196 = sbr.rel (%p194) target = $region24
        $region23: #{conv_norm_forward.1} parent=11 // pred_region
          %p197 = scmp.lt.s32.totalorder %s25, 0
          %s198 = scalar_select %p197, %s25, 0
          %s199 = scalar_lea.vmem %s3, %s198
        $region24: #{conv_norm_forward.1} parent=11 // pred_fallthru
          _
      $region12: #{conv_norm_forward.1} parent=5 // pred_fallthru
        _
      %p200 = scmp.lt.s32.totalorder %s13, 2
      // Predicated region
      $region25: #{conv_norm_forward.1} parent=5 // pred_check
        %p201 = pneg %p200
      $region26: #{conv_norm_forward.1} parent=5 // pred_check_branch
        %203 = sbr.rel (%p201) target = $region28
      $region27: #{conv_norm_forward.1} parent=5 // pred_region
        // Predicated region
        $region29: #{conv_norm_forward.1} parent=27 // pred_check
          %p204 = pneg %p52
        $region30: #{conv_norm_forward.1} parent=27 // pred_check_branch
          %206 = sbr.rel (%p204) target = $region32
        $region31: #{conv_norm_forward.1} parent=27 // pred_region
          %p207 = scmp.lt.s32.totalorder %s20, 1
          %s208 = scalar_select %p207, %s20, 1
          %s209 = smul.addr %s208, 54
          %s210 = smul.addr %s209, 4
          %s211 = scalar_lea.vmem %s0, %s210
        $region32: #{conv_norm_forward.1} parent=27 // pred_fallthru
          _
      $region28: #{conv_norm_forward.1} parent=5 // pred_fallthru
        _
      %p212 = scmp.le.s32.totalorder 1, %s13
      %p213 = scmp.lt.s32.totalorder %s13, 3
      %p214 = pnand %p212, %p213
      %p215 = pneg %p214
      // Predicated region
      $region33: #{conv_norm_forward.1} parent=5 // pred_check
        _
      $region34: #{conv_norm_forward.1} parent=5 // pred_check_branch
        %217 = sbr.rel (%p214) target = $region36
      $region35: #{conv_norm_forward.1} parent=5 // pred_region
        %s218 = ssub.s32 %s13, 1
        %p219 = scmp.lt.s32.totalorder %s23, 1
        %s220 = scalar_select %p219, %s23, 1
        %s221 = smul.addr %s220, 54
        %s222 = smul.addr %s221, 4
        %s223 = scalar_lea.vmem %s0, %s222
        %p224 = pneg %p58
        %p225 = pneg %p55
        %p226 = scmp.lt.s32.totalorder %s25, 0
        %s227 = scalar_select %p226, %s25, 0
        %s228 = smul.addr %s227, 4
        %s229 = scalar_lea.vmem %s1, %s228
        %p230 = pneg %p84
        %p231 = pneg %p81
        %p232 = scmp.lt.s32.totalorder %s25, 0
        %s233 = scalar_select %p232, %s25, 0
        %s234 = scalar_lea.vmem %s2, %s233
        %p235 = pneg %p110
        %p236 = pneg %p107
        %p237 = scmp.lt.s32.totalorder %s25, 0
        %s238 = scalar_select %p237, %s25, 0
        %s239 = scalar_lea.vmem %s3, %s238
        %p240 = pneg %p136
        %p241 = pneg %p133
        %p242 = pneg %p166
        %p243 = pneg %p163
        %s244 = sand.u32 %s153, 1
        %s245 = scalar_lea.sflag [#allocation3], %s244
        %s246 = sand.u32 %s153, 1
        %s247 = smul.addr %s246, 256
        %s248 = scalar_lea.vmem [#allocation2], %s247
        %p249 = scmp.lt.s32.totalorder %s23, 1
        %s250 = scalar_select %p249, %s23, 1
        %s251 = smul.addr %s250, 54
        %s252 = smul.addr %s251, 4
        %s253 = scalar_lea.vmem %s0, %s252
        %p254 = scmp.lt.s32.totalorder %s25, 0
        %s255 = scalar_select %p254, %s25, 0
        %s256 = smul.addr %s255, 4
        %s257 = scalar_lea.vmem %s1, %s256
        %p258 = scmp.lt.s32.totalorder %s25, 0
        %s259 = scalar_select %p258, %s25, 0
        %s260 = scalar_lea.vmem %s2, %s259
        %p261 = scmp.lt.s32.totalorder %s25, 0
        %s262 = scalar_select %p261, %s25, 0
        %s263 = scalar_lea.vmem %s3, %s262
        %s264 = smul.u32 16, %s24
        %s266 = smul.u32 %s24, 16
        %s267 = smul.u32 %s266, 3
        %s268 = smul.addr %s267, 4
        %s269 = scalar_lea.vmem %s253, %s268
        %v270 = vld [vmem:[%s269] sm:$0xf]
        %v271 = vld [vmem:[%s269 + $0x4] sm:$0xf]
        %v272 = vld [vmem:[%s269 + $0xc] sm:$0xf]
        %v273 = vld [vmem:[%s269 + $0x10] sm:$0xf]
        %v274 = vld [vmem:[%s269 + $0x18] sm:$0xf]
        %v275 = vld [vmem:[%s269 + $0x1c] sm:$0xf]
        %v276 = vld [vmem:[%s269 + $0x24] sm:$0xf]
        %v277 = vld [vmem:[%s269 + $0x28] sm:$0xf]
        %v278 = vld [vmem:[%s269 + $0x30] sm:$0xf]
        %v279 = vld [vmem:[%s269 + $0x34] sm:$0xf]
        %v280 = vld [vmem:[%s269 + $0x3c] sm:$0xf]
        %v281 = vld [vmem:[%s269 + $0x40] sm:$0xf]
        %v282 = vld [vmem:[%s269 + $0x48] sm:$0xf]
        %v283 = vld [vmem:[%s269 + $0x4c] sm:$0xf]
        %v284 = vld [vmem:[%s269 + $0x54] sm:$0xf]
        %v285 = vld [vmem:[%s269 + $0x58] sm:$0xf]
        %v286 = vld [vmem:[%s269 + $0x60] sm:$0xf]
        %v287 = vld [vmem:[%s269 + $0x64] sm:$0xf]
        %v288 = vld [vmem:[%s269 + $0x6c] sm:$0xf]
        %v289 = vld [vmem:[%s269 + $0x70] sm:$0xf]
        %v290 = vld [vmem:[%s269 + $0x78] sm:$0xf]
        %v291 = vld [vmem:[%s269 + $0x7c] sm:$0xf]
        %v292 = vld [vmem:[%s269 + $0x84] sm:$0xf]
        %v293 = vld [vmem:[%s269 + $0x88] sm:$0xf]
        %v294 = vld [vmem:[%s269 + $0x90] sm:$0xf]
        %v295 = vld [vmem:[%s269 + $0x94] sm:$0xf]
        %v296 = vld [vmem:[%s269 + $0x9c] sm:$0xf]
        %v297 = vld [vmem:[%s269 + $0xa0] sm:$0xf]
        %v298 = vld [vmem:[%s269 + $0xa8] sm:$0xf]
        %v299 = vld [vmem:[%s269 + $0xac] sm:$0xf]
        %v300 = vld [vmem:[%s269 + $0xb4] sm:$0xf]
        %v301 = vld [vmem:[%s269 + $0xb8] sm:$0xf]
        %v302 = vld [vmem:[%s257] sm:$0xf]
        %v303 = vld [vmem:[%s257 + $0x4] sm:$0xf]
        %v304 = vld [vmem:[%s257 + $0x8] sm:$0xf]
        %v305 = vld [vmem:[%s257 + $0xc] sm:$0xf]
        %v306 = vld [vmem:[%s269 + $0x8] sm:$0x1]
        %v307 = vld [vmem:[%s269 + $0x14] sm:$0x1]
        %v308 = vld [vmem:[%s269 + $0x20] sm:$0x1]
        %v309 = vld [vmem:[%s269 + $0x2c] sm:$0x1]
        %v310 = vld [vmem:[%s269 + $0x38] sm:$0x1]
        %v311 = vld [vmem:[%s269 + $0x44] sm:$0x1]
        %v312 = vld [vmem:[%s269 + $0x50] sm:$0x1]
        %v313 = vld [vmem:[%s269 + $0x5c] sm:$0x1]
        %v314 = vld [vmem:[%s269 + $0x68] sm:$0x1]
        %v315 = vld [vmem:[%s269 + $0x74] sm:$0x1]
        %v316 = vld [vmem:[%s269 + $0x80] sm:$0x1]
        %v317 = vld [vmem:[%s269 + $0x8c] sm:$0x1]
        %v318 = vld [vmem:[%s269 + $0x98] sm:$0x1]
        %v319 = vld [vmem:[%s269 + $0xa4] sm:$0x1]
        %v320 = vld [vmem:[%s269 + $0xb0] sm:$0x1]
        %v321 = vld [vmem:[%s269 + $0xbc] sm:$0x1]
        %vm322 = vsmask.f32 3328
        %vm323 = vsmask.f32 7440
        %vm324 = vmor %vm322, %vm323
        %v326 = vshrl.u32 %v270, 16
        %v328 = vrot.slane %v326, 4
        %v329 = vshll.u32 %v270, 16
        %v331 = vrot.slane %v329, 5
        %v332 = vor.u32 %v328, %v331
        %v333 = vrot.slane %v332, 4
        %v335 = vshll.u32 %v271, 16
        %v337 = vrot.slane %v335, 5
        %v338 = vsel %vm324, %v333, %v337
        %v339 = vshrl.u32 %v271, 16
        %v341 = vrot.slane %v339, 4
        %v342 = vor.u32 %v341, %v337
        %v343 = vrot.slane %v342, 4
        %v345 = vshll.u32 %v306, 16
        %v347 = vrot.slane %v345, 5
        %v348 = vsel %vm324, %v343, %v347
        %v350 = vshrl.u32 %v272, 16
        %v352 = vrot.slane %v350, 4
        %v353 = vshll.u32 %v272, 16
        %v355 = vrot.slane %v353, 5
        %v356 = vor.u32 %v352, %v355
        %v357 = vrot.slane %v356, 4
        %v359 = vshll.u32 %v273, 16
        %v361 = vrot.slane %v359, 5
        %v362 = vsel %vm324, %v357, %v361
        %v363 = vshrl.u32 %v273, 16
        %v365 = vrot.slane %v363, 4
        %v366 = vor.u32 %v365, %v361
        %v367 = vrot.slane %v366, 4
        %v369 = vshll.u32 %v307, 16
        %v371 = vrot.slane %v369, 5
        %v372 = vsel %vm324, %v367, %v371
        %v374 = vshrl.u32 %v274, 16
        %v376 = vrot.slane %v374, 4
        %v377 = vshll.u32 %v274, 16
        %v379 = vrot.slane %v377, 5
        %v380 = vor.u32 %v376, %v379
        %v381 = vrot.slane %v380, 4
        %v383 = vshll.u32 %v275, 16
        %v385 = vrot.slane %v383, 5
        %v386 = vsel %vm324, %v381, %v385
        %v387 = vshrl.u32 %v275, 16
        %v389 = vrot.slane %v387, 4
        %v390 = vor.u32 %v389, %v385
        %v391 = vrot.slane %v390, 4
        %v393 = vshll.u32 %v308, 16
        %v395 = vrot.slane %v393, 5
        %v396 = vsel %vm324, %v391, %v395
        %v398 = vshrl.u32 %v276, 16
        %v400 = vrot.slane %v398, 4
        %v401 = vshll.u32 %v276, 16
        %v403 = vrot.slane %v401, 5
        %v404 = vor.u32 %v400, %v403
        %v405 = vrot.slane %v404, 4
        %v407 = vshll.u32 %v277, 16
        %v409 = vrot.slane %v407, 5
        %v410 = vsel %vm324, %v405, %v409
        %v411 = vshrl.u32 %v277, 16
        %v413 = vrot.slane %v411, 4
        %v414 = vor.u32 %v413, %v409
        %v415 = vrot.slane %v414, 4
        %v417 = vshll.u32 %v309, 16
        %v419 = vrot.slane %v417, 5
        %v420 = vsel %vm324, %v415, %v419
        %v422 = vshrl.u32 %v278, 16
        %v424 = vrot.slane %v422, 4
        %v425 = vshll.u32 %v278, 16
        %v427 = vrot.slane %v425, 5
        %v428 = vor.u32 %v424, %v427
        %v429 = vrot.slane %v428, 4
        %v431 = vshll.u32 %v279, 16
        %v433 = vrot.slane %v431, 5
        %v434 = vsel %vm324, %v429, %v433
        %v435 = vshrl.u32 %v279, 16
        %v437 = vrot.slane %v435, 4
        %v438 = vor.u32 %v437, %v433
        %v439 = vrot.slane %v438, 4
        %v441 = vshll.u32 %v310, 16
        %v443 = vrot.slane %v441, 5
        %v444 = vsel %vm324, %v439, %v443
        %v446 = vshrl.u32 %v280, 16
        %v448 = vrot.slane %v446, 4
        %v449 = vshll.u32 %v280, 16
        %v451 = vrot.slane %v449, 5
        %v452 = vor.u32 %v448, %v451
        %v453 = vrot.slane %v452, 4
        %v455 = vshll.u32 %v281, 16
        %v457 = vrot.slane %v455, 5
        %v458 = vsel %vm324, %v453, %v457
        %v459 = vshrl.u32 %v281, 16
        %v461 = vrot.slane %v459, 4
        %v462 = vor.u32 %v461, %v457
        %v463 = vrot.slane %v462, 4
        %v465 = vshll.u32 %v311, 16
        %v467 = vrot.slane %v465, 5
        %v468 = vsel %vm324, %v463, %v467
        %v470 = vshrl.u32 %v282, 16
        %v472 = vrot.slane %v470, 4
        %v473 = vshll.u32 %v282, 16
        %v475 = vrot.slane %v473, 5
        %v476 = vor.u32 %v472, %v475
        %v477 = vrot.slane %v476, 4
        %v479 = vshll.u32 %v283, 16
        %v481 = vrot.slane %v479, 5
        %v482 = vsel %vm324, %v477, %v481
        %v483 = vshrl.u32 %v283, 16
        %v485 = vrot.slane %v483, 4
        %v486 = vor.u32 %v485, %v481
        %v487 = vrot.slane %v486, 4
        %v489 = vshll.u32 %v312, 16
        %v491 = vrot.slane %v489, 5
        %v492 = vsel %vm324, %v487, %v491
        %v494 = vshrl.u32 %v284, 16
        %v496 = vrot.slane %v494, 4
        %v497 = vshll.u32 %v284, 16
        %v499 = vrot.slane %v497, 5
        %v500 = vor.u32 %v496, %v499
        %v501 = vrot.slane %v500, 4
        %v503 = vshll.u32 %v285, 16
        %v505 = vrot.slane %v503, 5
        %v506 = vsel %vm324, %v501, %v505
        %v507 = vshrl.u32 %v285, 16
        %v509 = vrot.slane %v507, 4
        %v510 = vor.u32 %v509, %v505
        %v511 = vrot.slane %v510, 4
        %v513 = vshll.u32 %v313, 16
        %v515 = vrot.slane %v513, 5
        %v516 = vsel %vm324, %v511, %v515
        %v518 = vshrl.u32 %v286, 16
        %v520 = vrot.slane %v518, 4
        %v521 = vshll.u32 %v286, 16
        %v523 = vrot.slane %v521, 5
        %v524 = vor.u32 %v520, %v523
        %v525 = vrot.slane %v524, 4
        %v527 = vshll.u32 %v287, 16
        %v529 = vrot.slane %v527, 5
        %v530 = vsel %vm324, %v525, %v529
        %v531 = vshrl.u32 %v287, 16
        %v533 = vrot.slane %v531, 4
        %v534 = vor.u32 %v533, %v529
        %v535 = vrot.slane %v534, 4
        %v537 = vshll.u32 %v314, 16
        %v539 = vrot.slane %v537, 5
        %v540 = vsel %vm324, %v535, %v539
        %v542 = vshrl.u32 %v288, 16
        %v544 = vrot.slane %v542, 4
        %v545 = vshll.u32 %v288, 16
        %v547 = vrot.slane %v545, 5
        %v548 = vor.u32 %v544, %v547
        %v549 = vrot.slane %v548, 4
        %v551 = vshll.u32 %v289, 16
        %v553 = vrot.slane %v551, 5
        %v554 = vsel %vm324, %v549, %v553
        %v555 = vshrl.u32 %v289, 16
        %v557 = vrot.slane %v555, 4
        %v558 = vor.u32 %v557, %v553
        %v559 = vrot.slane %v558, 4
        %v561 = vshll.u32 %v315, 16
        %v563 = vrot.slane %v561, 5
        %v564 = vsel %vm324, %v559, %v563
        %v566 = vshrl.u32 %v290, 16
        %v568 = vrot.slane %v566, 4
        %v569 = vshll.u32 %v290, 16
        %v571 = vrot.slane %v569, 5
        %v572 = vor.u32 %v568, %v571
        %v573 = vrot.slane %v572, 4
        %v575 = vshll.u32 %v291, 16
        %v577 = vrot.slane %v575, 5
        %v578 = vsel %vm324, %v573, %v577
        %v579 = vshrl.u32 %v291, 16
        %v581 = vrot.slane %v579, 4
        %v582 = vor.u32 %v581, %v577
        %v583 = vrot.slane %v582, 4
        %v585 = vshll.u32 %v316, 16
        %v587 = vrot.slane %v585, 5
        %v588 = vsel %vm324, %v583, %v587
        %v590 = vshrl.u32 %v292, 16
        %v592 = vrot.slane %v590, 4
        %v593 = vshll.u32 %v292, 16
        %v595 = vrot.slane %v593, 5
        %v596 = vor.u32 %v592, %v595
        %v597 = vrot.slane %v596, 4
        %v599 = vshll.u32 %v293, 16
        %v601 = vrot.slane %v599, 5
        %v602 = vsel %vm324, %v597, %v601
        %v603 = vshrl.u32 %v293, 16
        %v605 = vrot.slane %v603, 4
        %v606 = vor.u32 %v605, %v601
        %v607 = vrot.slane %v606, 4
        %v609 = vshll.u32 %v317, 16
        %v611 = vrot.slane %v609, 5
        %v612 = vsel %vm324, %v607, %v611
        %v614 = vshrl.u32 %v294, 16
        %v616 = vrot.slane %v614, 4
        %v617 = vshll.u32 %v294, 16
        %v619 = vrot.slane %v617, 5
        %v620 = vor.u32 %v616, %v619
        %v621 = vrot.slane %v620, 4
        %v623 = vshll.u32 %v295, 16
        %v625 = vrot.slane %v623, 5
        %v626 = vsel %vm324, %v621, %v625
        %v627 = vshrl.u32 %v295, 16
        %v629 = vrot.slane %v627, 4
        %v630 = vor.u32 %v629, %v625
        %v631 = vrot.slane %v630, 4
        %v633 = vshll.u32 %v318, 16
        %v635 = vrot.slane %v633, 5
        %v636 = vsel %vm324, %v631, %v635
        %v638 = vshrl.u32 %v296, 16
        %v640 = vrot.slane %v638, 4
        %v641 = vshll.u32 %v296, 16
        %v643 = vrot.slane %v641, 5
        %v644 = vor.u32 %v640, %v643
        %v645 = vrot.slane %v644, 4
        %v647 = vshll.u32 %v297, 16
        %v649 = vrot.slane %v647, 5
        %v650 = vsel %vm324, %v645, %v649
        %v651 = vshrl.u32 %v297, 16
        %v653 = vrot.slane %v651, 4
        %v654 = vor.u32 %v653, %v649
        %v655 = vrot.slane %v654, 4
        %v657 = vshll.u32 %v319, 16
        %v659 = vrot.slane %v657, 5
        %v660 = vsel %vm324, %v655, %v659
        %v662 = vshrl.u32 %v298, 16
        %v664 = vrot.slane %v662, 4
        %v665 = vshll.u32 %v298, 16
        %v667 = vrot.slane %v665, 5
        %v668 = vor.u32 %v664, %v667
        %v669 = vrot.slane %v668, 4
        %v671 = vshll.u32 %v299, 16
        %v673 = vrot.slane %v671, 5
        %v674 = vsel %vm324, %v669, %v673
        %v675 = vshrl.u32 %v299, 16
        %v677 = vrot.slane %v675, 4
        %v678 = vor.u32 %v677, %v673
        %v679 = vrot.slane %v678, 4
        %v681 = vshll.u32 %v320, 16
        %v683 = vrot.slane %v681, 5
        %v684 = vsel %vm324, %v679, %v683
        %v686 = vshrl.u32 %v300, 16
        %v688 = vrot.slane %v686, 4
        %v689 = vshll.u32 %v300, 16
        %v691 = vrot.slane %v689, 5
        %v692 = vor.u32 %v688, %v691
        %v693 = vrot.slane %v692, 4
        %v695 = vshll.u32 %v301, 16
        %v697 = vrot.slane %v695, 5
        %v698 = vsel %vm324, %v693, %v697
        %v699 = vshrl.u32 %v301, 16
        %v701 = vrot.slane %v699, 4
        %v702 = vor.u32 %v701, %v697
        %v703 = vrot.slane %v702, 4
        %v705 = vshll.u32 %v321, 16
        %v707 = vrot.slane %v705, 5
        %v708 = vsel %vm324, %v703, %v707
        %v709 = vld [vmem:[%s257 + $0x10] sm:$0xf]
        %v710 = vld [vmem:[%s257 + $0x14] sm:$0xf]
        %v711 = vld [vmem:[%s257 + $0x18] sm:$0xf]
        %v712 = vld [vmem:[%s257 + $0x1c] sm:$0xf]
        %v713 = vunpack.c.l.b16 %v338
        %v714 = vunpack.c.l.b16 %v348
        %v715 = vunpack.c.l.b16 %v362
        %v716 = vunpack.c.l.b16 %v372
        %v717 = vunpack.c.l.b16 %v386
        %v718 = vunpack.c.l.b16 %v396
        %v719 = vunpack.c.l.b16 %v410
        %v720 = vunpack.c.l.b16 %v420
        %v721 = vunpack.c.l.b16 %v434
        %v722 = vunpack.c.l.b16 %v444
        %v723 = vunpack.c.l.b16 %v458
        %v724 = vunpack.c.l.b16 %v468
        %v725 = vunpack.c.l.b16 %v482
        %v726 = vunpack.c.l.b16 %v492
        %v727 = vunpack.c.l.b16 %v506
        %v728 = vunpack.c.l.b16 %v516
        %v729 = vunpack.c.l.b16 %v530
        %v730 = vunpack.c.l.b16 %v540
        %v731 = vunpack.c.l.b16 %v554
        %v732 = vunpack.c.l.b16 %v564
        %v733 = vunpack.c.l.b16 %v578
        %v734 = vunpack.c.l.b16 %v588
        %v735 = vunpack.c.l.b16 %v602
        %v736 = vunpack.c.l.b16 %v612
        %v737 = vunpack.c.l.b16 %v626
        %v738 = vunpack.c.l.b16 %v636
        %v739 = vunpack.c.l.b16 %v650
        %v740 = vunpack.c.l.b16 %v660
        %v741 = vunpack.c.l.b16 %v674
        %v742 = vunpack.c.l.b16 %v684
        %v743 = vunpack.c.l.b16 %v698
        %v744 = vunpack.c.l.b16 %v708
        %v745 = vpack.c.b16 %v714, %v713
        %v746 = vpack.c.b16 %v716, %v715
        %v747 = vpack.c.b16 %v718, %v717
        %v748 = vpack.c.b16 %v720, %v719
        %v749 = vpack.c.b16 %v722, %v721
        %v750 = vpack.c.b16 %v724, %v723
        %v751 = vpack.c.b16 %v726, %v725
        %v752 = vpack.c.b16 %v728, %v727
        %v753 = vpack.c.b16 %v730, %v729
        %v754 = vpack.c.b16 %v732, %v731
        %v755 = vpack.c.b16 %v734, %v733
        %v756 = vpack.c.b16 %v736, %v735
        %v757 = vpack.c.b16 %v738, %v737
        %v758 = vpack.c.b16 %v740, %v739
        %v759 = vpack.c.b16 %v742, %v741
        %v760 = vpack.c.b16 %v744, %v743
        %v765 = vunpack.c.l.b16 %v709
        %v766 = vunpack.c.l.b16 %v710
        %v767 = vunpack.c.l.b16 %v711
        %v768 = vunpack.c.l.b16 %v712
        %v769 = vpack.c.b16 %v766, %v765
        %v770 = vpack.c.b16 %v768, %v767
        %vm773 = vcmask 261120
        %v775 = vsel %vm773, %v745, 0
        %v778 = vsel %vm773, %v746, 0
        %v781 = vsel %vm773, %v747, 0
        %v784 = vsel %vm773, %v748, 0
        %v787 = vsel %vm773, %v749, 0
        %v790 = vsel %vm773, %v750, 0
        %v793 = vsel %vm773, %v751, 0
        %v796 = vsel %vm773, %v752, 0
        %v799 = vsel %vm773, %v753, 0
        %v802 = vsel %vm773, %v754, 0
        %v805 = vsel %vm773, %v755, 0
        %v808 = vsel %vm773, %v756, 0
        %v811 = vsel %vm773, %v757, 0
        %v814 = vsel %vm773, %v758, 0
        %v817 = vsel %vm773, %v759, 0
        %v820 = vsel %vm773, %v760, 0
        %822 = vmatpush.bf16.msra.mxu0 0
        %823 = vmatpush.bf16.msra.mxu0 0
        %824 = vmatpush.bf16.msra.mxu0 0
        %825 = vmatpush.bf16.msra.mxu0 0
        %826 = vmatpush.bf16.msra.mxu0 0
        %827 = vmatpush.bf16.msra.mxu0 0
        %828 = vmatpush.bf16.msra.mxu0 %v770
        %829 = vmatpush.bf16.msra.mxu0 %v769
        %830 = vmatmul.bf16.gmra.mxu0 %v775
        %v831 = vpop.f32.mrf.mxu0
        %v832 = vadd.f32 0.0, %v831
        %v833 = vpop.f32.mrf.mxu0
        %v834 = vadd.f32 0.0, %v833
        %835 = vmatmul.bf16.gmra.mxu0 %v778
        %v836 = vpop.f32.mrf.mxu0
        %v837 = vadd.f32 0.0, %v836
        %v838 = vpop.f32.mrf.mxu0
        %v839 = vadd.f32 0.0, %v838
        %840 = vmatmul.bf16.gmra.mxu0 %v781
        %v841 = vpop.f32.mrf.mxu0
        %v842 = vadd.f32 0.0, %v841
        %v843 = vpop.f32.mrf.mxu0
        %v844 = vadd.f32 0.0, %v843
        %845 = vmatmul.bf16.gmra.mxu0 %v784
        %v846 = vpop.f32.mrf.mxu0
        %v847 = vadd.f32 0.0, %v846
        %v848 = vpop.f32.mrf.mxu0
        %v849 = vadd.f32 0.0, %v848
        %850 = vmatmul.bf16.gmra.mxu0 %v787
        %v851 = vpop.f32.mrf.mxu0
        %v852 = vadd.f32 0.0, %v851
        %v853 = vpop.f32.mrf.mxu0
        %v854 = vadd.f32 0.0, %v853
        %855 = vmatmul.bf16.gmra.mxu0 %v790
        %v856 = vpop.f32.mrf.mxu0
        %v857 = vadd.f32 0.0, %v856
        %v858 = vpop.f32.mrf.mxu0
        %v859 = vadd.f32 0.0, %v858
        %860 = vmatmul.bf16.gmra.mxu0 %v793
        %v861 = vpop.f32.mrf.mxu0
        %v862 = vadd.f32 0.0, %v861
        %v863 = vpop.f32.mrf.mxu0
        %v864 = vadd.f32 0.0, %v863
        %865 = vmatmul.bf16.gmra.mxu0 %v796
        %v866 = vpop.f32.mrf.mxu0
        %v867 = vadd.f32 0.0, %v866
        %v868 = vpop.f32.mrf.mxu0
        %v869 = vadd.f32 0.0, %v868
        %870 = vmatmul.bf16.gmra.mxu0 %v799
        %v871 = vpop.f32.mrf.mxu0
        %v872 = vadd.f32 0.0, %v871
        %v873 = vpop.f32.mrf.mxu0
        %v874 = vadd.f32 0.0, %v873
        %875 = vmatmul.bf16.gmra.mxu0 %v802
        %v876 = vpop.f32.mrf.mxu0
        %v877 = vadd.f32 0.0, %v876
        %v878 = vpop.f32.mrf.mxu0
        %v879 = vadd.f32 0.0, %v878
        %880 = vmatmul.bf16.gmra.mxu0 %v805
        %v881 = vpop.f32.mrf.mxu0
        %v882 = vadd.f32 0.0, %v881
        %v883 = vpop.f32.mrf.mxu0
        %v884 = vadd.f32 0.0, %v883
        %885 = vmatmul.bf16.gmra.mxu0 %v808
        %v886 = vpop.f32.mrf.mxu0
        %v887 = vadd.f32 0.0, %v886
        %v888 = vpop.f32.mrf.mxu0
        %v889 = vadd.f32 0.0, %v888
        %890 = vmatmul.bf16.gmra.mxu0 %v811
        %v891 = vpop.f32.mrf.mxu0
        %v892 = vadd.f32 0.0, %v891
        %v893 = vpop.f32.mrf.mxu0
        %v894 = vadd.f32 0.0, %v893
        %895 = vmatmul.bf16.gmra.mxu0 %v814
        %v896 = vpop.f32.mrf.mxu0
        %v897 = vadd.f32 0.0, %v896
        %v898 = vpop.f32.mrf.mxu0
        %v899 = vadd.f32 0.0, %v898
        %900 = vmatmul.bf16.gmra.mxu0 %v817
        %v901 = vpop.f32.mrf.mxu0
        %v902 = vadd.f32 0.0, %v901
        %v903 = vpop.f32.mrf.mxu0
        %v904 = vadd.f32 0.0, %v903
        %905 = vmatmul.bf16.gmra.mxu0 %v820
        %v906 = vpop.f32.mrf.mxu0
        %v907 = vadd.f32 0.0, %v906
        %v908 = vpop.f32.mrf.mxu0
        %v909 = vadd.f32 0.0, %v908
        %910 = vdwg.mxu0
        %v943 = vunpack.c.l.b16 %v270
        %v944 = vunpack.c.l.b16 %v271
        %v945 = vunpack.c.l.b16 %v272
        %v946 = vunpack.c.l.b16 %v273
        %v947 = vunpack.c.l.b16 %v274
        %v948 = vunpack.c.l.b16 %v275
        %v949 = vunpack.c.l.b16 %v276
        %v950 = vunpack.c.l.b16 %v277
        %v951 = vunpack.c.l.b16 %v278
        %v952 = vunpack.c.l.b16 %v279
        %v953 = vunpack.c.l.b16 %v280
        %v954 = vunpack.c.l.b16 %v281
        %v955 = vunpack.c.l.b16 %v282
        %v956 = vunpack.c.l.b16 %v283
        %v957 = vunpack.c.l.b16 %v284
        %v958 = vunpack.c.l.b16 %v285
        %v959 = vunpack.c.l.b16 %v286
        %v960 = vunpack.c.l.b16 %v287
        %v961 = vunpack.c.l.b16 %v288
        %v962 = vunpack.c.l.b16 %v289
        %v963 = vunpack.c.l.b16 %v290
        %v964 = vunpack.c.l.b16 %v291
        %v965 = vunpack.c.l.b16 %v292
        %v966 = vunpack.c.l.b16 %v293
        %v967 = vunpack.c.l.b16 %v294
        %v968 = vunpack.c.l.b16 %v295
        %v969 = vunpack.c.l.b16 %v296
        %v970 = vunpack.c.l.b16 %v297
        %v971 = vunpack.c.l.b16 %v298
        %v972 = vunpack.c.l.b16 %v299
        %v973 = vunpack.c.l.b16 %v300
        %v974 = vunpack.c.l.b16 %v301
        %v975 = vpack.c.b16 %v944, %v943
        %v976 = vpack.c.b16 %v946, %v945
        %v977 = vpack.c.b16 %v948, %v947
        %v978 = vpack.c.b16 %v950, %v949
        %v979 = vpack.c.b16 %v952, %v951
        %v980 = vpack.c.b16 %v954, %v953
        %v981 = vpack.c.b16 %v956, %v955
        %v982 = vpack.c.b16 %v958, %v957
        %v983 = vpack.c.b16 %v960, %v959
        %v984 = vpack.c.b16 %v962, %v961
        %v985 = vpack.c.b16 %v964, %v963
        %v986 = vpack.c.b16 %v966, %v965
        %v987 = vpack.c.b16 %v968, %v967
        %v988 = vpack.c.b16 %v970, %v969
        %v989 = vpack.c.b16 %v972, %v971
        %v990 = vpack.c.b16 %v974, %v973
        %v995 = vunpack.c.l.b16 %v302
        %v996 = vunpack.c.l.b16 %v303
        %v997 = vunpack.c.l.b16 %v304
        %v998 = vunpack.c.l.b16 %v305
        %v999 = vpack.c.b16 %v996, %v995
        %v1000 = vpack.c.b16 %v998, %v997
        %v1004 = vsel %vm773, %v975, 0
        %v1007 = vsel %vm773, %v976, 0
        %v1010 = vsel %vm773, %v977, 0
        %v1013 = vsel %vm773, %v978, 0
        %v1016 = vsel %vm773, %v979, 0
        %v1019 = vsel %vm773, %v980, 0
        %v1022 = vsel %vm773, %v981, 0
        %v1025 = vsel %vm773, %v982, 0
        %v1028 = vsel %vm773, %v983, 0
        %v1031 = vsel %vm773, %v984, 0
        %v1034 = vsel %vm773, %v985, 0
        %v1037 = vsel %vm773, %v986, 0
        %v1040 = vsel %vm773, %v987, 0
        %v1043 = vsel %vm773, %v988, 0
        %v1046 = vsel %vm773, %v989, 0
        %v1049 = vsel %vm773, %v990, 0
        %1051 = vmatpush.bf16.msra.mxu0 0
        %1052 = vmatpush.bf16.msra.mxu0 0
        %1053 = vmatpush.bf16.msra.mxu0 0
        %1054 = vmatpush.bf16.msra.mxu0 0
        %1055 = vmatpush.bf16.msra.mxu0 0
        %1056 = vmatpush.bf16.msra.mxu0 0
        %1057 = vmatpush.bf16.msra.mxu0 %v1000
        %1058 = vmatpush.bf16.msra.mxu0 %v999
        %1059 = vmatmul.bf16.gmra.mxu0 %v1004
        %v1060 = vpop.f32.mrf.mxu0
        %v1061 = vadd.f32 %v832, %v1060
        %v1062 = vpop.f32.mrf.mxu0
        %v1063 = vadd.f32 %v834, %v1062
        %1064 = vmatmul.bf16.gmra.mxu0 %v1007
        %v1065 = vpop.f32.mrf.mxu0
        %v1066 = vadd.f32 %v837, %v1065
        %v1067 = vpop.f32.mrf.mxu0
        %v1068 = vadd.f32 %v839, %v1067
        %1069 = vmatmul.bf16.gmra.mxu0 %v1010
        %v1070 = vpop.f32.mrf.mxu0
        %v1071 = vadd.f32 %v842, %v1070
        %v1072 = vpop.f32.mrf.mxu0
        %v1073 = vadd.f32 %v844, %v1072
        %1074 = vmatmul.bf16.gmra.mxu0 %v1013
        %v1075 = vpop.f32.mrf.mxu0
        %v1076 = vadd.f32 %v847, %v1075
        %v1077 = vpop.f32.mrf.mxu0
        %v1078 = vadd.f32 %v849, %v1077
        %1079 = vmatmul.bf16.gmra.mxu0 %v1016
        %v1080 = vpop.f32.mrf.mxu0
        %v1081 = vadd.f32 %v852, %v1080
        %v1082 = vpop.f32.mrf.mxu0
        %v1083 = vadd.f32 %v854, %v1082
        %1084 = vmatmul.bf16.gmra.mxu0 %v1019
        %v1085 = vpop.f32.mrf.mxu0
        %v1086 = vadd.f32 %v857, %v1085
        %v1087 = vpop.f32.mrf.mxu0
        %v1088 = vadd.f32 %v859, %v1087
        %1089 = vmatmul.bf16.gmra.mxu0 %v1022
        %v1090 = vpop.f32.mrf.mxu0
        %v1091 = vadd.f32 %v862, %v1090
        %v1092 = vpop.f32.mrf.mxu0
        %v1093 = vadd.f32 %v864, %v1092
        %1094 = vmatmul.bf16.gmra.mxu0 %v1025
        %v1095 = vpop.f32.mrf.mxu0
        %v1096 = vadd.f32 %v867, %v1095
        %v1097 = vpop.f32.mrf.mxu0
        %v1098 = vadd.f32 %v869, %v1097
        %1099 = vmatmul.bf16.gmra.mxu0 %v1028
        %v1100 = vpop.f32.mrf.mxu0
        %v1101 = vadd.f32 %v872, %v1100
        %v1102 = vpop.f32.mrf.mxu0
        %v1103 = vadd.f32 %v874, %v1102
        %1104 = vmatmul.bf16.gmra.mxu0 %v1031
        %v1105 = vpop.f32.mrf.mxu0
        %v1106 = vadd.f32 %v877, %v1105
        %v1107 = vpop.f32.mrf.mxu0
        %v1108 = vadd.f32 %v879, %v1107
        %1109 = vmatmul.bf16.gmra.mxu0 %v1034
        %v1110 = vpop.f32.mrf.mxu0
        %v1111 = vadd.f32 %v882, %v1110
        %v1112 = vpop.f32.mrf.mxu0
        %v1113 = vadd.f32 %v884, %v1112
        %1114 = vmatmul.bf16.gmra.mxu0 %v1037
        %v1115 = vpop.f32.mrf.mxu0
        %v1116 = vadd.f32 %v887, %v1115
        %v1117 = vpop.f32.mrf.mxu0
        %v1118 = vadd.f32 %v889, %v1117
        %1119 = vmatmul.bf16.gmra.mxu0 %v1040
        %v1120 = vpop.f32.mrf.mxu0
        %v1121 = vadd.f32 %v892, %v1120
        %v1122 = vpop.f32.mrf.mxu0
        %v1123 = vadd.f32 %v894, %v1122
        %1124 = vmatmul.bf16.gmra.mxu0 %v1043
        %v1125 = vpop.f32.mrf.mxu0
        %v1126 = vadd.f32 %v897, %v1125
        %v1127 = vpop.f32.mrf.mxu0
        %v1128 = vadd.f32 %v899, %v1127
        %1129 = vmatmul.bf16.gmra.mxu0 %v1046
        %v1130 = vpop.f32.mrf.mxu0
        %v1131 = vadd.f32 %v902, %v1130
        %v1132 = vpop.f32.mrf.mxu0
        %v1133 = vadd.f32 %v904, %v1132
        %1134 = vmatmul.bf16.gmra.mxu0 %v1049
        %v1135 = vpop.f32.mrf.mxu0
        %v1136 = vadd.f32 %v907, %v1135
        %v1137 = vpop.f32.mrf.mxu0
        %v1138 = vadd.f32 %v909, %v1137
        %1139 = vdwg.mxu0
        %v1140 = vld [vmem:[%s269] sm:$0xe]
        %v1141 = vld [vmem:[%s269 + $0xc] sm:$0xe]
        %v1142 = vld [vmem:[%s269 + $0x18] sm:$0xe]
        %v1143 = vld [vmem:[%s269 + $0x24] sm:$0xe]
        %v1144 = vld [vmem:[%s269 + $0x30] sm:$0xe]
        %v1145 = vld [vmem:[%s269 + $0x3c] sm:$0xe]
        %v1146 = vld [vmem:[%s269 + $0x48] sm:$0xe]
        %v1147 = vld [vmem:[%s269 + $0x54] sm:$0xe]
        %v1148 = vld [vmem:[%s269 + $0x60] sm:$0xe]
        %v1149 = vld [vmem:[%s269 + $0x6c] sm:$0xe]
        %v1150 = vld [vmem:[%s269 + $0x78] sm:$0xe]
        %v1151 = vld [vmem:[%s269 + $0x84] sm:$0xe]
        %v1152 = vld [vmem:[%s269 + $0x90] sm:$0xe]
        %v1153 = vld [vmem:[%s269 + $0x9c] sm:$0xe]
        %v1154 = vld [vmem:[%s269 + $0xa8] sm:$0xe]
        %v1155 = vld [vmem:[%s269 + $0xb4] sm:$0xe]
        %vm1188 = vcmask 1042432
        %vm1189 = vcmask 1046532
        %vm1190 = vmor %vm1188, %vm1189
        %v1191 = vrot.slane %v1140, 5
        %v1192 = vrot.slane %v1191, 4
        %v1193 = vrot.slane %v271, 5
        %v1194 = vsel %vm1190, %v1192, %v1193
        %v1195 = vrot.slane %v1193, 4
        %v1196 = vrot.slane %v306, 5
        %v1197 = vsel %vm1190, %v1195, %v1196
        %v1198 = vrot.slane %v1141, 5
        %v1199 = vrot.slane %v1198, 4
        %v1200 = vrot.slane %v273, 5
        %v1201 = vsel %vm1190, %v1199, %v1200
        %v1202 = vrot.slane %v1200, 4
        %v1203 = vrot.slane %v307, 5
        %v1204 = vsel %vm1190, %v1202, %v1203
        %v1205 = vrot.slane %v1142, 5
        %v1206 = vrot.slane %v1205, 4
        %v1207 = vrot.slane %v275, 5
        %v1208 = vsel %vm1190, %v1206, %v1207
        %v1209 = vrot.slane %v1207, 4
        %v1210 = vrot.slane %v308, 5
        %v1211 = vsel %vm1190, %v1209, %v1210
        %v1212 = vrot.slane %v1143, 5
        %v1213 = vrot.slane %v1212, 4
        %v1214 = vrot.slane %v277, 5
        %v1215 = vsel %vm1190, %v1213, %v1214
        %v1216 = vrot.slane %v1214, 4
        %v1217 = vrot.slane %v309, 5
        %v1218 = vsel %vm1190, %v1216, %v1217
        %v1219 = vrot.slane %v1144, 5
        %v1220 = vrot.slane %v1219, 4
        %v1221 = vrot.slane %v279, 5
        %v1222 = vsel %vm1190, %v1220, %v1221
        %v1223 = vrot.slane %v1221, 4
        %v1224 = vrot.slane %v310, 5
        %v1225 = vsel %vm1190, %v1223, %v1224
        %v1226 = vrot.slane %v1145, 5
        %v1227 = vrot.slane %v1226, 4
        %v1228 = vrot.slane %v281, 5
        %v1229 = vsel %vm1190, %v1227, %v1228
        %v1230 = vrot.slane %v1228, 4
        %v1231 = vrot.slane %v311, 5
        %v1232 = vsel %vm1190, %v1230, %v1231
        %v1233 = vrot.slane %v1146, 5
        %v1234 = vrot.slane %v1233, 4
        %v1235 = vrot.slane %v283, 5
        %v1236 = vsel %vm1190, %v1234, %v1235
        %v1237 = vrot.slane %v1235, 4
        %v1238 = vrot.slane %v312, 5
        %v1239 = vsel %vm1190, %v1237, %v1238
        %v1240 = vrot.slane %v1147, 5
        %v1241 = vrot.slane %v1240, 4
        %v1242 = vrot.slane %v285, 5
        %v1243 = vsel %vm1190, %v1241, %v1242
        %v1244 = vrot.slane %v1242, 4
        %v1245 = vrot.slane %v313, 5
        %v1246 = vsel %vm1190, %v1244, %v1245
        %v1247 = vrot.slane %v1148, 5
        %v1248 = vrot.slane %v1247, 4
        %v1249 = vrot.slane %v287, 5
        %v1250 = vsel %vm1190, %v1248, %v1249
        %v1251 = vrot.slane %v1249, 4
        %v1252 = vrot.slane %v314, 5
        %v1253 = vsel %vm1190, %v1251, %v1252
        %v1254 = vrot.slane %v1149, 5
        %v1255 = vrot.slane %v1254, 4
        %v1256 = vrot.slane %v289, 5
        %v1257 = vsel %vm1190, %v1255, %v1256
        %v1258 = vrot.slane %v1256, 4
        %v1259 = vrot.slane %v315, 5
        %v1260 = vsel %vm1190, %v1258, %v1259
        %v1261 = vrot.slane %v1150, 5
        %v1262 = vrot.slane %v1261, 4
        %v1263 = vrot.slane %v291, 5
        %v1264 = vsel %vm1190, %v1262, %v1263
        %v1265 = vrot.slane %v1263, 4
        %v1266 = vrot.slane %v316, 5
        %v1267 = vsel %vm1190, %v1265, %v1266
        %v1268 = vrot.slane %v1151, 5
        %v1269 = vrot.slane %v1268, 4
        %v1270 = vrot.slane %v293, 5
        %v1271 = vsel %vm1190, %v1269, %v1270
        %v1272 = vrot.slane %v1270, 4
        %v1273 = vrot.slane %v317, 5
        %v1274 = vsel %vm1190, %v1272, %v1273
        %v1275 = vrot.slane %v1152, 5
        %v1276 = vrot.slane %v1275, 4
        %v1277 = vrot.slane %v295, 5
        %v1278 = vsel %vm1190, %v1276, %v1277
        %v1279 = vrot.slane %v1277, 4
        %v1280 = vrot.slane %v318, 5
        %v1281 = vsel %vm1190, %v1279, %v1280
        %v1282 = vrot.slane %v1153, 5
        %v1283 = vrot.slane %v1282, 4
        %v1284 = vrot.slane %v297, 5
        %v1285 = vsel %vm1190, %v1283, %v1284
        %v1286 = vrot.slane %v1284, 4
        %v1287 = vrot.slane %v319, 5
        %v1288 = vsel %vm1190, %v1286, %v1287
        %v1289 = vrot.slane %v1154, 5
        %v1290 = vrot.slane %v1289, 4
        %v1291 = vrot.slane %v299, 5
        %v1292 = vsel %vm1190, %v1290, %v1291
        %v1293 = vrot.slane %v1291, 4
        %v1294 = vrot.slane %v320, 5
        %v1295 = vsel %vm1190, %v1293, %v1294
        %v1296 = vrot.slane %v1155, 5
        %v1297 = vrot.slane %v1296, 4
        %v1298 = vrot.slane %v301, 5
        %v1299 = vsel %vm1190, %v1297, %v1298
        %v1300 = vrot.slane %v1298, 4
        %v1301 = vrot.slane %v321, 5
        %v1302 = vsel %vm1190, %v1300, %v1301
        %v1303 = vld [vmem:[%s257 + $0x20] sm:$0xf]
        %v1304 = vld [vmem:[%s257 + $0x24] sm:$0xf]
        %v1305 = vld [vmem:[%s257 + $0x28] sm:$0xf]
        %v1306 = vld [vmem:[%s257 + $0x2c] sm:$0xf]
        %v1307 = vunpack.c.l.b16 %v1194
        %v1308 = vunpack.c.l.b16 %v1197
        %v1309 = vunpack.c.l.b16 %v1201
        %v1310 = vunpack.c.l.b16 %v1204
        %v1311 = vunpack.c.l.b16 %v1208
        %v1312 = vunpack.c.l.b16 %v1211
        %v1313 = vunpack.c.l.b16 %v1215
        %v1314 = vunpack.c.l.b16 %v1218
        %v1315 = vunpack.c.l.b16 %v1222
        %v1316 = vunpack.c.l.b16 %v1225
        %v1317 = vunpack.c.l.b16 %v1229
        %v1318 = vunpack.c.l.b16 %v1232
        %v1319 = vunpack.c.l.b16 %v1236
        %v1320 = vunpack.c.l.b16 %v1239
        %v1321 = vunpack.c.l.b16 %v1243
        %v1322 = vunpack.c.l.b16 %v1246
        %v1323 = vunpack.c.l.b16 %v1250
        %v1324 = vunpack.c.l.b16 %v1253
        %v1325 = vunpack.c.l.b16 %v1257
        %v1326 = vunpack.c.l.b16 %v1260
        %v1327 = vunpack.c.l.b16 %v1264
        %v1328 = vunpack.c.l.b16 %v1267
        %v1329 = vunpack.c.l.b16 %v1271
        %v1330 = vunpack.c.l.b16 %v1274
        %v1331 = vunpack.c.l.b16 %v1278
        %v1332 = vunpack.c.l.b16 %v1281
        %v1333 = vunpack.c.l.b16 %v1285
        %v1334 = vunpack.c.l.b16 %v1288
        %v1335 = vunpack.c.l.b16 %v1292
        %v1336 = vunpack.c.l.b16 %v1295
        %v1337 = vunpack.c.l.b16 %v1299
        %v1338 = vunpack.c.l.b16 %v1302
        %v1339 = vpack.c.b16 %v1308, %v1307
        %v1340 = vpack.c.b16 %v1310, %v1309
        %v1341 = vpack.c.b16 %v1312, %v1311
        %v1342 = vpack.c.b16 %v1314, %v1313
        %v1343 = vpack.c.b16 %v1316, %v1315
        %v1344 = vpack.c.b16 %v1318, %v1317
        %v1345 = vpack.c.b16 %v1320, %v1319
        %v1346 = vpack.c.b16 %v1322, %v1321
        %v1347 = vpack.c.b16 %v1324, %v1323
        %v1348 = vpack.c.b16 %v1326, %v1325
        %v1349 = vpack.c.b16 %v1328, %v1327
        %v1350 = vpack.c.b16 %v1330, %v1329
        %v1351 = vpack.c.b16 %v1332, %v1331
        %v1352 = vpack.c.b16 %v1334, %v1333
        %v1353 = vpack.c.b16 %v1336, %v1335
        %v1354 = vpack.c.b16 %v1338, %v1337
        %v1359 = vunpack.c.l.b16 %v1303
        %v1360 = vunpack.c.l.b16 %v1304
        %v1361 = vunpack.c.l.b16 %v1305
        %v1362 = vunpack.c.l.b16 %v1306
        %v1363 = vpack.c.b16 %v1360, %v1359
        %v1364 = vpack.c.b16 %v1362, %v1361
        %v1368 = vsel %vm773, %v1339, 0
        %v1371 = vsel %vm773, %v1340, 0
        %v1374 = vsel %vm773, %v1341, 0
        %v1377 = vsel %vm773, %v1342, 0
        %v1380 = vsel %vm773, %v1343, 0
        %v1383 = vsel %vm773, %v1344, 0
        %v1386 = vsel %vm773, %v1345, 0
        %v1389 = vsel %vm773, %v1346, 0
        %v1392 = vsel %vm773, %v1347, 0
        %v1395 = vsel %vm773, %v1348, 0
        %v1398 = vsel %vm773, %v1349, 0
        %v1401 = vsel %vm773, %v1350, 0
        %v1404 = vsel %vm773, %v1351, 0
        %v1407 = vsel %vm773, %v1352, 0
        %v1410 = vsel %vm773, %v1353, 0
        %v1413 = vsel %vm773, %v1354, 0
        %1415 = vmatpush.bf16.msra.mxu0 0
        %1416 = vmatpush.bf16.msra.mxu0 0
        %1417 = vmatpush.bf16.msra.mxu0 0
        %1418 = vmatpush.bf16.msra.mxu0 0
        %1419 = vmatpush.bf16.msra.mxu0 0
        %1420 = vmatpush.bf16.msra.mxu0 0
        %1421 = vmatpush.bf16.msra.mxu0 %v1364
        %1422 = vmatpush.bf16.msra.mxu0 %v1363
        %1423 = vmatmul.bf16.gmra.mxu0 %v1368
        %v1424 = vpop.f32.mrf.mxu0
        %v1425 = vadd.f32 0.0, %v1424
        %v1426 = vpop.f32.mrf.mxu0
        %v1427 = vadd.f32 0.0, %v1426
        %1428 = vmatmul.bf16.gmra.mxu0 %v1371
        %v1429 = vpop.f32.mrf.mxu0
        %v1430 = vadd.f32 0.0, %v1429
        %v1431 = vpop.f32.mrf.mxu0
        %v1432 = vadd.f32 0.0, %v1431
        %1433 = vmatmul.bf16.gmra.mxu0 %v1374
        %v1434 = vpop.f32.mrf.mxu0
        %v1435 = vadd.f32 0.0, %v1434
        %v1436 = vpop.f32.mrf.mxu0
        %v1437 = vadd.f32 0.0, %v1436
        %1438 = vmatmul.bf16.gmra.mxu0 %v1377
        %v1439 = vpop.f32.mrf.mxu0
        %v1440 = vadd.f32 0.0, %v1439
        %v1441 = vpop.f32.mrf.mxu0
        %v1442 = vadd.f32 0.0, %v1441
        %1443 = vmatmul.bf16.gmra.mxu0 %v1380
        %v1444 = vpop.f32.mrf.mxu0
        %v1445 = vadd.f32 0.0, %v1444
        %v1446 = vpop.f32.mrf.mxu0
        %v1447 = vadd.f32 0.0, %v1446
        %1448 = vmatmul.bf16.gmra.mxu0 %v1383
        %v1449 = vpop.f32.mrf.mxu0
        %v1450 = vadd.f32 0.0, %v1449
        %v1451 = vpop.f32.mrf.mxu0
        %v1452 = vadd.f32 0.0, %v1451
        %1453 = vmatmul.bf16.gmra.mxu0 %v1386
        %v1454 = vpop.f32.mrf.mxu0
        %v1455 = vadd.f32 0.0, %v1454
        %v1456 = vpop.f32.mrf.mxu0
        %v1457 = vadd.f32 0.0, %v1456
        %1458 = vmatmul.bf16.gmra.mxu0 %v1389
        %v1459 = vpop.f32.mrf.mxu0
        %v1460 = vadd.f32 0.0, %v1459
        %v1461 = vpop.f32.mrf.mxu0
        %v1462 = vadd.f32 0.0, %v1461
        %1463 = vmatmul.bf16.gmra.mxu0 %v1392
        %v1464 = vpop.f32.mrf.mxu0
        %v1465 = vadd.f32 0.0, %v1464
        %v1466 = vpop.f32.mrf.mxu0
        %v1467 = vadd.f32 0.0, %v1466
        %1468 = vmatmul.bf16.gmra.mxu0 %v1395
        %v1469 = vpop.f32.mrf.mxu0
        %v1470 = vadd.f32 0.0, %v1469
        %v1471 = vpop.f32.mrf.mxu0
        %v1472 = vadd.f32 0.0, %v1471
        %1473 = vmatmul.bf16.gmra.mxu0 %v1398
        %v1474 = vpop.f32.mrf.mxu0
        %v1475 = vadd.f32 0.0, %v1474
        %v1476 = vpop.f32.mrf.mxu0
        %v1477 = vadd.f32 0.0, %v1476
        %1478 = vmatmul.bf16.gmra.mxu0 %v1401
        %v1479 = vpop.f32.mrf.mxu0
        %v1480 = vadd.f32 0.0, %v1479
        %v1481 = vpop.f32.mrf.mxu0
        %v1482 = vadd.f32 0.0, %v1481
        %1483 = vmatmul.bf16.gmra.mxu0 %v1404
        %v1484 = vpop.f32.mrf.mxu0
        %v1485 = vadd.f32 0.0, %v1484
        %v1486 = vpop.f32.mrf.mxu0
        %v1487 = vadd.f32 0.0, %v1486
        %1488 = vmatmul.bf16.gmra.mxu0 %v1407
        %v1489 = vpop.f32.mrf.mxu0
        %v1490 = vadd.f32 0.0, %v1489
        %v1491 = vpop.f32.mrf.mxu0
        %v1492 = vadd.f32 0.0, %v1491
        %1493 = vmatmul.bf16.gmra.mxu0 %v1410
        %v1494 = vpop.f32.mrf.mxu0
        %v1495 = vadd.f32 0.0, %v1494
        %v1496 = vpop.f32.mrf.mxu0
        %v1497 = vadd.f32 0.0, %v1496
        %1498 = vmatmul.bf16.gmra.mxu0 %v1413
        %v1499 = vpop.f32.mrf.mxu0
        %v1500 = vadd.f32 0.0, %v1499
        %v1501 = vpop.f32.mrf.mxu0
        %v1502 = vadd.f32 0.0, %v1501
        %1503 = vdwg.mxu0
        %v1504 = vadd.f32 %v1061, %v1425
        %v1505 = vadd.f32 %v1063, %v1427
        %v1506 = vadd.f32 %v1066, %v1430
        %v1507 = vadd.f32 %v1068, %v1432
        %v1508 = vadd.f32 %v1071, %v1435
        %v1509 = vadd.f32 %v1073, %v1437
        %v1510 = vadd.f32 %v1076, %v1440
        %v1511 = vadd.f32 %v1078, %v1442
        %v1512 = vadd.f32 %v1081, %v1445
        %v1513 = vadd.f32 %v1083, %v1447
        %v1514 = vadd.f32 %v1086, %v1450
        %v1515 = vadd.f32 %v1088, %v1452
        %v1516 = vadd.f32 %v1091, %v1455
        %v1517 = vadd.f32 %v1093, %v1457
        %v1518 = vadd.f32 %v1096, %v1460
        %v1519 = vadd.f32 %v1098, %v1462
        %v1520 = vadd.f32 %v1101, %v1465
        %v1521 = vadd.f32 %v1103, %v1467
        %v1522 = vadd.f32 %v1106, %v1470
        %v1523 = vadd.f32 %v1108, %v1472
        %v1524 = vadd.f32 %v1111, %v1475
        %v1525 = vadd.f32 %v1113, %v1477
        %v1526 = vadd.f32 %v1116, %v1480
        %v1527 = vadd.f32 %v1118, %v1482
        %v1528 = vadd.f32 %v1121, %v1485
        %v1529 = vadd.f32 %v1123, %v1487
        %v1530 = vadd.f32 %v1126, %v1490
        %v1531 = vadd.f32 %v1128, %v1492
        %v1532 = vadd.f32 %v1131, %v1495
        %v1533 = vadd.f32 %v1133, %v1497
        %v1534 = vadd.f32 %v1136, %v1500
        %v1535 = vadd.f32 %v1138, %v1502
        %s1536 = sadd.s32 %s266, 1
        %s1537 = smul.u32 %s1536, 3
        %s1538 = smul.addr %s1537, 4
        %s1539 = scalar_lea.vmem %s253, %s1538
        %v1540 = vld [vmem:[%s1539] sm:$0xf]
        %v1541 = vld [vmem:[%s1539 + $0x4] sm:$0xf]
        %v1542 = vld [vmem:[%s1539 + $0xc] sm:$0xf]
        %v1543 = vld [vmem:[%s1539 + $0x10] sm:$0xf]
        %v1544 = vld [vmem:[%s1539 + $0x18] sm:$0xf]
        %v1545 = vld [vmem:[%s1539 + $0x1c] sm:$0xf]
        %v1546 = vld [vmem:[%s1539 + $0x24] sm:$0xf]
        %v1547 = vld [vmem:[%s1539 + $0x28] sm:$0xf]
        %v1548 = vld [vmem:[%s1539 + $0x30] sm:$0xf]
        %v1549 = vld [vmem:[%s1539 + $0x34] sm:$0xf]
        %v1550 = vld [vmem:[%s1539 + $0x3c] sm:$0xf]
        %v1551 = vld [vmem:[%s1539 + $0x40] sm:$0xf]
        %v1552 = vld [vmem:[%s1539 + $0x48] sm:$0xf]
        %v1553 = vld [vmem:[%s1539 + $0x4c] sm:$0xf]
        %v1554 = vld [vmem:[%s1539 + $0x54] sm:$0xf]
        %v1555 = vld [vmem:[%s1539 + $0x58] sm:$0xf]
        %v1556 = vld [vmem:[%s1539 + $0x60] sm:$0xf]
        %v1557 = vld [vmem:[%s1539 + $0x64] sm:$0xf]
        %v1558 = vld [vmem:[%s1539 + $0x6c] sm:$0xf]
        %v1559 = vld [vmem:[%s1539 + $0x70] sm:$0xf]
        %v1560 = vld [vmem:[%s1539 + $0x78] sm:$0xf]
        %v1561 = vld [vmem:[%s1539 + $0x7c] sm:$0xf]
        %v1562 = vld [vmem:[%s1539 + $0x84] sm:$0xf]
        %v1563 = vld [vmem:[%s1539 + $0x88] sm:$0xf]
        %v1564 = vld [vmem:[%s1539 + $0x90] sm:$0xf]
        %v1565 = vld [vmem:[%s1539 + $0x94] sm:$0xf]
        %v1566 = vld [vmem:[%s1539 + $0x9c] sm:$0xf]
        %v1567 = vld [vmem:[%s1539 + $0xa0] sm:$0xf]
        %v1568 = vld [vmem:[%s1539 + $0xa8] sm:$0xf]
        %v1569 = vld [vmem:[%s1539 + $0xac] sm:$0xf]
        %v1570 = vld [vmem:[%s1539 + $0xb4] sm:$0xf]
        %v1571 = vld [vmem:[%s1539 + $0xb8] sm:$0xf]
        %v1572 = vld [vmem:[%s257 + $0x30] sm:$0xf]
        %v1573 = vld [vmem:[%s257 + $0x34] sm:$0xf]
        %v1574 = vld [vmem:[%s257 + $0x38] sm:$0xf]
        %v1575 = vld [vmem:[%s257 + $0x3c] sm:$0xf]
        %v1608 = vunpack.c.l.b16 %v1540
        %v1609 = vunpack.c.l.b16 %v1541
        %v1610 = vunpack.c.l.b16 %v1542
        %v1611 = vunpack.c.l.b16 %v1543
        %v1612 = vunpack.c.l.b16 %v1544
        %v1613 = vunpack.c.l.b16 %v1545
        %v1614 = vunpack.c.l.b16 %v1546
        %v1615 = vunpack.c.l.b16 %v1547
        %v1616 = vunpack.c.l.b16 %v1548
        %v1617 = vunpack.c.l.b16 %v1549
        %v1618 = vunpack.c.l.b16 %v1550
        %v1619 = vunpack.c.l.b16 %v1551
        %v1620 = vunpack.c.l.b16 %v1552
        %v1621 = vunpack.c.l.b16 %v1553
        %v1622 = vunpack.c.l.b16 %v1554
        %v1623 = vunpack.c.l.b16 %v1555
        %v1624 = vunpack.c.l.b16 %v1556
        %v1625 = vunpack.c.l.b16 %v1557
        %v1626 = vunpack.c.l.b16 %v1558
        %v1627 = vunpack.c.l.b16 %v1559
        %v1628 = vunpack.c.l.b16 %v1560
        %v1629 = vunpack.c.l.b16 %v1561
        %v1630 = vunpack.c.l.b16 %v1562
        %v1631 = vunpack.c.l.b16 %v1563
        %v1632 = vunpack.c.l.b16 %v1564
        %v1633 = vunpack.c.l.b16 %v1565
        %v1634 = vunpack.c.l.b16 %v1566
        %v1635 = vunpack.c.l.b16 %v1567
        %v1636 = vunpack.c.l.b16 %v1568
        %v1637 = vunpack.c.l.b16 %v1569
        %v1638 = vunpack.c.l.b16 %v1570
        %v1639 = vunpack.c.l.b16 %v1571
        %v1640 = vpack.c.b16 %v1609, %v1608
        %v1641 = vpack.c.b16 %v1611, %v1610
        %v1642 = vpack.c.b16 %v1613, %v1612
        %v1643 = vpack.c.b16 %v1615, %v1614
        %v1644 = vpack.c.b16 %v1617, %v1616
        %v1645 = vpack.c.b16 %v1619, %v1618
        %v1646 = vpack.c.b16 %v1621, %v1620
        %v1647 = vpack.c.b16 %v1623, %v1622
        %v1648 = vpack.c.b16 %v1625, %v1624
        %v1649 = vpack.c.b16 %v1627, %v1626
        %v1650 = vpack.c.b16 %v1629, %v1628
        %v1651 = vpack.c.b16 %v1631, %v1630
        %v1652 = vpack.c.b16 %v1633, %v1632
        %v1653 = vpack.c.b16 %v1635, %v1634
        %v1654 = vpack.c.b16 %v1637, %v1636
        %v1655 = vpack.c.b16 %v1639, %v1638
        %v1660 = vunpack.c.l.b16 %v1572
        %v1661 = vunpack.c.l.b16 %v1573
        %v1662 = vunpack.c.l.b16 %v1574
        %v1663 = vunpack.c.l.b16 %v1575
        %v1664 = vpack.c.b16 %v1661, %v1660
        %v1665 = vpack.c.b16 %v1663, %v1662
        %v1669 = vsel %vm773, %v1640, 0
        %v1672 = vsel %vm773, %v1641, 0
        %v1675 = vsel %vm773, %v1642, 0
        %v1678 = vsel %vm773, %v1643, 0
        %v1681 = vsel %vm773, %v1644, 0
        %v1684 = vsel %vm773, %v1645, 0
        %v1687 = vsel %vm773, %v1646, 0
        %v1690 = vsel %vm773, %v1647, 0
        %v1693 = vsel %vm773, %v1648, 0
        %v1696 = vsel %vm773, %v1649, 0
        %v1699 = vsel %vm773, %v1650, 0
        %v1702 = vsel %vm773, %v1651, 0
        %v1705 = vsel %vm773, %v1652, 0
        %v1708 = vsel %vm773, %v1653, 0
        %v1711 = vsel %vm773, %v1654, 0
        %v1714 = vsel %vm773, %v1655, 0
        %1716 = vmatpush.bf16.msra.mxu0 0
        %1717 = vmatpush.bf16.msra.mxu0 0
        %1718 = vmatpush.bf16.msra.mxu0 0
        %1719 = vmatpush.bf16.msra.mxu0 0
        %1720 = vmatpush.bf16.msra.mxu0 0
        %1721 = vmatpush.bf16.msra.mxu0 0
        %1722 = vmatpush.bf16.msra.mxu0 %v1665
        %1723 = vmatpush.bf16.msra.mxu0 %v1664
        %1724 = vmatmul.bf16.gmra.mxu0 %v1669
        %v1725 = vpop.f32.mrf.mxu0
        %v1726 = vadd.f32 0.0, %v1725
        %v1727 = vpop.f32.mrf.mxu0
        %v1728 = vadd.f32 0.0, %v1727
        %1729 = vmatmul.bf16.gmra.mxu0 %v1672
        %v1730 = vpop.f32.mrf.mxu0
        %v1731 = vadd.f32 0.0, %v1730
        %v1732 = vpop.f32.mrf.mxu0
        %v1733 = vadd.f32 0.0, %v1732
        %1734 = vmatmul.bf16.gmra.mxu0 %v1675
        %v1735 = vpop.f32.mrf.mxu0
        %v1736 = vadd.f32 0.0, %v1735
        %v1737 = vpop.f32.mrf.mxu0
        %v1738 = vadd.f32 0.0, %v1737
        %1739 = vmatmul.bf16.gmra.mxu0 %v1678
        %v1740 = vpop.f32.mrf.mxu0
        %v1741 = vadd.f32 0.0, %v1740
        %v1742 = vpop.f32.mrf.mxu0
        %v1743 = vadd.f32 0.0, %v1742
        %1744 = vmatmul.bf16.gmra.mxu0 %v1681
        %v1745 = vpop.f32.mrf.mxu0
        %v1746 = vadd.f32 0.0, %v1745
        %v1747 = vpop.f32.mrf.mxu0
        %v1748 = vadd.f32 0.0, %v1747
        %1749 = vmatmul.bf16.gmra.mxu0 %v1684
        %v1750 = vpop.f32.mrf.mxu0
        %v1751 = vadd.f32 0.0, %v1750
        %v1752 = vpop.f32.mrf.mxu0
        %v1753 = vadd.f32 0.0, %v1752
        %1754 = vmatmul.bf16.gmra.mxu0 %v1687
        %v1755 = vpop.f32.mrf.mxu0
        %v1756 = vadd.f32 0.0, %v1755
        %v1757 = vpop.f32.mrf.mxu0
        %v1758 = vadd.f32 0.0, %v1757
        %1759 = vmatmul.bf16.gmra.mxu0 %v1690
        %v1760 = vpop.f32.mrf.mxu0
        %v1761 = vadd.f32 0.0, %v1760
        %v1762 = vpop.f32.mrf.mxu0
        %v1763 = vadd.f32 0.0, %v1762
        %1764 = vmatmul.bf16.gmra.mxu0 %v1693
        %v1765 = vpop.f32.mrf.mxu0
        %v1766 = vadd.f32 0.0, %v1765
        %v1767 = vpop.f32.mrf.mxu0
        %v1768 = vadd.f32 0.0, %v1767
        %1769 = vmatmul.bf16.gmra.mxu0 %v1696
        %v1770 = vpop.f32.mrf.mxu0
        %v1771 = vadd.f32 0.0, %v1770
        %v1772 = vpop.f32.mrf.mxu0
        %v1773 = vadd.f32 0.0, %v1772
        %1774 = vmatmul.bf16.gmra.mxu0 %v1699
        %v1775 = vpop.f32.mrf.mxu0
        %v1776 = vadd.f32 0.0, %v1775
        %v1777 = vpop.f32.mrf.mxu0
        %v1778 = vadd.f32 0.0, %v1777
        %1779 = vmatmul.bf16.gmra.mxu0 %v1702
        %v1780 = vpop.f32.mrf.mxu0
        %v1781 = vadd.f32 0.0, %v1780
        %v1782 = vpop.f32.mrf.mxu0
        %v1783 = vadd.f32 0.0, %v1782
        %1784 = vmatmul.bf16.gmra.mxu0 %v1705
        %v1785 = vpop.f32.mrf.mxu0
        %v1786 = vadd.f32 0.0, %v1785
        %v1787 = vpop.f32.mrf.mxu0
        %v1788 = vadd.f32 0.0, %v1787
        %1789 = vmatmul.bf16.gmra.mxu0 %v1708
        %v1790 = vpop.f32.mrf.mxu0
        %v1791 = vadd.f32 0.0, %v1790
        %v1792 = vpop.f32.mrf.mxu0
        %v1793 = vadd.f32 0.0, %v1792
        %1794 = vmatmul.bf16.gmra.mxu0 %v1711
        %v1795 = vpop.f32.mrf.mxu0
        %v1796 = vadd.f32 0.0, %v1795
        %v1797 = vpop.f32.mrf.mxu0
        %v1798 = vadd.f32 0.0, %v1797
        %1799 = vmatmul.bf16.gmra.mxu0 %v1714
        %v1800 = vpop.f32.mrf.mxu0
        %v1801 = vadd.f32 0.0, %v1800
        %v1802 = vpop.f32.mrf.mxu0
        %v1803 = vadd.f32 0.0, %v1802
        %1804 = vdwg.mxu0
        %v1805 = vadd.f32 %v1504, %v1726
        %v1806 = vadd.f32 %v1505, %v1728
        %v1807 = vadd.f32 %v1506, %v1731
        %v1808 = vadd.f32 %v1507, %v1733
        %v1809 = vadd.f32 %v1508, %v1736
        %v1810 = vadd.f32 %v1509, %v1738
        %v1811 = vadd.f32 %v1510, %v1741
        %v1812 = vadd.f32 %v1511, %v1743
        %v1813 = vadd.f32 %v1512, %v1746
        %v1814 = vadd.f32 %v1513, %v1748
        %v1815 = vadd.f32 %v1514, %v1751
        %v1816 = vadd.f32 %v1515, %v1753
        %v1817 = vadd.f32 %v1516, %v1756
        %v1818 = vadd.f32 %v1517, %v1758
        %v1819 = vadd.f32 %v1518, %v1761
        %v1820 = vadd.f32 %v1519, %v1763
        %v1821 = vadd.f32 %v1520, %v1766
        %v1822 = vadd.f32 %v1521, %v1768
        %v1823 = vadd.f32 %v1522, %v1771
        %v1824 = vadd.f32 %v1523, %v1773
        %v1825 = vadd.f32 %v1524, %v1776
        %v1826 = vadd.f32 %v1525, %v1778
        %v1827 = vadd.f32 %v1526, %v1781
        %v1828 = vadd.f32 %v1527, %v1783
        %v1829 = vadd.f32 %v1528, %v1786
        %v1830 = vadd.f32 %v1529, %v1788
        %v1831 = vadd.f32 %v1530, %v1791
        %v1832 = vadd.f32 %v1531, %v1793
        %v1833 = vadd.f32 %v1532, %v1796
        %v1834 = vadd.f32 %v1533, %v1798
        %v1835 = vadd.f32 %v1534, %v1801
        %v1836 = vadd.f32 %v1535, %v1803
        %v1837 = vld [vmem:[%s1539] sm:$0xf]
        %v1838 = vld [vmem:[%s1539 + $0x4] sm:$0xf]
        %v1839 = vld [vmem:[%s1539 + $0x8] sm:$0x1]
        %v1840 = vld [vmem:[%s1539 + $0xc] sm:$0xf]
        %v1841 = vld [vmem:[%s1539 + $0x10] sm:$0xf]
        %v1842 = vld [vmem:[%s1539 + $0x14] sm:$0x1]
        %v1843 = vld [vmem:[%s1539 + $0x18] sm:$0xf]
        %v1844 = vld [vmem:[%s1539 + $0x1c] sm:$0xf]
        %v1845 = vld [vmem:[%s1539 + $0x20] sm:$0x1]
        %v1846 = vld [vmem:[%s1539 + $0x24] sm:$0xf]
        %v1847 = vld [vmem:[%s1539 + $0x28] sm:$0xf]
        %v1848 = vld [vmem:[%s1539 + $0x2c] sm:$0x1]
        %v1849 = vld [vmem:[%s1539 + $0x30] sm:$0xf]
        %v1850 = vld [vmem:[%s1539 + $0x34] sm:$0xf]
        %v1851 = vld [vmem:[%s1539 + $0x38] sm:$0x1]
        %v1852 = vld [vmem:[%s1539 + $0x3c] sm:$0xf]
        %v1853 = vld [vmem:[%s1539 + $0x40] sm:$0xf]
        %v1854 = vld [vmem:[%s1539 + $0x44] sm:$0x1]
        %v1855 = vld [vmem:[%s1539 + $0x48] sm:$0xf]
        %v1856 = vld [vmem:[%s1539 + $0x4c] sm:$0xf]
        %v1857 = vld [vmem:[%s1539 + $0x50] sm:$0x1]
        %v1858 = vld [vmem:[%s1539 + $0x54] sm:$0xf]
        %v1859 = vld [vmem:[%s1539 + $0x58] sm:$0xf]
        %v1860 = vld [vmem:[%s1539 + $0x5c] sm:$0x1]
        %v1861 = vld [vmem:[%s1539 + $0x60] sm:$0xf]
        %v1862 = vld [vmem:[%s1539 + $0x64] sm:$0xf]
        %v1863 = vld [vmem:[%s1539 + $0x68] sm:$0x1]
        %v1864 = vld [vmem:[%s1539 + $0x6c] sm:$0xf]
        %v1865 = vld [vmem:[%s1539 + $0x70] sm:$0xf]
        %v1866 = vld [vmem:[%s1539 + $0x74] sm:$0x1]
        %v1867 = vld [vmem:[%s1539 + $0x78] sm:$0xf]
        %v1868 = vld [vmem:[%s1539 + $0x7c] sm:$0xf]
        %v1869 = vld [vmem:[%s1539 + $0x80] sm:$0x1]
        %v1870 = vld [vmem:[%s1539 + $0x84] sm:$0xf]
        %v1871 = vld [vmem:[%s1539 + $0x88] sm:$0xf]
        %v1872 = vld [vmem:[%s1539 + $0x8c] sm:$0x1]
        %v1873 = vld [vmem:[%s1539 + $0x90] sm:$0xf]
        %v1874 = vld [vmem:[%s1539 + $0x94] sm:$0xf]
        %v1875 = vld [vmem:[%s1539 + $0x98] sm:$0x1]
        %v1876 = vld [vmem:[%s1539 + $0x9c] sm:$0xf]
        %v1877 = vld [vmem:[%s1539 + $0xa0] sm:$0xf]
        %v1878 = vld [vmem:[%s1539 + $0xa4] sm:$0x1]
        %v1879 = vld [vmem:[%s1539 + $0xa8] sm:$0xf]
        %v1880 = vld [vmem:[%s1539 + $0xac] sm:$0xf]
        %v1881 = vld [vmem:[%s1539 + $0xb0] sm:$0x1]
        %v1882 = vld [vmem:[%s1539 + $0xb4] sm:$0xf]
        %v1883 = vld [vmem:[%s1539 + $0xb8] sm:$0xf]
        %v1884 = vld [vmem:[%s1539 + $0xbc] sm:$0x1]
        %v1886 = vshrl.u32 %v1837, 16
        %v1888 = vrot.slane %v1886, 4
        %v1889 = vshll.u32 %v1837, 16
        %v1891 = vrot.slane %v1889, 5
        %v1892 = vor.u32 %v1888, %v1891
        %v1893 = vrot.slane %v1892, 4
        %v1895 = vshll.u32 %v1838, 16
        %v1897 = vrot.slane %v1895, 5
        %v1898 = vsel %vm324, %v1893, %v1897
        %v1899 = vshrl.u32 %v1838, 16
        %v1901 = vrot.slane %v1899, 4
        %v1902 = vor.u32 %v1901, %v1897
        %v1903 = vrot.slane %v1902, 4
        %v1905 = vshll.u32 %v1839, 16
        %v1907 = vrot.slane %v1905, 5
        %v1908 = vsel %vm324, %v1903, %v1907
        %v1910 = vshrl.u32 %v1840, 16
        %v1912 = vrot.slane %v1910, 4
        %v1913 = vshll.u32 %v1840, 16
        %v1915 = vrot.slane %v1913, 5
        %v1916 = vor.u32 %v1912, %v1915
        %v1917 = vrot.slane %v1916, 4
        %v1919 = vshll.u32 %v1841, 16
        %v1921 = vrot.slane %v1919, 5
        %v1922 = vsel %vm324, %v1917, %v1921
        %v1923 = vshrl.u32 %v1841, 16
        %v1925 = vrot.slane %v1923, 4
        %v1926 = vor.u32 %v1925, %v1921
        %v1927 = vrot.slane %v1926, 4
        %v1929 = vshll.u32 %v1842, 16
        %v1931 = vrot.slane %v1929, 5
        %v1932 = vsel %vm324, %v1927, %v1931
        %v1934 = vshrl.u32 %v1843, 16
        %v1936 = vrot.slane %v1934, 4
        %v1937 = vshll.u32 %v1843, 16
        %v1939 = vrot.slane %v1937, 5
        %v1940 = vor.u32 %v1936, %v1939
        %v1941 = vrot.slane %v1940, 4
        %v1943 = vshll.u32 %v1844, 16
        %v1945 = vrot.slane %v1943, 5
        %v1946 = vsel %vm324, %v1941, %v1945
        %v1947 = vshrl.u32 %v1844, 16
        %v1949 = vrot.slane %v1947, 4
        %v1950 = vor.u32 %v1949, %v1945
        %v1951 = vrot.slane %v1950, 4
        %v1953 = vshll.u32 %v1845, 16
        %v1955 = vrot.slane %v1953, 5
        %v1956 = vsel %vm324, %v1951, %v1955
        %v1958 = vshrl.u32 %v1846, 16
        %v1960 = vrot.slane %v1958, 4
        %v1961 = vshll.u32 %v1846, 16
        %v1963 = vrot.slane %v1961, 5
        %v1964 = vor.u32 %v1960, %v1963
        %v1965 = vrot.slane %v1964, 4
        %v1967 = vshll.u32 %v1847, 16
        %v1969 = vrot.slane %v1967, 5
        %v1970 = vsel %vm324, %v1965, %v1969
        %v1971 = vshrl.u32 %v1847, 16
        %v1973 = vrot.slane %v1971, 4
        %v1974 = vor.u32 %v1973, %v1969
        %v1975 = vrot.slane %v1974, 4
        %v1977 = vshll.u32 %v1848, 16
        %v1979 = vrot.slane %v1977, 5
        %v1980 = vsel %vm324, %v1975, %v1979
        %v1982 = vshrl.u32 %v1849, 16
        %v1984 = vrot.slane %v1982, 4
        %v1985 = vshll.u32 %v1849, 16
        %v1987 = vrot.slane %v1985, 5
        %v1988 = vor.u32 %v1984, %v1987
        %v1989 = vrot.slane %v1988, 4
        %v1991 = vshll.u32 %v1850, 16
        %v1993 = vrot.slane %v1991, 5
        %v1994 = vsel %vm324, %v1989, %v1993
        %v1995 = vshrl.u32 %v1850, 16
        %v1997 = vrot.slane %v1995, 4
        %v1998 = vor.u32 %v1997, %v1993
        %v1999 = vrot.slane %v1998, 4
        %v2001 = vshll.u32 %v1851, 16
        %v2003 = vrot.slane %v2001, 5
        %v2004 = vsel %vm324, %v1999, %v2003
        %v2006 = vshrl.u32 %v1852, 16
        %v2008 = vrot.slane %v2006, 4
        %v2009 = vshll.u32 %v1852, 16
        %v2011 = vrot.slane %v2009, 5
        %v2012 = vor.u32 %v2008, %v2011
        %v2013 = vrot.slane %v2012, 4
        %v2015 = vshll.u32 %v1853, 16
        %v2017 = vrot.slane %v2015, 5
        %v2018 = vsel %vm324, %v2013, %v2017
        %v2019 = vshrl.u32 %v1853, 16
        %v2021 = vrot.slane %v2019, 4
        %v2022 = vor.u32 %v2021, %v2017
        %v2023 = vrot.slane %v2022, 4
        %v2025 = vshll.u32 %v1854, 16
        %v2027 = vrot.slane %v2025, 5
        %v2028 = vsel %vm324, %v2023, %v2027
        %v2030 = vshrl.u32 %v1855, 16
        %v2032 = vrot.slane %v2030, 4
        %v2033 = vshll.u32 %v1855, 16
        %v2035 = vrot.slane %v2033, 5
        %v2036 = vor.u32 %v2032, %v2035
        %v2037 = vrot.slane %v2036, 4
        %v2039 = vshll.u32 %v1856, 16
        %v2041 = vrot.slane %v2039, 5
        %v2042 = vsel %vm324, %v2037, %v2041
        %v2043 = vshrl.u32 %v1856, 16
        %v2045 = vrot.slane %v2043, 4
        %v2046 = vor.u32 %v2045, %v2041
        %v2047 = vrot.slane %v2046, 4
        %v2049 = vshll.u32 %v1857, 16
        %v2051 = vrot.slane %v2049, 5
        %v2052 = vsel %vm324, %v2047, %v2051
        %v2054 = vshrl.u32 %v1858, 16
        %v2056 = vrot.slane %v2054, 4
        %v2057 = vshll.u32 %v1858, 16
        %v2059 = vrot.slane %v2057, 5
        %v2060 = vor.u32 %v2056, %v2059
        %v2061 = vrot.slane %v2060, 4
        %v2063 = vshll.u32 %v1859, 16
        %v2065 = vrot.slane %v2063, 5
        %v2066 = vsel %vm324, %v2061, %v2065
        %v2067 = vshrl.u32 %v1859, 16
        %v2069 = vrot.slane %v2067, 4
        %v2070 = vor.u32 %v2069, %v2065
        %v2071 = vrot.slane %v2070, 4
        %v2073 = vshll.u32 %v1860, 16
        %v2075 = vrot.slane %v2073, 5
        %v2076 = vsel %vm324, %v2071, %v2075
        %v2078 = vshrl.u32 %v1861, 16
        %v2080 = vrot.slane %v2078, 4
        %v2081 = vshll.u32 %v1861, 16
        %v2083 = vrot.slane %v2081, 5
        %v2084 = vor.u32 %v2080, %v2083
        %v2085 = vrot.slane %v2084, 4
        %v2087 = vshll.u32 %v1862, 16
        %v2089 = vrot.slane %v2087, 5
        %v2090 = vsel %vm324, %v2085, %v2089
        %v2091 = vshrl.u32 %v1862, 16
        %v2093 = vrot.slane %v2091, 4
        %v2094 = vor.u32 %v2093, %v2089
        %v2095 = vrot.slane %v2094, 4
        %v2097 = vshll.u32 %v1863, 16
        %v2099 = vrot.slane %v2097, 5
        %v2100 = vsel %vm324, %v2095, %v2099
        %v2102 = vshrl.u32 %v1864, 16
        %v2104 = vrot.slane %v2102, 4
        %v2105 = vshll.u32 %v1864, 16
        %v2107 = vrot.slane %v2105, 5
        %v2108 = vor.u32 %v2104, %v2107
        %v2109 = vrot.slane %v2108, 4
        %v2111 = vshll.u32 %v1865, 16
        %v2113 = vrot.slane %v2111, 5
        %v2114 = vsel %vm324, %v2109, %v2113
        %v2115 = vshrl.u32 %v1865, 16
        %v2117 = vrot.slane %v2115, 4
        %v2118 = vor.u32 %v2117, %v2113
        %v2119 = vrot.slane %v2118, 4
        %v2121 = vshll.u32 %v1866, 16
        %v2123 = vrot.slane %v2121, 5
        %v2124 = vsel %vm324, %v2119, %v2123
        %v2126 = vshrl.u32 %v1867, 16
        %v2128 = vrot.slane %v2126, 4
        %v2129 = vshll.u32 %v1867, 16
        %v2131 = vrot.slane %v2129, 5
        %v2132 = vor.u32 %v2128, %v2131
        %v2133 = vrot.slane %v2132, 4
        %v2135 = vshll.u32 %v1868, 16
        %v2137 = vrot.slane %v2135, 5
        %v2138 = vsel %vm324, %v2133, %v2137
        %v2139 = vshrl.u32 %v1868, 16
        %v2141 = vrot.slane %v2139, 4
        %v2142 = vor.u32 %v2141, %v2137
        %v2143 = vrot.slane %v2142, 4
        %v2145 = vshll.u32 %v1869, 16
        %v2147 = vrot.slane %v2145, 5
        %v2148 = vsel %vm324, %v2143, %v2147
        %v2150 = vshrl.u32 %v1870, 16
        %v2152 = vrot.slane %v2150, 4
        %v2153 = vshll.u32 %v1870, 16
        %v2155 = vrot.slane %v2153, 5
        %v2156 = vor.u32 %v2152, %v2155
        %v2157 = vrot.slane %v2156, 4
        %v2159 = vshll.u32 %v1871, 16
        %v2161 = vrot.slane %v2159, 5
        %v2162 = vsel %vm324, %v2157, %v2161
        %v2163 = vshrl.u32 %v1871, 16
        %v2165 = vrot.slane %v2163, 4
        %v2166 = vor.u32 %v2165, %v2161
        %v2167 = vrot.slane %v2166, 4
        %v2169 = vshll.u32 %v1872, 16
        %v2171 = vrot.slane %v2169, 5
        %v2172 = vsel %vm324, %v2167, %v2171
        %v2174 = vshrl.u32 %v1873, 16
        %v2176 = vrot.slane %v2174, 4
        %v2177 = vshll.u32 %v1873, 16
        %v2179 = vrot.slane %v2177, 5
        %v2180 = vor.u32 %v2176, %v2179
        %v2181 = vrot.slane %v2180, 4
        %v2183 = vshll.u32 %v1874, 16
        %v2185 = vrot.slane %v2183, 5
        %v2186 = vsel %vm324, %v2181, %v2185
        %v2187 = vshrl.u32 %v1874, 16
        %v2189 = vrot.slane %v2187, 4
        %v2190 = vor.u32 %v2189, %v2185
        %v2191 = vrot.slane %v2190, 4
        %v2193 = vshll.u32 %v1875, 16
        %v2195 = vrot.slane %v2193, 5
        %v2196 = vsel %vm324, %v2191, %v2195
        %v2198 = vshrl.u32 %v1876, 16
        %v2200 = vrot.slane %v2198, 4
        %v2201 = vshll.u32 %v1876, 16
        %v2203 = vrot.slane %v2201, 5
        %v2204 = vor.u32 %v2200, %v2203
        %v2205 = vrot.slane %v2204, 4
        %v2207 = vshll.u32 %v1877, 16
        %v2209 = vrot.slane %v2207, 5
        %v2210 = vsel %vm324, %v2205, %v2209
        %v2211 = vshrl.u32 %v1877, 16
        %v2213 = vrot.slane %v2211, 4
        %v2214 = vor.u32 %v2213, %v2209
        %v2215 = vrot.slane %v2214, 4
        %v2217 = vshll.u32 %v1878, 16
        %v2219 = vrot.slane %v2217, 5
        %v2220 = vsel %vm324, %v2215, %v2219
        %v2222 = vshrl.u32 %v1879, 16
        %v2224 = vrot.slane %v2222, 4
        %v2225 = vshll.u32 %v1879, 16
        %v2227 = vrot.slane %v2225, 5
        %v2228 = vor.u32 %v2224, %v2227
        %v2229 = vrot.slane %v2228, 4
        %v2231 = vshll.u32 %v1880, 16
        %v2233 = vrot.slane %v2231, 5
        %v2234 = vsel %vm324, %v2229, %v2233
        %v2235 = vshrl.u32 %v1880, 16
        %v2237 = vrot.slane %v2235, 4
        %v2238 = vor.u32 %v2237, %v2233
        %v2239 = vrot.slane %v2238, 4
        %v2241 = vshll.u32 %v1881, 16
        %v2243 = vrot.slane %v2241, 5
        %v2244 = vsel %vm324, %v2239, %v2243
        %v2246 = vshrl.u32 %v1882, 16
        %v2248 = vrot.slane %v2246, 4
        %v2249 = vshll.u32 %v1882, 16
        %v2251 = vrot.slane %v2249, 5
        %v2252 = vor.u32 %v2248, %v2251
        %v2253 = vrot.slane %v2252, 4
        %v2255 = vshll.u32 %v1883, 16
        %v2257 = vrot.slane %v2255, 5
        %v2258 = vsel %vm324, %v2253, %v2257
        %v2259 = vshrl.u32 %v1883, 16
        %v2261 = vrot.slane %v2259, 4
        %v2262 = vor.u32 %v2261, %v2257
        %v2263 = vrot.slane %v2262, 4
        %v2265 = vshll.u32 %v1884, 16
        %v2267 = vrot.slane %v2265, 5
        %v2268 = vsel %vm324, %v2263, %v2267
        %v2269 = vld [vmem:[%s257 + $0x40] sm:$0xf]
        %v2270 = vld [vmem:[%s257 + $0x44] sm:$0xf]
        %v2271 = vld [vmem:[%s257 + $0x48] sm:$0xf]
        %v2272 = vld [vmem:[%s257 + $0x4c] sm:$0xf]
        %v2273 = vunpack.c.l.b16 %v1898
        %v2274 = vunpack.c.l.b16 %v1908
        %v2275 = vunpack.c.l.b16 %v1922
        %v2276 = vunpack.c.l.b16 %v1932
        %v2277 = vunpack.c.l.b16 %v1946
        %v2278 = vunpack.c.l.b16 %v1956
        %v2279 = vunpack.c.l.b16 %v1970
        %v2280 = vunpack.c.l.b16 %v1980
        %v2281 = vunpack.c.l.b16 %v1994
        %v2282 = vunpack.c.l.b16 %v2004
        %v2283 = vunpack.c.l.b16 %v2018
        %v2284 = vunpack.c.l.b16 %v2028
        %v2285 = vunpack.c.l.b16 %v2042
        %v2286 = vunpack.c.l.b16 %v2052
        %v2287 = vunpack.c.l.b16 %v2066
        %v2288 = vunpack.c.l.b16 %v2076
        %v2289 = vunpack.c.l.b16 %v2090
        %v2290 = vunpack.c.l.b16 %v2100
        %v2291 = vunpack.c.l.b16 %v2114
        %v2292 = vunpack.c.l.b16 %v2124
        %v2293 = vunpack.c.l.b16 %v2138
        %v2294 = vunpack.c.l.b16 %v2148
        %v2295 = vunpack.c.l.b16 %v2162
        %v2296 = vunpack.c.l.b16 %v2172
        %v2297 = vunpack.c.l.b16 %v2186
        %v2298 = vunpack.c.l.b16 %v2196
        %v2299 = vunpack.c.l.b16 %v2210
        %v2300 = vunpack.c.l.b16 %v2220
        %v2301 = vunpack.c.l.b16 %v2234
        %v2302 = vunpack.c.l.b16 %v2244
        %v2303 = vunpack.c.l.b16 %v2258
        %v2304 = vunpack.c.l.b16 %v2268
        %v2305 = vpack.c.b16 %v2274, %v2273
        %v2306 = vpack.c.b16 %v2276, %v2275
        %v2307 = vpack.c.b16 %v2278, %v2277
        %v2308 = vpack.c.b16 %v2280, %v2279
        %v2309 = vpack.c.b16 %v2282, %v2281
        %v2310 = vpack.c.b16 %v2284, %v2283
        %v2311 = vpack.c.b16 %v2286, %v2285
        %v2312 = vpack.c.b16 %v2288, %v2287
        %v2313 = vpack.c.b16 %v2290, %v2289
        %v2314 = vpack.c.b16 %v2292, %v2291
        %v2315 = vpack.c.b16 %v2294, %v2293
        %v2316 = vpack.c.b16 %v2296, %v2295
        %v2317 = vpack.c.b16 %v2298, %v2297
        %v2318 = vpack.c.b16 %v2300, %v2299
        %v2319 = vpack.c.b16 %v2302, %v2301
        %v2320 = vpack.c.b16 %v2304, %v2303
        %v2325 = vunpack.c.l.b16 %v2269
        %v2326 = vunpack.c.l.b16 %v2270
        %v2327 = vunpack.c.l.b16 %v2271
        %v2328 = vunpack.c.l.b16 %v2272
        %v2329 = vpack.c.b16 %v2326, %v2325
        %v2330 = vpack.c.b16 %v2328, %v2327
        %v2334 = vsel %vm773, %v2305, 0
        %v2337 = vsel %vm773, %v2306, 0
        %v2340 = vsel %vm773, %v2307, 0
        %v2343 = vsel %vm773, %v2308, 0
        %v2346 = vsel %vm773, %v2309, 0
        %v2349 = vsel %vm773, %v2310, 0
        %v2352 = vsel %vm773, %v2311, 0
        %v2355 = vsel %vm773, %v2312, 0
        %v2358 = vsel %vm773, %v2313, 0
        %v2361 = vsel %vm773, %v2314, 0
        %v2364 = vsel %vm773, %v2315, 0
        %v2367 = vsel %vm773, %v2316, 0
        %v2370 = vsel %vm773, %v2317, 0
        %v2373 = vsel %vm773, %v2318, 0
        %v2376 = vsel %vm773, %v2319, 0
        %v2379 = vsel %vm773, %v2320, 0
        %2381 = vmatpush.bf16.msra.mxu0 0
        %2382 = vmatpush.bf16.msra.mxu0 0
        %2383 = vmatpush.bf16.msra.mxu0 0
        %2384 = vmatpush.bf16.msra.mxu0 0
        %2385 = vmatpush.bf16.msra.mxu0 0
        %2386 = vmatpush.bf16.msra.mxu0 0
        %2387 = vmatpush.bf16.msra.mxu0 %v2330
        %2388 = vmatpush.bf16.msra.mxu0 %v2329
        %2389 = vmatmul.bf16.gmra.mxu0 %v2334
        %v2390 = vpop.f32.mrf.mxu0
        %v2391 = vadd.f32 0.0, %v2390
        %v2392 = vpop.f32.mrf.mxu0
        %v2393 = vadd.f32 0.0, %v2392
        %2394 = vmatmul.bf16.gmra.mxu0 %v2337
        %v2395 = vpop.f32.mrf.mxu0
        %v2396 = vadd.f32 0.0, %v2395
        %v2397 = vpop.f32.mrf.mxu0
        %v2398 = vadd.f32 0.0, %v2397
        %2399 = vmatmul.bf16.gmra.mxu0 %v2340
        %v2400 = vpop.f32.mrf.mxu0
        %v2401 = vadd.f32 0.0, %v2400
        %v2402 = vpop.f32.mrf.mxu0
        %v2403 = vadd.f32 0.0, %v2402
        %2404 = vmatmul.bf16.gmra.mxu0 %v2343
        %v2405 = vpop.f32.mrf.mxu0
        %v2406 = vadd.f32 0.0, %v2405
        %v2407 = vpop.f32.mrf.mxu0
        %v2408 = vadd.f32 0.0, %v2407
        %2409 = vmatmul.bf16.gmra.mxu0 %v2346
        %v2410 = vpop.f32.mrf.mxu0
        %v2411 = vadd.f32 0.0, %v2410
        %v2412 = vpop.f32.mrf.mxu0
        %v2413 = vadd.f32 0.0, %v2412
        %2414 = vmatmul.bf16.gmra.mxu0 %v2349
        %v2415 = vpop.f32.mrf.mxu0
        %v2416 = vadd.f32 0.0, %v2415
        %v2417 = vpop.f32.mrf.mxu0
        %v2418 = vadd.f32 0.0, %v2417
        %2419 = vmatmul.bf16.gmra.mxu0 %v2352
        %v2420 = vpop.f32.mrf.mxu0
        %v2421 = vadd.f32 0.0, %v2420
        %v2422 = vpop.f32.mrf.mxu0
        %v2423 = vadd.f32 0.0, %v2422
        %2424 = vmatmul.bf16.gmra.mxu0 %v2355
        %v2425 = vpop.f32.mrf.mxu0
        %v2426 = vadd.f32 0.0, %v2425
        %v2427 = vpop.f32.mrf.mxu0
        %v2428 = vadd.f32 0.0, %v2427
        %2429 = vmatmul.bf16.gmra.mxu0 %v2358
        %v2430 = vpop.f32.mrf.mxu0
        %v2431 = vadd.f32 0.0, %v2430
        %v2432 = vpop.f32.mrf.mxu0
        %v2433 = vadd.f32 0.0, %v2432
        %2434 = vmatmul.bf16.gmra.mxu0 %v2361
        %v2435 = vpop.f32.mrf.mxu0
        %v2436 = vadd.f32 0.0, %v2435
        %v2437 = vpop.f32.mrf.mxu0
        %v2438 = vadd.f32 0.0, %v2437
        %2439 = vmatmul.bf16.gmra.mxu0 %v2364
        %v2440 = vpop.f32.mrf.mxu0
        %v2441 = vadd.f32 0.0, %v2440
        %v2442 = vpop.f32.mrf.mxu0
        %v2443 = vadd.f32 0.0, %v2442
        %2444 = vmatmul.bf16.gmra.mxu0 %v2367
        %v2445 = vpop.f32.mrf.mxu0
        %v2446 = vadd.f32 0.0, %v2445
        %v2447 = vpop.f32.mrf.mxu0
        %v2448 = vadd.f32 0.0, %v2447
        %2449 = vmatmul.bf16.gmra.mxu0 %v2370
        %v2450 = vpop.f32.mrf.mxu0
        %v2451 = vadd.f32 0.0, %v2450
        %v2452 = vpop.f32.mrf.mxu0
        %v2453 = vadd.f32 0.0, %v2452
        %2454 = vmatmul.bf16.gmra.mxu0 %v2373
        %v2455 = vpop.f32.mrf.mxu0
        %v2456 = vadd.f32 0.0, %v2455
        %v2457 = vpop.f32.mrf.mxu0
        %v2458 = vadd.f32 0.0, %v2457
        %2459 = vmatmul.bf16.gmra.mxu0 %v2376
        %v2460 = vpop.f32.mrf.mxu0
        %v2461 = vadd.f32 0.0, %v2460
        %v2462 = vpop.f32.mrf.mxu0
        %v2463 = vadd.f32 0.0, %v2462
        %2464 = vmatmul.bf16.gmra.mxu0 %v2379
        %v2465 = vpop.f32.mrf.mxu0
        %v2466 = vadd.f32 0.0, %v2465
        %v2467 = vpop.f32.mrf.mxu0
        %v2468 = vadd.f32 0.0, %v2467
        %2469 = vdwg.mxu0
        %v2470 = vadd.f32 %v1805, %v2391
        %v2471 = vadd.f32 %v1806, %v2393
        %v2472 = vadd.f32 %v1807, %v2396
        %v2473 = vadd.f32 %v1808, %v2398
        %v2474 = vadd.f32 %v1809, %v2401
        %v2475 = vadd.f32 %v1810, %v2403
        %v2476 = vadd.f32 %v1811, %v2406
        %v2477 = vadd.f32 %v1812, %v2408
        %v2478 = vadd.f32 %v1813, %v2411
        %v2479 = vadd.f32 %v1814, %v2413
        %v2480 = vadd.f32 %v1815, %v2416
        %v2481 = vadd.f32 %v1816, %v2418
        %v2482 = vadd.f32 %v1817, %v2421
        %v2483 = vadd.f32 %v1818, %v2423
        %v2484 = vadd.f32 %v1819, %v2426
        %v2485 = vadd.f32 %v1820, %v2428
        %v2486 = vadd.f32 %v1821, %v2431
        %v2487 = vadd.f32 %v1822, %v2433
        %v2488 = vadd.f32 %v1823, %v2436
        %v2489 = vadd.f32 %v1824, %v2438
        %v2490 = vadd.f32 %v1825, %v2441
        %v2491 = vadd.f32 %v1826, %v2443
        %v2492 = vadd.f32 %v1827, %v2446
        %v2493 = vadd.f32 %v1828, %v2448
        %v2494 = vadd.f32 %v1829, %v2451
        %v2495 = vadd.f32 %v1830, %v2453
        %v2496 = vadd.f32 %v1831, %v2456
        %v2497 = vadd.f32 %v1832, %v2458
        %v2498 = vadd.f32 %v1833, %v2461
        %v2499 = vadd.f32 %v1834, %v2463
        %v2500 = vadd.f32 %v1835, %v2466
        %v2501 = vadd.f32 %v1836, %v2468
        %v2502 = vld [vmem:[%s1539] sm:$0xe]
        %v2503 = vld [vmem:[%s1539 + $0xc] sm:$0xe]
        %v2504 = vld [vmem:[%s1539 + $0x18] sm:$0xe]
        %v2505 = vld [vmem:[%s1539 + $0x24] sm:$0xe]
        %v2506 = vld [vmem:[%s1539 + $0x30] sm:$0xe]
        %v2507 = vld [vmem:[%s1539 + $0x3c] sm:$0xe]
        %v2508 = vld [vmem:[%s1539 + $0x48] sm:$0xe]
        %v2509 = vld [vmem:[%s1539 + $0x54] sm:$0xe]
        %v2510 = vld [vmem:[%s1539 + $0x60] sm:$0xe]
        %v2511 = vld [vmem:[%s1539 + $0x6c] sm:$0xe]
        %v2512 = vld [vmem:[%s1539 + $0x78] sm:$0xe]
        %v2513 = vld [vmem:[%s1539 + $0x84] sm:$0xe]
        %v2514 = vld [vmem:[%s1539 + $0x90] sm:$0xe]
        %v2515 = vld [vmem:[%s1539 + $0x9c] sm:$0xe]
        %v2516 = vld [vmem:[%s1539 + $0xa8] sm:$0xe]
        %v2517 = vld [vmem:[%s1539 + $0xb4] sm:$0xe]
        %v2566 = vrot.slane %v2502, 5
        %v2567 = vrot.slane %v2566, 4
        %v2568 = vrot.slane %v1838, 5
        %v2569 = vsel %vm1190, %v2567, %v2568
        %v2570 = vrot.slane %v2568, 4
        %v2571 = vrot.slane %v1839, 5
        %v2572 = vsel %vm1190, %v2570, %v2571
        %v2573 = vrot.slane %v2503, 5
        %v2574 = vrot.slane %v2573, 4
        %v2575 = vrot.slane %v1841, 5
        %v2576 = vsel %vm1190, %v2574, %v2575
        %v2577 = vrot.slane %v2575, 4
        %v2578 = vrot.slane %v1842, 5
        %v2579 = vsel %vm1190, %v2577, %v2578
        %v2580 = vrot.slane %v2504, 5
        %v2581 = vrot.slane %v2580, 4
        %v2582 = vrot.slane %v1844, 5
        %v2583 = vsel %vm1190, %v2581, %v2582
        %v2584 = vrot.slane %v2582, 4
        %v2585 = vrot.slane %v1845, 5
        %v2586 = vsel %vm1190, %v2584, %v2585
        %v2587 = vrot.slane %v2505, 5
        %v2588 = vrot.slane %v2587, 4
        %v2589 = vrot.slane %v1847, 5
        %v2590 = vsel %vm1190, %v2588, %v2589
        %v2591 = vrot.slane %v2589, 4
        %v2592 = vrot.slane %v1848, 5
        %v2593 = vsel %vm1190, %v2591, %v2592
        %v2594 = vrot.slane %v2506, 5
        %v2595 = vrot.slane %v2594, 4
        %v2596 = vrot.slane %v1850, 5
        %v2597 = vsel %vm1190, %v2595, %v2596
        %v2598 = vrot.slane %v2596, 4
        %v2599 = vrot.slane %v1851, 5
        %v2600 = vsel %vm1190, %v2598, %v2599
        %v2601 = vrot.slane %v2507, 5
        %v2602 = vrot.slane %v2601, 4
        %v2603 = vrot.slane %v1853, 5
        %v2604 = vsel %vm1190, %v2602, %v2603
        %v2605 = vrot.slane %v2603, 4
        %v2606 = vrot.slane %v1854, 5
        %v2607 = vsel %vm1190, %v2605, %v2606
        %v2608 = vrot.slane %v2508, 5
        %v2609 = vrot.slane %v2608, 4
        %v2610 = vrot.slane %v1856, 5
        %v2611 = vsel %vm1190, %v2609, %v2610
        %v2612 = vrot.slane %v2610, 4
        %v2613 = vrot.slane %v1857, 5
        %v2614 = vsel %vm1190, %v2612, %v2613
        %v2615 = vrot.slane %v2509, 5
        %v2616 = vrot.slane %v2615, 4
        %v2617 = vrot.slane %v1859, 5
        %v2618 = vsel %vm1190, %v2616, %v2617
        %v2619 = vrot.slane %v2617, 4
        %v2620 = vrot.slane %v1860, 5
        %v2621 = vsel %vm1190, %v2619, %v2620
        %v2622 = vrot.slane %v2510, 5
        %v2623 = vrot.slane %v2622, 4
        %v2624 = vrot.slane %v1862, 5
        %v2625 = vsel %vm1190, %v2623, %v2624
        %v2626 = vrot.slane %v2624, 4
        %v2627 = vrot.slane %v1863, 5
        %v2628 = vsel %vm1190, %v2626, %v2627
        %v2629 = vrot.slane %v2511, 5
        %v2630 = vrot.slane %v2629, 4
        %v2631 = vrot.slane %v1865, 5
        %v2632 = vsel %vm1190, %v2630, %v2631
        %v2633 = vrot.slane %v2631, 4
        %v2634 = vrot.slane %v1866, 5
        %v2635 = vsel %vm1190, %v2633, %v2634
        %v2636 = vrot.slane %v2512, 5
        %v2637 = vrot.slane %v2636, 4
        %v2638 = vrot.slane %v1868, 5
        %v2639 = vsel %vm1190, %v2637, %v2638
        %v2640 = vrot.slane %v2638, 4
        %v2641 = vrot.slane %v1869, 5
        %v2642 = vsel %vm1190, %v2640, %v2641
        %v2643 = vrot.slane %v2513, 5
        %v2644 = vrot.slane %v2643, 4
        %v2645 = vrot.slane %v1871, 5
        %v2646 = vsel %vm1190, %v2644, %v2645
        %v2647 = vrot.slane %v2645, 4
        %v2648 = vrot.slane %v1872, 5
        %v2649 = vsel %vm1190, %v2647, %v2648
        %v2650 = vrot.slane %v2514, 5
        %v2651 = vrot.slane %v2650, 4
        %v2652 = vrot.slane %v1874, 5
        %v2653 = vsel %vm1190, %v2651, %v2652
        %v2654 = vrot.slane %v2652, 4
        %v2655 = vrot.slane %v1875, 5
        %v2656 = vsel %vm1190, %v2654, %v2655
        %v2657 = vrot.slane %v2515, 5
        %v2658 = vrot.slane %v2657, 4
        %v2659 = vrot.slane %v1877, 5
        %v2660 = vsel %vm1190, %v2658, %v2659
        %v2661 = vrot.slane %v2659, 4
        %v2662 = vrot.slane %v1878, 5
        %v2663 = vsel %vm1190, %v2661, %v2662
        %v2664 = vrot.slane %v2516, 5
        %v2665 = vrot.slane %v2664, 4
        %v2666 = vrot.slane %v1880, 5
        %v2667 = vsel %vm1190, %v2665, %v2666
        %v2668 = vrot.slane %v2666, 4
        %v2669 = vrot.slane %v1881, 5
        %v2670 = vsel %vm1190, %v2668, %v2669
        %v2671 = vrot.slane %v2517, 5
        %v2672 = vrot.slane %v2671, 4
        %v2673 = vrot.slane %v1883, 5
        %v2674 = vsel %vm1190, %v2672, %v2673
        %v2675 = vrot.slane %v2673, 4
        %v2676 = vrot.slane %v1884, 5
        %v2677 = vsel %vm1190, %v2675, %v2676
        %v2678 = vld [vmem:[%s257 + $0x50] sm:$0xf]
        %v2679 = vld [vmem:[%s257 + $0x54] sm:$0xf]
        %v2680 = vld [vmem:[%s257 + $0x58] sm:$0xf]
        %v2681 = vld [vmem:[%s257 + $0x5c] sm:$0xf]
        %v2682 = vunpack.c.l.b16 %v2569
        %v2683 = vunpack.c.l.b16 %v2572
        %v2684 = vunpack.c.l.b16 %v2576
        %v2685 = vunpack.c.l.b16 %v2579
        %v2686 = vunpack.c.l.b16 %v2583
        %v2687 = vunpack.c.l.b16 %v2586
        %v2688 = vunpack.c.l.b16 %v2590
        %v2689 = vunpack.c.l.b16 %v2593
        %v2690 = vunpack.c.l.b16 %v2597
        %v2691 = vunpack.c.l.b16 %v2600
        %v2692 = vunpack.c.l.b16 %v2604
        %v2693 = vunpack.c.l.b16 %v2607
        %v2694 = vunpack.c.l.b16 %v2611
        %v2695 = vunpack.c.l.b16 %v2614
        %v2696 = vunpack.c.l.b16 %v2618
        %v2697 = vunpack.c.l.b16 %v2621
        %v2698 = vunpack.c.l.b16 %v2625
        %v2699 = vunpack.c.l.b16 %v2628
        %v2700 = vunpack.c.l.b16 %v2632
        %v2701 = vunpack.c.l.b16 %v2635
        %v2702 = vunpack.c.l.b16 %v2639
        %v2703 = vunpack.c.l.b16 %v2642
        %v2704 = vunpack.c.l.b16 %v2646
        %v2705 = vunpack.c.l.b16 %v2649
        %v2706 = vunpack.c.l.b16 %v2653
        %v2707 = vunpack.c.l.b16 %v2656
        %v2708 = vunpack.c.l.b16 %v2660
        %v2709 = vunpack.c.l.b16 %v2663
        %v2710 = vunpack.c.l.b16 %v2667
        %v2711 = vunpack.c.l.b16 %v2670
        %v2712 = vunpack.c.l.b16 %v2674
        %v2713 = vunpack.c.l.b16 %v2677
        %v2714 = vpack.c.b16 %v2683, %v2682
        %v2715 = vpack.c.b16 %v2685, %v2684
        %v2716 = vpack.c.b16 %v2687, %v2686
        %v2717 = vpack.c.b16 %v2689, %v2688
        %v2718 = vpack.c.b16 %v2691, %v2690
        %v2719 = vpack.c.b16 %v2693, %v2692
        %v2720 = vpack.c.b16 %v2695, %v2694
        %v2721 = vpack.c.b16 %v2697, %v2696
        %v2722 = vpack.c.b16 %v2699, %v2698
        %v2723 = vpack.c.b16 %v2701, %v2700
        %v2724 = vpack.c.b16 %v2703, %v2702
        %v2725 = vpack.c.b16 %v2705, %v2704
        %v2726 = vpack.c.b16 %v2707, %v2706
        %v2727 = vpack.c.b16 %v2709, %v2708
        %v2728 = vpack.c.b16 %v2711, %v2710
        %v2729 = vpack.c.b16 %v2713, %v2712
        %v2734 = vunpack.c.l.b16 %v2678
        %v2735 = vunpack.c.l.b16 %v2679
        %v2736 = vunpack.c.l.b16 %v2680
        %v2737 = vunpack.c.l.b16 %v2681
        %v2738 = vpack.c.b16 %v2735, %v2734
        %v2739 = vpack.c.b16 %v2737, %v2736
        %v2743 = vsel %vm773, %v2714, 0
        %v2746 = vsel %vm773, %v2715, 0
        %v2749 = vsel %vm773, %v2716, 0
        %v2752 = vsel %vm773, %v2717, 0
        %v2755 = vsel %vm773, %v2718, 0
        %v2758 = vsel %vm773, %v2719, 0
        %v2761 = vsel %vm773, %v2720, 0
        %v2764 = vsel %vm773, %v2721, 0
        %v2767 = vsel %vm773, %v2722, 0
        %v2770 = vsel %vm773, %v2723, 0
        %v2773 = vsel %vm773, %v2724, 0
        %v2776 = vsel %vm773, %v2725, 0
        %v2779 = vsel %vm773, %v2726, 0
        %v2782 = vsel %vm773, %v2727, 0
        %v2785 = vsel %vm773, %v2728, 0
        %v2788 = vsel %vm773, %v2729, 0
        %2790 = vmatpush.bf16.msra.mxu0 0
        %2791 = vmatpush.bf16.msra.mxu0 0
        %2792 = vmatpush.bf16.msra.mxu0 0
        %2793 = vmatpush.bf16.msra.mxu0 0
        %2794 = vmatpush.bf16.msra.mxu0 0
        %2795 = vmatpush.bf16.msra.mxu0 0
        %2796 = vmatpush.bf16.msra.mxu0 %v2739
        %2797 = vmatpush.bf16.msra.mxu0 %v2738
        %2798 = vmatmul.bf16.gmra.mxu0 %v2743
        %v2799 = vpop.f32.mrf.mxu0
        %v2800 = vadd.f32 0.0, %v2799
        %v2801 = vpop.f32.mrf.mxu0
        %v2802 = vadd.f32 0.0, %v2801
        %2803 = vmatmul.bf16.gmra.mxu0 %v2746
        %v2804 = vpop.f32.mrf.mxu0
        %v2805 = vadd.f32 0.0, %v2804
        %v2806 = vpop.f32.mrf.mxu0
        %v2807 = vadd.f32 0.0, %v2806
        %2808 = vmatmul.bf16.gmra.mxu0 %v2749
        %v2809 = vpop.f32.mrf.mxu0
        %v2810 = vadd.f32 0.0, %v2809
        %v2811 = vpop.f32.mrf.mxu0
        %v2812 = vadd.f32 0.0, %v2811
        %2813 = vmatmul.bf16.gmra.mxu0 %v2752
        %v2814 = vpop.f32.mrf.mxu0
        %v2815 = vadd.f32 0.0, %v2814
        %v2816 = vpop.f32.mrf.mxu0
        %v2817 = vadd.f32 0.0, %v2816
        %2818 = vmatmul.bf16.gmra.mxu0 %v2755
        %v2819 = vpop.f32.mrf.mxu0
        %v2820 = vadd.f32 0.0, %v2819
        %v2821 = vpop.f32.mrf.mxu0
        %v2822 = vadd.f32 0.0, %v2821
        %2823 = vmatmul.bf16.gmra.mxu0 %v2758
        %v2824 = vpop.f32.mrf.mxu0
        %v2825 = vadd.f32 0.0, %v2824
        %v2826 = vpop.f32.mrf.mxu0
        %v2827 = vadd.f32 0.0, %v2826
        %2828 = vmatmul.bf16.gmra.mxu0 %v2761
        %v2829 = vpop.f32.mrf.mxu0
        %v2830 = vadd.f32 0.0, %v2829
        %v2831 = vpop.f32.mrf.mxu0
        %v2832 = vadd.f32 0.0, %v2831
        %2833 = vmatmul.bf16.gmra.mxu0 %v2764
        %v2834 = vpop.f32.mrf.mxu0
        %v2835 = vadd.f32 0.0, %v2834
        %v2836 = vpop.f32.mrf.mxu0
        %v2837 = vadd.f32 0.0, %v2836
        %2838 = vmatmul.bf16.gmra.mxu0 %v2767
        %v2839 = vpop.f32.mrf.mxu0
        %v2840 = vadd.f32 0.0, %v2839
        %v2841 = vpop.f32.mrf.mxu0
        %v2842 = vadd.f32 0.0, %v2841
        %2843 = vmatmul.bf16.gmra.mxu0 %v2770
        %v2844 = vpop.f32.mrf.mxu0
        %v2845 = vadd.f32 0.0, %v2844
        %v2846 = vpop.f32.mrf.mxu0
        %v2847 = vadd.f32 0.0, %v2846
        %2848 = vmatmul.bf16.gmra.mxu0 %v2773
        %v2849 = vpop.f32.mrf.mxu0
        %v2850 = vadd.f32 0.0, %v2849
        %v2851 = vpop.f32.mrf.mxu0
        %v2852 = vadd.f32 0.0, %v2851
        %2853 = vmatmul.bf16.gmra.mxu0 %v2776
        %v2854 = vpop.f32.mrf.mxu0
        %v2855 = vadd.f32 0.0, %v2854
        %v2856 = vpop.f32.mrf.mxu0
        %v2857 = vadd.f32 0.0, %v2856
        %2858 = vmatmul.bf16.gmra.mxu0 %v2779
        %v2859 = vpop.f32.mrf.mxu0
        %v2860 = vadd.f32 0.0, %v2859
        %v2861 = vpop.f32.mrf.mxu0
        %v2862 = vadd.f32 0.0, %v2861
        %2863 = vmatmul.bf16.gmra.mxu0 %v2782
        %v2864 = vpop.f32.mrf.mxu0
        %v2865 = vadd.f32 0.0, %v2864
        %v2866 = vpop.f32.mrf.mxu0
        %v2867 = vadd.f32 0.0, %v2866
        %2868 = vmatmul.bf16.gmra.mxu0 %v2785
        %v2869 = vpop.f32.mrf.mxu0
        %v2870 = vadd.f32 0.0, %v2869
        %v2871 = vpop.f32.mrf.mxu0
        %v2872 = vadd.f32 0.0, %v2871
        %2873 = vmatmul.bf16.gmra.mxu0 %v2788
        %v2874 = vpop.f32.mrf.mxu0
        %v2875 = vadd.f32 0.0, %v2874
        %v2876 = vpop.f32.mrf.mxu0
        %v2877 = vadd.f32 0.0, %v2876
        %2878 = vdwg.mxu0
        %v2879 = vadd.f32 %v2470, %v2800
        %v2880 = vadd.f32 %v2471, %v2802
        %v2881 = vadd.f32 %v2472, %v2805
        %v2882 = vadd.f32 %v2473, %v2807
        %v2883 = vadd.f32 %v2474, %v2810
        %v2884 = vadd.f32 %v2475, %v2812
        %v2885 = vadd.f32 %v2476, %v2815
        %v2886 = vadd.f32 %v2477, %v2817
        %v2887 = vadd.f32 %v2478, %v2820
        %v2888 = vadd.f32 %v2479, %v2822
        %v2889 = vadd.f32 %v2480, %v2825
        %v2890 = vadd.f32 %v2481, %v2827
        %v2891 = vadd.f32 %v2482, %v2830
        %v2892 = vadd.f32 %v2483, %v2832
        %v2893 = vadd.f32 %v2484, %v2835
        %v2894 = vadd.f32 %v2485, %v2837
        %v2895 = vadd.f32 %v2486, %v2840
        %v2896 = vadd.f32 %v2487, %v2842
        %v2897 = vadd.f32 %v2488, %v2845
        %v2898 = vadd.f32 %v2489, %v2847
        %v2899 = vadd.f32 %v2490, %v2850
        %v2900 = vadd.f32 %v2491, %v2852
        %v2901 = vadd.f32 %v2492, %v2855
        %v2902 = vadd.f32 %v2493, %v2857
        %v2903 = vadd.f32 %v2494, %v2860
        %v2904 = vadd.f32 %v2495, %v2862
        %v2905 = vadd.f32 %v2496, %v2865
        %v2906 = vadd.f32 %v2497, %v2867
        %v2907 = vadd.f32 %v2498, %v2870
        %v2908 = vadd.f32 %v2499, %v2872
        %v2909 = vadd.f32 %v2500, %v2875
        %v2910 = vadd.f32 %v2501, %v2877
        %s2911 = sadd.s32 %s266, 2
        %s2912 = smul.u32 %s2911, 3
        %s2913 = smul.addr %s2912, 4
        %s2914 = scalar_lea.vmem %s253, %s2913
        %v2915 = vld [vmem:[%s2914] sm:$0xf]
        %v2916 = vld [vmem:[%s2914 + $0x4] sm:$0xf]
        %v2917 = vld [vmem:[%s2914 + $0xc] sm:$0xf]
        %v2918 = vld [vmem:[%s2914 + $0x10] sm:$0xf]
        %v2919 = vld [vmem:[%s2914 + $0x18] sm:$0xf]
        %v2920 = vld [vmem:[%s2914 + $0x1c] sm:$0xf]
        %v2921 = vld [vmem:[%s2914 + $0x24] sm:$0xf]
        %v2922 = vld [vmem:[%s2914 + $0x28] sm:$0xf]
        %v2923 = vld [vmem:[%s2914 + $0x30] sm:$0xf]
        %v2924 = vld [vmem:[%s2914 + $0x34] sm:$0xf]
        %v2925 = vld [vmem:[%s2914 + $0x3c] sm:$0xf]
        %v2926 = vld [vmem:[%s2914 + $0x40] sm:$0xf]
        %v2927 = vld [vmem:[%s2914 + $0x48] sm:$0xf]
        %v2928 = vld [vmem:[%s2914 + $0x4c] sm:$0xf]
        %v2929 = vld [vmem:[%s2914 + $0x54] sm:$0xf]
        %v2930 = vld [vmem:[%s2914 + $0x58] sm:$0xf]
        %v2931 = vld [vmem:[%s2914 + $0x60] sm:$0xf]
        %v2932 = vld [vmem:[%s2914 + $0x64] sm:$0xf]
        %v2933 = vld [vmem:[%s2914 + $0x6c] sm:$0xf]
        %v2934 = vld [vmem:[%s2914 + $0x70] sm:$0xf]
        %v2935 = vld [vmem:[%s2914 + $0x78] sm:$0xf]
        %v2936 = vld [vmem:[%s2914 + $0x7c] sm:$0xf]
        %v2937 = vld [vmem:[%s2914 + $0x84] sm:$0xf]
        %v2938 = vld [vmem:[%s2914 + $0x88] sm:$0xf]
        %v2939 = vld [vmem:[%s2914 + $0x90] sm:$0xf]
        %v2940 = vld [vmem:[%s2914 + $0x94] sm:$0xf]
        %v2941 = vld [vmem:[%s2914 + $0x9c] sm:$0xf]
        %v2942 = vld [vmem:[%s2914 + $0xa0] sm:$0xf]
        %v2943 = vld [vmem:[%s2914 + $0xa8] sm:$0xf]
        %v2944 = vld [vmem:[%s2914 + $0xac] sm:$0xf]
        %v2945 = vld [vmem:[%s2914 + $0xb4] sm:$0xf]
        %v2946 = vld [vmem:[%s2914 + $0xb8] sm:$0xf]
        %v2947 = vld [vmem:[%s257 + $0x60] sm:$0xf]
        %v2948 = vld [vmem:[%s257 + $0x64] sm:$0xf]
        %v2949 = vld [vmem:[%s257 + $0x68] sm:$0xf]
        %v2950 = vld [vmem:[%s257 + $0x6c] sm:$0xf]
        %v2983 = vunpack.c.l.b16 %v2915
        %v2984 = vunpack.c.l.b16 %v2916
        %v2985 = vunpack.c.l.b16 %v2917
        %v2986 = vunpack.c.l.b16 %v2918
        %v2987 = vunpack.c.l.b16 %v2919
        %v2988 = vunpack.c.l.b16 %v2920
        %v2989 = vunpack.c.l.b16 %v2921
        %v2990 = vunpack.c.l.b16 %v2922
        %v2991 = vunpack.c.l.b16 %v2923
        %v2992 = vunpack.c.l.b16 %v2924
        %v2993 = vunpack.c.l.b16 %v2925
        %v2994 = vunpack.c.l.b16 %v2926
        %v2995 = vunpack.c.l.b16 %v2927
        %v2996 = vunpack.c.l.b16 %v2928
        %v2997 = vunpack.c.l.b16 %v2929
        %v2998 = vunpack.c.l.b16 %v2930
        %v2999 = vunpack.c.l.b16 %v2931
        %v3000 = vunpack.c.l.b16 %v2932
        %v3001 = vunpack.c.l.b16 %v2933
        %v3002 = vunpack.c.l.b16 %v2934
        %v3003 = vunpack.c.l.b16 %v2935
        %v3004 = vunpack.c.l.b16 %v2936
        %v3005 = vunpack.c.l.b16 %v2937
        %v3006 = vunpack.c.l.b16 %v2938
        %v3007 = vunpack.c.l.b16 %v2939
        %v3008 = vunpack.c.l.b16 %v2940
        %v3009 = vunpack.c.l.b16 %v2941
        %v3010 = vunpack.c.l.b16 %v2942
        %v3011 = vunpack.c.l.b16 %v2943
        %v3012 = vunpack.c.l.b16 %v2944
        %v3013 = vunpack.c.l.b16 %v2945
        %v3014 = vunpack.c.l.b16 %v2946
        %v3015 = vpack.c.b16 %v2984, %v2983
        %v3016 = vpack.c.b16 %v2986, %v2985
        %v3017 = vpack.c.b16 %v2988, %v2987
        %v3018 = vpack.c.b16 %v2990, %v2989
        %v3019 = vpack.c.b16 %v2992, %v2991
        %v3020 = vpack.c.b16 %v2994, %v2993
        %v3021 = vpack.c.b16 %v2996, %v2995
        %v3022 = vpack.c.b16 %v2998, %v2997
        %v3023 = vpack.c.b16 %v3000, %v2999
        %v3024 = vpack.c.b16 %v3002, %v3001
        %v3025 = vpack.c.b16 %v3004, %v3003
        %v3026 = vpack.c.b16 %v3006, %v3005
        %v3027 = vpack.c.b16 %v3008, %v3007
        %v3028 = vpack.c.b16 %v3010, %v3009
        %v3029 = vpack.c.b16 %v3012, %v3011
        %v3030 = vpack.c.b16 %v3014, %v3013
        %v3035 = vunpack.c.l.b16 %v2947
        %v3036 = vunpack.c.l.b16 %v2948
        %v3037 = vunpack.c.l.b16 %v2949
        %v3038 = vunpack.c.l.b16 %v2950
        %v3039 = vpack.c.b16 %v3036, %v3035
        %v3040 = vpack.c.b16 %v3038, %v3037
        %v3044 = vsel %vm773, %v3015, 0
        %v3047 = vsel %vm773, %v3016, 0
        %v3050 = vsel %vm773, %v3017, 0
        %v3053 = vsel %vm773, %v3018, 0
        %v3056 = vsel %vm773, %v3019, 0
        %v3059 = vsel %vm773, %v3020, 0
        %v3062 = vsel %vm773, %v3021, 0
        %v3065 = vsel %vm773, %v3022, 0
        %v3068 = vsel %vm773, %v3023, 0
        %v3071 = vsel %vm773, %v3024, 0
        %v3074 = vsel %vm773, %v3025, 0
        %v3077 = vsel %vm773, %v3026, 0
        %v3080 = vsel %vm773, %v3027, 0
        %v3083 = vsel %vm773, %v3028, 0
        %v3086 = vsel %vm773, %v3029, 0
        %v3089 = vsel %vm773, %v3030, 0
        %3091 = vmatpush.bf16.msra.mxu0 0
        %3092 = vmatpush.bf16.msra.mxu0 0
        %3093 = vmatpush.bf16.msra.mxu0 0
        %3094 = vmatpush.bf16.msra.mxu0 0
        %3095 = vmatpush.bf16.msra.mxu0 0
        %3096 = vmatpush.bf16.msra.mxu0 0
        %3097 = vmatpush.bf16.msra.mxu0 %v3040
        %3098 = vmatpush.bf16.msra.mxu0 %v3039
        %3099 = vmatmul.bf16.gmra.mxu0 %v3044
        %v3100 = vpop.f32.mrf.mxu0
        %v3101 = vadd.f32 0.0, %v3100
        %v3102 = vpop.f32.mrf.mxu0
        %v3103 = vadd.f32 0.0, %v3102
        %3104 = vmatmul.bf16.gmra.mxu0 %v3047
        %v3105 = vpop.f32.mrf.mxu0
        %v3106 = vadd.f32 0.0, %v3105
        %v3107 = vpop.f32.mrf.mxu0
        %v3108 = vadd.f32 0.0, %v3107
        %3109 = vmatmul.bf16.gmra.mxu0 %v3050
        %v3110 = vpop.f32.mrf.mxu0
        %v3111 = vadd.f32 0.0, %v3110
        %v3112 = vpop.f32.mrf.mxu0
        %v3113 = vadd.f32 0.0, %v3112
        %3114 = vmatmul.bf16.gmra.mxu0 %v3053
        %v3115 = vpop.f32.mrf.mxu0
        %v3116 = vadd.f32 0.0, %v3115
        %v3117 = vpop.f32.mrf.mxu0
        %v3118 = vadd.f32 0.0, %v3117
        %3119 = vmatmul.bf16.gmra.mxu0 %v3056
        %v3120 = vpop.f32.mrf.mxu0
        %v3121 = vadd.f32 0.0, %v3120
        %v3122 = vpop.f32.mrf.mxu0
        %v3123 = vadd.f32 0.0, %v3122
        %3124 = vmatmul.bf16.gmra.mxu0 %v3059
        %v3125 = vpop.f32.mrf.mxu0
        %v3126 = vadd.f32 0.0, %v3125
        %v3127 = vpop.f32.mrf.mxu0
        %v3128 = vadd.f32 0.0, %v3127
        %3129 = vmatmul.bf16.gmra.mxu0 %v3062
        %v3130 = vpop.f32.mrf.mxu0
        %v3131 = vadd.f32 0.0, %v3130
        %v3132 = vpop.f32.mrf.mxu0
        %v3133 = vadd.f32 0.0, %v3132
        %3134 = vmatmul.bf16.gmra.mxu0 %v3065
        %v3135 = vpop.f32.mrf.mxu0
        %v3136 = vadd.f32 0.0, %v3135
        %v3137 = vpop.f32.mrf.mxu0
        %v3138 = vadd.f32 0.0, %v3137
        %3139 = vmatmul.bf16.gmra.mxu0 %v3068
        %v3140 = vpop.f32.mrf.mxu0
        %v3141 = vadd.f32 0.0, %v3140
        %v3142 = vpop.f32.mrf.mxu0
        %v3143 = vadd.f32 0.0, %v3142
        %3144 = vmatmul.bf16.gmra.mxu0 %v3071
        %v3145 = vpop.f32.mrf.mxu0
        %v3146 = vadd.f32 0.0, %v3145
        %v3147 = vpop.f32.mrf.mxu0
        %v3148 = vadd.f32 0.0, %v3147
        %3149 = vmatmul.bf16.gmra.mxu0 %v3074
        %v3150 = vpop.f32.mrf.mxu0
        %v3151 = vadd.f32 0.0, %v3150
        %v3152 = vpop.f32.mrf.mxu0
        %v3153 = vadd.f32 0.0, %v3152
        %3154 = vmatmul.bf16.gmra.mxu0 %v3077
        %v3155 = vpop.f32.mrf.mxu0
        %v3156 = vadd.f32 0.0, %v3155
        %v3157 = vpop.f32.mrf.mxu0
        %v3158 = vadd.f32 0.0, %v3157
        %3159 = vmatmul.bf16.gmra.mxu0 %v3080
        %v3160 = vpop.f32.mrf.mxu0
        %v3161 = vadd.f32 0.0, %v3160
        %v3162 = vpop.f32.mrf.mxu0
        %v3163 = vadd.f32 0.0, %v3162
        %3164 = vmatmul.bf16.gmra.mxu0 %v3083
        %v3165 = vpop.f32.mrf.mxu0
        %v3166 = vadd.f32 0.0, %v3165
        %v3167 = vpop.f32.mrf.mxu0
        %v3168 = vadd.f32 0.0, %v3167
        %3169 = vmatmul.bf16.gmra.mxu0 %v3086
        %v3170 = vpop.f32.mrf.mxu0
        %v3171 = vadd.f32 0.0, %v3170
        %v3172 = vpop.f32.mrf.mxu0
        %v3173 = vadd.f32 0.0, %v3172
        %3174 = vmatmul.bf16.gmra.mxu0 %v3089
        %v3175 = vpop.f32.mrf.mxu0
        %v3176 = vadd.f32 0.0, %v3175
        %v3177 = vpop.f32.mrf.mxu0
        %v3178 = vadd.f32 0.0, %v3177
        %3179 = vdwg.mxu0
        %v3180 = vadd.f32 %v2879, %v3101
        %v3181 = vadd.f32 %v2880, %v3103
        %v3182 = vadd.f32 %v2881, %v3106
        %v3183 = vadd.f32 %v2882, %v3108
        %v3184 = vadd.f32 %v2883, %v3111
        %v3185 = vadd.f32 %v2884, %v3113
        %v3186 = vadd.f32 %v2885, %v3116
        %v3187 = vadd.f32 %v2886, %v3118
        %v3188 = vadd.f32 %v2887, %v3121
        %v3189 = vadd.f32 %v2888, %v3123
        %v3190 = vadd.f32 %v2889, %v3126
        %v3191 = vadd.f32 %v2890, %v3128
        %v3192 = vadd.f32 %v2891, %v3131
        %v3193 = vadd.f32 %v2892, %v3133
        %v3194 = vadd.f32 %v2893, %v3136
        %v3195 = vadd.f32 %v2894, %v3138
        %v3196 = vadd.f32 %v2895, %v3141
        %v3197 = vadd.f32 %v2896, %v3143
        %v3198 = vadd.f32 %v2897, %v3146
        %v3199 = vadd.f32 %v2898, %v3148
        %v3200 = vadd.f32 %v2899, %v3151
        %v3201 = vadd.f32 %v2900, %v3153
        %v3202 = vadd.f32 %v2901, %v3156
        %v3203 = vadd.f32 %v2902, %v3158
        %v3204 = vadd.f32 %v2903, %v3161
        %v3205 = vadd.f32 %v2904, %v3163
        %v3206 = vadd.f32 %v2905, %v3166
        %v3207 = vadd.f32 %v2906, %v3168
        %v3208 = vadd.f32 %v2907, %v3171
        %v3209 = vadd.f32 %v2908, %v3173
        %v3210 = vadd.f32 %v2909, %v3176
        %v3211 = vadd.f32 %v2910, %v3178
        %v3212 = vld [vmem:[%s2914] sm:$0xf]
        %v3213 = vld [vmem:[%s2914 + $0x4] sm:$0xf]
        %v3214 = vld [vmem:[%s2914 + $0x8] sm:$0x1]
        %v3215 = vld [vmem:[%s2914 + $0xc] sm:$0xf]
        %v3216 = vld [vmem:[%s2914 + $0x10] sm:$0xf]
        %v3217 = vld [vmem:[%s2914 + $0x14] sm:$0x1]
        %v3218 = vld [vmem:[%s2914 + $0x18] sm:$0xf]
        %v3219 = vld [vmem:[%s2914 + $0x1c] sm:$0xf]
        %v3220 = vld [vmem:[%s2914 + $0x20] sm:$0x1]
        %v3221 = vld [vmem:[%s2914 + $0x24] sm:$0xf]
        %v3222 = vld [vmem:[%s2914 + $0x28] sm:$0xf]
        %v3223 = vld [vmem:[%s2914 + $0x2c] sm:$0x1]
        %v3224 = vld [vmem:[%s2914 + $0x30] sm:$0xf]
        %v3225 = vld [vmem:[%s2914 + $0x34] sm:$0xf]
        %v3226 = vld [vmem:[%s2914 + $0x38] sm:$0x1]
        %v3227 = vld [vmem:[%s2914 + $0x3c] sm:$0xf]
        %v3228 = vld [vmem:[%s2914 + $0x40] sm:$0xf]
        %v3229 = vld [vmem:[%s2914 + $0x44] sm:$0x1]
        %v3230 = vld [vmem:[%s2914 + $0x48] sm:$0xf]
        %v3231 = vld [vmem:[%s2914 + $0x4c] sm:$0xf]
        %v3232 = vld [vmem:[%s2914 + $0x50] sm:$0x1]
        %v3233 = vld [vmem:[%s2914 + $0x54] sm:$0xf]
        %v3234 = vld [vmem:[%s2914 + $0x58] sm:$0xf]
        %v3235 = vld [vmem:[%s2914 + $0x5c] sm:$0x1]
        %v3236 = vld [vmem:[%s2914 + $0x60] sm:$0xf]
        %v3237 = vld [vmem:[%s2914 + $0x64] sm:$0xf]
        %v3238 = vld [vmem:[%s2914 + $0x68] sm:$0x1]
        %v3239 = vld [vmem:[%s2914 + $0x6c] sm:$0xf]
        %v3240 = vld [vmem:[%s2914 + $0x70] sm:$0xf]
        %v3241 = vld [vmem:[%s2914 + $0x74] sm:$0x1]
        %v3242 = vld [vmem:[%s2914 + $0x78] sm:$0xf]
        %v3243 = vld [vmem:[%s2914 + $0x7c] sm:$0xf]
        %v3244 = vld [vmem:[%s2914 + $0x80] sm:$0x1]
        %v3245 = vld [vmem:[%s2914 + $0x84] sm:$0xf]
        %v3246 = vld [vmem:[%s2914 + $0x88] sm:$0xf]
        %v3247 = vld [vmem:[%s2914 + $0x8c] sm:$0x1]
        %v3248 = vld [vmem:[%s2914 + $0x90] sm:$0xf]
        %v3249 = vld [vmem:[%s2914 + $0x94] sm:$0xf]
        %v3250 = vld [vmem:[%s2914 + $0x98] sm:$0x1]
        %v3251 = vld [vmem:[%s2914 + $0x9c] sm:$0xf]
        %v3252 = vld [vmem:[%s2914 + $0xa0] sm:$0xf]
        %v3253 = vld [vmem:[%s2914 + $0xa4] sm:$0x1]
        %v3254 = vld [vmem:[%s2914 + $0xa8] sm:$0xf]
        %v3255 = vld [vmem:[%s2914 + $0xac] sm:$0xf]
        %v3256 = vld [vmem:[%s2914 + $0xb0] sm:$0x1]
        %v3257 = vld [vmem:[%s2914 + $0xb4] sm:$0xf]
        %v3258 = vld [vmem:[%s2914 + $0xb8] sm:$0xf]
        %v3259 = vld [vmem:[%s2914 + $0xbc] sm:$0x1]
        %v3261 = vshrl.u32 %v3212, 16
        %v3263 = vrot.slane %v3261, 4
        %v3264 = vshll.u32 %v3212, 16
        %v3266 = vrot.slane %v3264, 5
        %v3267 = vor.u32 %v3263, %v3266
        %v3268 = vrot.slane %v3267, 4
        %v3270 = vshll.u32 %v3213, 16
        %v3272 = vrot.slane %v3270, 5
        %v3273 = vsel %vm324, %v3268, %v3272
        %v3274 = vshrl.u32 %v3213, 16
        %v3276 = vrot.slane %v3274, 4
        %v3277 = vor.u32 %v3276, %v3272
        %v3278 = vrot.slane %v3277, 4
        %v3280 = vshll.u32 %v3214, 16
        %v3282 = vrot.slane %v3280, 5
        %v3283 = vsel %vm324, %v3278, %v3282
        %v3285 = vshrl.u32 %v3215, 16
        %v3287 = vrot.slane %v3285, 4
        %v3288 = vshll.u32 %v3215, 16
        %v3290 = vrot.slane %v3288, 5
        %v3291 = vor.u32 %v3287, %v3290
        %v3292 = vrot.slane %v3291, 4
        %v3294 = vshll.u32 %v3216, 16
        %v3296 = vrot.slane %v3294, 5
        %v3297 = vsel %vm324, %v3292, %v3296
        %v3298 = vshrl.u32 %v3216, 16
        %v3300 = vrot.slane %v3298, 4
        %v3301 = vor.u32 %v3300, %v3296
        %v3302 = vrot.slane %v3301, 4
        %v3304 = vshll.u32 %v3217, 16
        %v3306 = vrot.slane %v3304, 5
        %v3307 = vsel %vm324, %v3302, %v3306
        %v3309 = vshrl.u32 %v3218, 16
        %v3311 = vrot.slane %v3309, 4
        %v3312 = vshll.u32 %v3218, 16
        %v3314 = vrot.slane %v3312, 5
        %v3315 = vor.u32 %v3311, %v3314
        %v3316 = vrot.slane %v3315, 4
        %v3318 = vshll.u32 %v3219, 16
        %v3320 = vrot.slane %v3318, 5
        %v3321 = vsel %vm324, %v3316, %v3320
        %v3322 = vshrl.u32 %v3219, 16
        %v3324 = vrot.slane %v3322, 4
        %v3325 = vor.u32 %v3324, %v3320
        %v3326 = vrot.slane %v3325, 4
        %v3328 = vshll.u32 %v3220, 16
        %v3330 = vrot.slane %v3328, 5
        %v3331 = vsel %vm324, %v3326, %v3330
        %v3333 = vshrl.u32 %v3221, 16
        %v3335 = vrot.slane %v3333, 4
        %v3336 = vshll.u32 %v3221, 16
        %v3338 = vrot.slane %v3336, 5
        %v3339 = vor.u32 %v3335, %v3338
        %v3340 = vrot.slane %v3339, 4
        %v3342 = vshll.u32 %v3222, 16
        %v3344 = vrot.slane %v3342, 5
        %v3345 = vsel %vm324, %v3340, %v3344
        %v3346 = vshrl.u32 %v3222, 16
        %v3348 = vrot.slane %v3346, 4
        %v3349 = vor.u32 %v3348, %v3344
        %v3350 = vrot.slane %v3349, 4
        %v3352 = vshll.u32 %v3223, 16
        %v3354 = vrot.slane %v3352, 5
        %v3355 = vsel %vm324, %v3350, %v3354
        %v3357 = vshrl.u32 %v3224, 16
        %v3359 = vrot.slane %v3357, 4
        %v3360 = vshll.u32 %v3224, 16
        %v3362 = vrot.slane %v3360, 5
        %v3363 = vor.u32 %v3359, %v3362
        %v3364 = vrot.slane %v3363, 4
        %v3366 = vshll.u32 %v3225, 16
        %v3368 = vrot.slane %v3366, 5
        %v3369 = vsel %vm324, %v3364, %v3368
        %v3370 = vshrl.u32 %v3225, 16
        %v3372 = vrot.slane %v3370, 4
        %v3373 = vor.u32 %v3372, %v3368
        %v3374 = vrot.slane %v3373, 4
        %v3376 = vshll.u32 %v3226, 16
        %v3378 = vrot.slane %v3376, 5
        %v3379 = vsel %vm324, %v3374, %v3378
        %v3381 = vshrl.u32 %v3227, 16
        %v3383 = vrot.slane %v3381, 4
        %v3384 = vshll.u32 %v3227, 16
        %v3386 = vrot.slane %v3384, 5
        %v3387 = vor.u32 %v3383, %v3386
        %v3388 = vrot.slane %v3387, 4
        %v3390 = vshll.u32 %v3228, 16
        %v3392 = vrot.slane %v3390, 5
        %v3393 = vsel %vm324, %v3388, %v3392
        %v3394 = vshrl.u32 %v3228, 16
        %v3396 = vrot.slane %v3394, 4
        %v3397 = vor.u32 %v3396, %v3392
        %v3398 = vrot.slane %v3397, 4
        %v3400 = vshll.u32 %v3229, 16
        %v3402 = vrot.slane %v3400, 5
        %v3403 = vsel %vm324, %v3398, %v3402
        %v3405 = vshrl.u32 %v3230, 16
        %v3407 = vrot.slane %v3405, 4
        %v3408 = vshll.u32 %v3230, 16
        %v3410 = vrot.slane %v3408, 5
        %v3411 = vor.u32 %v3407, %v3410
        %v3412 = vrot.slane %v3411, 4
        %v3414 = vshll.u32 %v3231, 16
        %v3416 = vrot.slane %v3414, 5
        %v3417 = vsel %vm324, %v3412, %v3416
        %v3418 = vshrl.u32 %v3231, 16
        %v3420 = vrot.slane %v3418, 4
        %v3421 = vor.u32 %v3420, %v3416
        %v3422 = vrot.slane %v3421, 4
        %v3424 = vshll.u32 %v3232, 16
        %v3426 = vrot.slane %v3424, 5
        %v3427 = vsel %vm324, %v3422, %v3426
        %v3429 = vshrl.u32 %v3233, 16
        %v3431 = vrot.slane %v3429, 4
        %v3432 = vshll.u32 %v3233, 16
        %v3434 = vrot.slane %v3432, 5
        %v3435 = vor.u32 %v3431, %v3434
        %v3436 = vrot.slane %v3435, 4
        %v3438 = vshll.u32 %v3234, 16
        %v3440 = vrot.slane %v3438, 5
        %v3441 = vsel %vm324, %v3436, %v3440
        %v3442 = vshrl.u32 %v3234, 16
        %v3444 = vrot.slane %v3442, 4
        %v3445 = vor.u32 %v3444, %v3440
        %v3446 = vrot.slane %v3445, 4
        %v3448 = vshll.u32 %v3235, 16
        %v3450 = vrot.slane %v3448, 5
        %v3451 = vsel %vm324, %v3446, %v3450
        %v3453 = vshrl.u32 %v3236, 16
        %v3455 = vrot.slane %v3453, 4
        %v3456 = vshll.u32 %v3236, 16
        %v3458 = vrot.slane %v3456, 5
        %v3459 = vor.u32 %v3455, %v3458
        %v3460 = vrot.slane %v3459, 4
        %v3462 = vshll.u32 %v3237, 16
        %v3464 = vrot.slane %v3462, 5
        %v3465 = vsel %vm324, %v3460, %v3464
        %v3466 = vshrl.u32 %v3237, 16
        %v3468 = vrot.slane %v3466, 4
        %v3469 = vor.u32 %v3468, %v3464
        %v3470 = vrot.slane %v3469, 4
        %v3472 = vshll.u32 %v3238, 16
        %v3474 = vrot.slane %v3472, 5
        %v3475 = vsel %vm324, %v3470, %v3474
        %v3477 = vshrl.u32 %v3239, 16
        %v3479 = vrot.slane %v3477, 4
        %v3480 = vshll.u32 %v3239, 16
        %v3482 = vrot.slane %v3480, 5
        %v3483 = vor.u32 %v3479, %v3482
        %v3484 = vrot.slane %v3483, 4
        %v3486 = vshll.u32 %v3240, 16
        %v3488 = vrot.slane %v3486, 5
        %v3489 = vsel %vm324, %v3484, %v3488
        %v3490 = vshrl.u32 %v3240, 16
        %v3492 = vrot.slane %v3490, 4
        %v3493 = vor.u32 %v3492, %v3488
        %v3494 = vrot.slane %v3493, 4
        %v3496 = vshll.u32 %v3241, 16
        %v3498 = vrot.slane %v3496, 5
        %v3499 = vsel %vm324, %v3494, %v3498
        %v3501 = vshrl.u32 %v3242, 16
        %v3503 = vrot.slane %v3501, 4
        %v3504 = vshll.u32 %v3242, 16
        %v3506 = vrot.slane %v3504, 5
        %v3507 = vor.u32 %v3503, %v3506
        %v3508 = vrot.slane %v3507, 4
        %v3510 = vshll.u32 %v3243, 16
        %v3512 = vrot.slane %v3510, 5
        %v3513 = vsel %vm324, %v3508, %v3512
        %v3514 = vshrl.u32 %v3243, 16
        %v3516 = vrot.slane %v3514, 4
        %v3517 = vor.u32 %v3516, %v3512
        %v3518 = vrot.slane %v3517, 4
        %v3520 = vshll.u32 %v3244, 16
        %v3522 = vrot.slane %v3520, 5
        %v3523 = vsel %vm324, %v3518, %v3522
        %v3525 = vshrl.u32 %v3245, 16
        %v3527 = vrot.slane %v3525, 4
        %v3528 = vshll.u32 %v3245, 16
        %v3530 = vrot.slane %v3528, 5
        %v3531 = vor.u32 %v3527, %v3530
        %v3532 = vrot.slane %v3531, 4
        %v3534 = vshll.u32 %v3246, 16
        %v3536 = vrot.slane %v3534, 5
        %v3537 = vsel %vm324, %v3532, %v3536
        %v3538 = vshrl.u32 %v3246, 16
        %v3540 = vrot.slane %v3538, 4
        %v3541 = vor.u32 %v3540, %v3536
        %v3542 = vrot.slane %v3541, 4
        %v3544 = vshll.u32 %v3247, 16
        %v3546 = vrot.slane %v3544, 5
        %v3547 = vsel %vm324, %v3542, %v3546
        %v3549 = vshrl.u32 %v3248, 16
        %v3551 = vrot.slane %v3549, 4
        %v3552 = vshll.u32 %v3248, 16
        %v3554 = vrot.slane %v3552, 5
        %v3555 = vor.u32 %v3551, %v3554
        %v3556 = vrot.slane %v3555, 4
        %v3558 = vshll.u32 %v3249, 16
        %v3560 = vrot.slane %v3558, 5
        %v3561 = vsel %vm324, %v3556, %v3560
        %v3562 = vshrl.u32 %v3249, 16
        %v3564 = vrot.slane %v3562, 4
        %v3565 = vor.u32 %v3564, %v3560
        %v3566 = vrot.slane %v3565, 4
        %v3568 = vshll.u32 %v3250, 16
        %v3570 = vrot.slane %v3568, 5
        %v3571 = vsel %vm324, %v3566, %v3570
        %v3573 = vshrl.u32 %v3251, 16
        %v3575 = vrot.slane %v3573, 4
        %v3576 = vshll.u32 %v3251, 16
        %v3578 = vrot.slane %v3576, 5
        %v3579 = vor.u32 %v3575, %v3578
        %v3580 = vrot.slane %v3579, 4
        %v3582 = vshll.u32 %v3252, 16
        %v3584 = vrot.slane %v3582, 5
        %v3585 = vsel %vm324, %v3580, %v3584
        %v3586 = vshrl.u32 %v3252, 16
        %v3588 = vrot.slane %v3586, 4
        %v3589 = vor.u32 %v3588, %v3584
        %v3590 = vrot.slane %v3589, 4
        %v3592 = vshll.u32 %v3253, 16
        %v3594 = vrot.slane %v3592, 5
        %v3595 = vsel %vm324, %v3590, %v3594
        %v3597 = vshrl.u32 %v3254, 16
        %v3599 = vrot.slane %v3597, 4
        %v3600 = vshll.u32 %v3254, 16
        %v3602 = vrot.slane %v3600, 5
        %v3603 = vor.u32 %v3599, %v3602
        %v3604 = vrot.slane %v3603, 4
        %v3606 = vshll.u32 %v3255, 16
        %v3608 = vrot.slane %v3606, 5
        %v3609 = vsel %vm324, %v3604, %v3608
        %v3610 = vshrl.u32 %v3255, 16
        %v3612 = vrot.slane %v3610, 4
        %v3613 = vor.u32 %v3612, %v3608
        %v3614 = vrot.slane %v3613, 4
        %v3616 = vshll.u32 %v3256, 16
        %v3618 = vrot.slane %v3616, 5
        %v3619 = vsel %vm324, %v3614, %v3618
        %v3621 = vshrl.u32 %v3257, 16
        %v3623 = vrot.slane %v3621, 4
        %v3624 = vshll.u32 %v3257, 16
        %v3626 = vrot.slane %v3624, 5
        %v3627 = vor.u32 %v3623, %v3626
        %v3628 = vrot.slane %v3627, 4
        %v3630 = vshll.u32 %v3258, 16
        %v3632 = vrot.slane %v3630, 5
        %v3633 = vsel %vm324, %v3628, %v3632
        %v3634 = vshrl.u32 %v3258, 16
        %v3636 = vrot.slane %v3634, 4
        %v3637 = vor.u32 %v3636, %v3632
        %v3638 = vrot.slane %v3637, 4
        %v3640 = vshll.u32 %v3259, 16
        %v3642 = vrot.slane %v3640, 5
        %v3643 = vsel %vm324, %v3638, %v3642
        %v3644 = vld [vmem:[%s257 + $0x70] sm:$0xf]
        %v3645 = vld [vmem:[%s257 + $0x74] sm:$0xf]
        %v3646 = vld [vmem:[%s257 + $0x78] sm:$0xf]
        %v3647 = vld [vmem:[%s257 + $0x7c] sm:$0xf]
        %v3648 = vunpack.c.l.b16 %v3273
        %v3649 = vunpack.c.l.b16 %v3283
        %v3650 = vunpack.c.l.b16 %v3297
        %v3651 = vunpack.c.l.b16 %v3307
        %v3652 = vunpack.c.l.b16 %v3321
        %v3653 = vunpack.c.l.b16 %v3331
        %v3654 = vunpack.c.l.b16 %v3345
        %v3655 = vunpack.c.l.b16 %v3355
        %v3656 = vunpack.c.l.b16 %v3369
        %v3657 = vunpack.c.l.b16 %v3379
        %v3658 = vunpack.c.l.b16 %v3393
        %v3659 = vunpack.c.l.b16 %v3403
        %v3660 = vunpack.c.l.b16 %v3417
        %v3661 = vunpack.c.l.b16 %v3427
        %v3662 = vunpack.c.l.b16 %v3441
        %v3663 = vunpack.c.l.b16 %v3451
        %v3664 = vunpack.c.l.b16 %v3465
        %v3665 = vunpack.c.l.b16 %v3475
        %v3666 = vunpack.c.l.b16 %v3489
        %v3667 = vunpack.c.l.b16 %v3499
        %v3668 = vunpack.c.l.b16 %v3513
        %v3669 = vunpack.c.l.b16 %v3523
        %v3670 = vunpack.c.l.b16 %v3537
        %v3671 = vunpack.c.l.b16 %v3547
        %v3672 = vunpack.c.l.b16 %v3561
        %v3673 = vunpack.c.l.b16 %v3571
        %v3674 = vunpack.c.l.b16 %v3585
        %v3675 = vunpack.c.l.b16 %v3595
        %v3676 = vunpack.c.l.b16 %v3609
        %v3677 = vunpack.c.l.b16 %v3619
        %v3678 = vunpack.c.l.b16 %v3633
        %v3679 = vunpack.c.l.b16 %v3643
        %v3680 = vpack.c.b16 %v3649, %v3648
        %v3681 = vpack.c.b16 %v3651, %v3650
        %v3682 = vpack.c.b16 %v3653, %v3652
        %v3683 = vpack.c.b16 %v3655, %v3654
        %v3684 = vpack.c.b16 %v3657, %v3656
        %v3685 = vpack.c.b16 %v3659, %v3658
        %v3686 = vpack.c.b16 %v3661, %v3660
        %v3687 = vpack.c.b16 %v3663, %v3662
        %v3688 = vpack.c.b16 %v3665, %v3664
        %v3689 = vpack.c.b16 %v3667, %v3666
        %v3690 = vpack.c.b16 %v3669, %v3668
        %v3691 = vpack.c.b16 %v3671, %v3670
        %v3692 = vpack.c.b16 %v3673, %v3672
        %v3693 = vpack.c.b16 %v3675, %v3674
        %v3694 = vpack.c.b16 %v3677, %v3676
        %v3695 = vpack.c.b16 %v3679, %v3678
        %v3700 = vunpack.c.l.b16 %v3644
        %v3701 = vunpack.c.l.b16 %v3645
        %v3702 = vunpack.c.l.b16 %v3646
        %v3703 = vunpack.c.l.b16 %v3647
        %v3704 = vpack.c.b16 %v3701, %v3700
        %v3705 = vpack.c.b16 %v3703, %v3702
        %v3709 = vsel %vm773, %v3680, 0
        %v3712 = vsel %vm773, %v3681, 0
        %v3715 = vsel %vm773, %v3682, 0
        %v3718 = vsel %vm773, %v3683, 0
        %v3721 = vsel %vm773, %v3684, 0
        %v3724 = vsel %vm773, %v3685, 0
        %v3727 = vsel %vm773, %v3686, 0
        %v3730 = vsel %vm773, %v3687, 0
        %v3733 = vsel %vm773, %v3688, 0
        %v3736 = vsel %vm773, %v3689, 0
        %v3739 = vsel %vm773, %v3690, 0
        %v3742 = vsel %vm773, %v3691, 0
        %v3745 = vsel %vm773, %v3692, 0
        %v3748 = vsel %vm773, %v3693, 0
        %v3751 = vsel %vm773, %v3694, 0
        %v3754 = vsel %vm773, %v3695, 0
        %3756 = vmatpush.bf16.msra.mxu0 0
        %3757 = vmatpush.bf16.msra.mxu0 0
        %3758 = vmatpush.bf16.msra.mxu0 0
        %3759 = vmatpush.bf16.msra.mxu0 0
        %3760 = vmatpush.bf16.msra.mxu0 0
        %3761 = vmatpush.bf16.msra.mxu0 0
        %3762 = vmatpush.bf16.msra.mxu0 %v3705
        %3763 = vmatpush.bf16.msra.mxu0 %v3704
        %3764 = vmatmul.bf16.gmra.mxu0 %v3709
        %v3765 = vpop.f32.mrf.mxu0
        %v3766 = vadd.f32 0.0, %v3765
        %v3767 = vpop.f32.mrf.mxu0
        %v3768 = vadd.f32 0.0, %v3767
        %3769 = vmatmul.bf16.gmra.mxu0 %v3712
        %v3770 = vpop.f32.mrf.mxu0
        %v3771 = vadd.f32 0.0, %v3770
        %v3772 = vpop.f32.mrf.mxu0
        %v3773 = vadd.f32 0.0, %v3772
        %3774 = vmatmul.bf16.gmra.mxu0 %v3715
        %v3775 = vpop.f32.mrf.mxu0
        %v3776 = vadd.f32 0.0, %v3775
        %v3777 = vpop.f32.mrf.mxu0
        %v3778 = vadd.f32 0.0, %v3777
        %3779 = vmatmul.bf16.gmra.mxu0 %v3718
        %v3780 = vpop.f32.mrf.mxu0
        %v3781 = vadd.f32 0.0, %v3780
        %v3782 = vpop.f32.mrf.mxu0
        %v3783 = vadd.f32 0.0, %v3782
        %3784 = vmatmul.bf16.gmra.mxu0 %v3721
        %v3785 = vpop.f32.mrf.mxu0
        %v3786 = vadd.f32 0.0, %v3785
        %v3787 = vpop.f32.mrf.mxu0
        %v3788 = vadd.f32 0.0, %v3787
        %3789 = vmatmul.bf16.gmra.mxu0 %v3724
        %v3790 = vpop.f32.mrf.mxu0
        %v3791 = vadd.f32 0.0, %v3790
        %v3792 = vpop.f32.mrf.mxu0
        %v3793 = vadd.f32 0.0, %v3792
        %3794 = vmatmul.bf16.gmra.mxu0 %v3727
        %v3795 = vpop.f32.mrf.mxu0
        %v3796 = vadd.f32 0.0, %v3795
        %v3797 = vpop.f32.mrf.mxu0
        %v3798 = vadd.f32 0.0, %v3797
        %3799 = vmatmul.bf16.gmra.mxu0 %v3730
        %v3800 = vpop.f32.mrf.mxu0
        %v3801 = vadd.f32 0.0, %v3800
        %v3802 = vpop.f32.mrf.mxu0
        %v3803 = vadd.f32 0.0, %v3802
        %3804 = vmatmul.bf16.gmra.mxu0 %v3733
        %v3805 = vpop.f32.mrf.mxu0
        %v3806 = vadd.f32 0.0, %v3805
        %v3807 = vpop.f32.mrf.mxu0
        %v3808 = vadd.f32 0.0, %v3807
        %3809 = vmatmul.bf16.gmra.mxu0 %v3736
        %v3810 = vpop.f32.mrf.mxu0
        %v3811 = vadd.f32 0.0, %v3810
        %v3812 = vpop.f32.mrf.mxu0
        %v3813 = vadd.f32 0.0, %v3812
        %3814 = vmatmul.bf16.gmra.mxu0 %v3739
        %v3815 = vpop.f32.mrf.mxu0
        %v3816 = vadd.f32 0.0, %v3815
        %v3817 = vpop.f32.mrf.mxu0
        %v3818 = vadd.f32 0.0, %v3817
        %3819 = vmatmul.bf16.gmra.mxu0 %v3742
        %v3820 = vpop.f32.mrf.mxu0
        %v3821 = vadd.f32 0.0, %v3820
        %v3822 = vpop.f32.mrf.mxu0
        %v3823 = vadd.f32 0.0, %v3822
        %3824 = vmatmul.bf16.gmra.mxu0 %v3745
        %v3825 = vpop.f32.mrf.mxu0
        %v3826 = vadd.f32 0.0, %v3825
        %v3827 = vpop.f32.mrf.mxu0
        %v3828 = vadd.f32 0.0, %v3827
        %3829 = vmatmul.bf16.gmra.mxu0 %v3748
        %v3830 = vpop.f32.mrf.mxu0
        %v3831 = vadd.f32 0.0, %v3830
        %v3832 = vpop.f32.mrf.mxu0
        %v3833 = vadd.f32 0.0, %v3832
        %3834 = vmatmul.bf16.gmra.mxu0 %v3751
        %v3835 = vpop.f32.mrf.mxu0
        %v3836 = vadd.f32 0.0, %v3835
        %v3837 = vpop.f32.mrf.mxu0
        %v3838 = vadd.f32 0.0, %v3837
        %3839 = vmatmul.bf16.gmra.mxu0 %v3754
        %v3840 = vpop.f32.mrf.mxu0
        %v3841 = vadd.f32 0.0, %v3840
        %v3842 = vpop.f32.mrf.mxu0
        %v3843 = vadd.f32 0.0, %v3842
        %3844 = vdwg.mxu0
        %v3845 = vadd.f32 %v3180, %v3766
        %v3846 = vadd.f32 %v3181, %v3768
        %v3847 = vadd.f32 %v3182, %v3771
        %v3848 = vadd.f32 %v3183, %v3773
        %v3849 = vadd.f32 %v3184, %v3776
        %v3850 = vadd.f32 %v3185, %v3778
        %v3851 = vadd.f32 %v3186, %v3781
        %v3852 = vadd.f32 %v3187, %v3783
        %v3853 = vadd.f32 %v3188, %v3786
        %v3854 = vadd.f32 %v3189, %v3788
        %v3855 = vadd.f32 %v3190, %v3791
        %v3856 = vadd.f32 %v3191, %v3793
        %v3857 = vadd.f32 %v3192, %v3796
        %v3858 = vadd.f32 %v3193, %v3798
        %v3859 = vadd.f32 %v3194, %v3801
        %v3860 = vadd.f32 %v3195, %v3803
        %v3861 = vadd.f32 %v3196, %v3806
        %v3862 = vadd.f32 %v3197, %v3808
        %v3863 = vadd.f32 %v3198, %v3811
        %v3864 = vadd.f32 %v3199, %v3813
        %v3865 = vadd.f32 %v3200, %v3816
        %v3866 = vadd.f32 %v3201, %v3818
        %v3867 = vadd.f32 %v3202, %v3821
        %v3868 = vadd.f32 %v3203, %v3823
        %v3869 = vadd.f32 %v3204, %v3826
        %v3870 = vadd.f32 %v3205, %v3828
        %v3871 = vadd.f32 %v3206, %v3831
        %v3872 = vadd.f32 %v3207, %v3833
        %v3873 = vadd.f32 %v3208, %v3836
        %v3874 = vadd.f32 %v3209, %v3838
        %v3875 = vadd.f32 %v3210, %v3841
        %v3876 = vadd.f32 %v3211, %v3843
        %v3877 = vld [vmem:[%s2914] sm:$0xe]
        %v3878 = vld [vmem:[%s2914 + $0xc] sm:$0xe]
        %v3879 = vld [vmem:[%s2914 + $0x18] sm:$0xe]
        %v3880 = vld [vmem:[%s2914 + $0x24] sm:$0xe]
        %v3881 = vld [vmem:[%s2914 + $0x30] sm:$0xe]
        %v3882 = vld [vmem:[%s2914 + $0x3c] sm:$0xe]
        %v3883 = vld [vmem:[%s2914 + $0x48] sm:$0xe]
        %v3884 = vld [vmem:[%s2914 + $0x54] sm:$0xe]
        %v3885 = vld [vmem:[%s2914 + $0x60] sm:$0xe]
        %v3886 = vld [vmem:[%s2914 + $0x6c] sm:$0xe]
        %v3887 = vld [vmem:[%s2914 + $0x78] sm:$0xe]
        %v3888 = vld [vmem:[%s2914 + $0x84] sm:$0xe]
        %v3889 = vld [vmem:[%s2914 + $0x90] sm:$0xe]
        %v3890 = vld [vmem:[%s2914 + $0x9c] sm:$0xe]
        %v3891 = vld [vmem:[%s2914 + $0xa8] sm:$0xe]
        %v3892 = vld [vmem:[%s2914 + $0xb4] sm:$0xe]
        %v3941 = vrot.slane %v3877, 5
        %v3942 = vrot.slane %v3941, 4
        %v3943 = vrot.slane %v3213, 5
        %v3944 = vsel %vm1190, %v3942, %v3943
        %v3945 = vrot.slane %v3943, 4
        %v3946 = vrot.slane %v3214, 5
        %v3947 = vsel %vm1190, %v3945, %v3946
        %v3948 = vrot.slane %v3878, 5
        %v3949 = vrot.slane %v3948, 4
        %v3950 = vrot.slane %v3216, 5
        %v3951 = vsel %vm1190, %v3949, %v3950
        %v3952 = vrot.slane %v3950, 4
        %v3953 = vrot.slane %v3217, 5
        %v3954 = vsel %vm1190, %v3952, %v3953
        %v3955 = vrot.slane %v3879, 5
        %v3956 = vrot.slane %v3955, 4
        %v3957 = vrot.slane %v3219, 5
        %v3958 = vsel %vm1190, %v3956, %v3957
        %v3959 = vrot.slane %v3957, 4
        %v3960 = vrot.slane %v3220, 5
        %v3961 = vsel %vm1190, %v3959, %v3960
        %v3962 = vrot.slane %v3880, 5
        %v3963 = vrot.slane %v3962, 4
        %v3964 = vrot.slane %v3222, 5
        %v3965 = vsel %vm1190, %v3963, %v3964
        %v3966 = vrot.slane %v3964, 4
        %v3967 = vrot.slane %v3223, 5
        %v3968 = vsel %vm1190, %v3966, %v3967
        %v3969 = vrot.slane %v3881, 5
        %v3970 = vrot.slane %v3969, 4
        %v3971 = vrot.slane %v3225, 5
        %v3972 = vsel %vm1190, %v3970, %v3971
        %v3973 = vrot.slane %v3971, 4
        %v3974 = vrot.slane %v3226, 5
        %v3975 = vsel %vm1190, %v3973, %v3974
        %v3976 = vrot.slane %v3882, 5
        %v3977 = vrot.slane %v3976, 4
        %v3978 = vrot.slane %v3228, 5
        %v3979 = vsel %vm1190, %v3977, %v3978
        %v3980 = vrot.slane %v3978, 4
        %v3981 = vrot.slane %v3229, 5
        %v3982 = vsel %vm1190, %v3980, %v3981
        %v3983 = vrot.slane %v3883, 5
        %v3984 = vrot.slane %v3983, 4
        %v3985 = vrot.slane %v3231, 5
        %v3986 = vsel %vm1190, %v3984, %v3985
        %v3987 = vrot.slane %v3985, 4
        %v3988 = vrot.slane %v3232, 5
        %v3989 = vsel %vm1190, %v3987, %v3988
        %v3990 = vrot.slane %v3884, 5
        %v3991 = vrot.slane %v3990, 4
        %v3992 = vrot.slane %v3234, 5
        %v3993 = vsel %vm1190, %v3991, %v3992
        %v3994 = vrot.slane %v3992, 4
        %v3995 = vrot.slane %v3235, 5
        %v3996 = vsel %vm1190, %v3994, %v3995
        %v3997 = vrot.slane %v3885, 5
        %v3998 = vrot.slane %v3997, 4
        %v3999 = vrot.slane %v3237, 5
        %v4000 = vsel %vm1190, %v3998, %v3999
        %v4001 = vrot.slane %v3999, 4
        %v4002 = vrot.slane %v3238, 5
        %v4003 = vsel %vm1190, %v4001, %v4002
        %v4004 = vrot.slane %v3886, 5
        %v4005 = vrot.slane %v4004, 4
        %v4006 = vrot.slane %v3240, 5
        %v4007 = vsel %vm1190, %v4005, %v4006
        %v4008 = vrot.slane %v4006, 4
        %v4009 = vrot.slane %v3241, 5
        %v4010 = vsel %vm1190, %v4008, %v4009
        %v4011 = vrot.slane %v3887, 5
        %v4012 = vrot.slane %v4011, 4
        %v4013 = vrot.slane %v3243, 5
        %v4014 = vsel %vm1190, %v4012, %v4013
        %v4015 = vrot.slane %v4013, 4
        %v4016 = vrot.slane %v3244, 5
        %v4017 = vsel %vm1190, %v4015, %v4016
        %v4018 = vrot.slane %v3888, 5
        %v4019 = vrot.slane %v4018, 4
        %v4020 = vrot.slane %v3246, 5
        %v4021 = vsel %vm1190, %v4019, %v4020
        %v4022 = vrot.slane %v4020, 4
        %v4023 = vrot.slane %v3247, 5
        %v4024 = vsel %vm1190, %v4022, %v4023
        %v4025 = vrot.slane %v3889, 5
        %v4026 = vrot.slane %v4025, 4
        %v4027 = vrot.slane %v3249, 5
        %v4028 = vsel %vm1190, %v4026, %v4027
        %v4029 = vrot.slane %v4027, 4
        %v4030 = vrot.slane %v3250, 5
        %v4031 = vsel %vm1190, %v4029, %v4030
        %v4032 = vrot.slane %v3890, 5
        %v4033 = vrot.slane %v4032, 4
        %v4034 = vrot.slane %v3252, 5
        %v4035 = vsel %vm1190, %v4033, %v4034
        %v4036 = vrot.slane %v4034, 4
        %v4037 = vrot.slane %v3253, 5
        %v4038 = vsel %vm1190, %v4036, %v4037
        %v4039 = vrot.slane %v3891, 5
        %v4040 = vrot.slane %v4039, 4
        %v4041 = vrot.slane %v3255, 5
        %v4042 = vsel %vm1190, %v4040, %v4041
        %v4043 = vrot.slane %v4041, 4
        %v4044 = vrot.slane %v3256, 5
        %v4045 = vsel %vm1190, %v4043, %v4044
        %v4046 = vrot.slane %v3892, 5
        %v4047 = vrot.slane %v4046, 4
        %v4048 = vrot.slane %v3258, 5
        %v4049 = vsel %vm1190, %v4047, %v4048
        %v4050 = vrot.slane %v4048, 4
        %v4051 = vrot.slane %v3259, 5
        %v4052 = vsel %vm1190, %v4050, %v4051
        %v4053 = vld [vmem:[%s257 + $0x80] sm:$0xf]
        %v4054 = vld [vmem:[%s257 + $0x84] sm:$0xf]
        %v4055 = vld [vmem:[%s257 + $0x88] sm:$0xf]
        %v4056 = vld [vmem:[%s257 + $0x8c] sm:$0xf]
        %v4057 = vunpack.c.l.b16 %v3944
        %v4058 = vunpack.c.l.b16 %v3947
        %v4059 = vunpack.c.l.b16 %v3951
        %v4060 = vunpack.c.l.b16 %v3954
        %v4061 = vunpack.c.l.b16 %v3958
        %v4062 = vunpack.c.l.b16 %v3961
        %v4063 = vunpack.c.l.b16 %v3965
        %v4064 = vunpack.c.l.b16 %v3968
        %v4065 = vunpack.c.l.b16 %v3972
        %v4066 = vunpack.c.l.b16 %v3975
        %v4067 = vunpack.c.l.b16 %v3979
        %v4068 = vunpack.c.l.b16 %v3982
        %v4069 = vunpack.c.l.b16 %v3986
        %v4070 = vunpack.c.l.b16 %v3989
        %v4071 = vunpack.c.l.b16 %v3993
        %v4072 = vunpack.c.l.b16 %v3996
        %v4073 = vunpack.c.l.b16 %v4000
        %v4074 = vunpack.c.l.b16 %v4003
        %v4075 = vunpack.c.l.b16 %v4007
        %v4076 = vunpack.c.l.b16 %v4010
        %v4077 = vunpack.c.l.b16 %v4014
        %v4078 = vunpack.c.l.b16 %v4017
        %v4079 = vunpack.c.l.b16 %v4021
        %v4080 = vunpack.c.l.b16 %v4024
        %v4081 = vunpack.c.l.b16 %v4028
        %v4082 = vunpack.c.l.b16 %v4031
        %v4083 = vunpack.c.l.b16 %v4035
        %v4084 = vunpack.c.l.b16 %v4038
        %v4085 = vunpack.c.l.b16 %v4042
        %v4086 = vunpack.c.l.b16 %v4045
        %v4087 = vunpack.c.l.b16 %v4049
        %v4088 = vunpack.c.l.b16 %v4052
        %v4089 = vpack.c.b16 %v4058, %v4057
        %v4090 = vpack.c.b16 %v4060, %v4059
        %v4091 = vpack.c.b16 %v4062, %v4061
        %v4092 = vpack.c.b16 %v4064, %v4063
        %v4093 = vpack.c.b16 %v4066, %v4065
        %v4094 = vpack.c.b16 %v4068, %v4067
        %v4095 = vpack.c.b16 %v4070, %v4069
        %v4096 = vpack.c.b16 %v4072, %v4071
        %v4097 = vpack.c.b16 %v4074, %v4073
        %v4098 = vpack.c.b16 %v4076, %v4075
        %v4099 = vpack.c.b16 %v4078, %v4077
        %v4100 = vpack.c.b16 %v4080, %v4079
        %v4101 = vpack.c.b16 %v4082, %v4081
        %v4102 = vpack.c.b16 %v4084, %v4083
        %v4103 = vpack.c.b16 %v4086, %v4085
        %v4104 = vpack.c.b16 %v4088, %v4087
        %v4109 = vunpack.c.l.b16 %v4053
        %v4110 = vunpack.c.l.b16 %v4054
        %v4111 = vunpack.c.l.b16 %v4055
        %v4112 = vunpack.c.l.b16 %v4056
        %v4113 = vpack.c.b16 %v4110, %v4109
        %v4114 = vpack.c.b16 %v4112, %v4111
        %v4118 = vsel %vm773, %v4089, 0
        %v4121 = vsel %vm773, %v4090, 0
        %v4124 = vsel %vm773, %v4091, 0
        %v4127 = vsel %vm773, %v4092, 0
        %v4130 = vsel %vm773, %v4093, 0
        %v4133 = vsel %vm773, %v4094, 0
        %v4136 = vsel %vm773, %v4095, 0
        %v4139 = vsel %vm773, %v4096, 0
        %v4142 = vsel %vm773, %v4097, 0
        %v4145 = vsel %vm773, %v4098, 0
        %v4148 = vsel %vm773, %v4099, 0
        %v4151 = vsel %vm773, %v4100, 0
        %v4154 = vsel %vm773, %v4101, 0
        %v4157 = vsel %vm773, %v4102, 0
        %v4160 = vsel %vm773, %v4103, 0
        %v4163 = vsel %vm773, %v4104, 0
        %4165 = vmatpush.bf16.msra.mxu0 0
        %4166 = vmatpush.bf16.msra.mxu0 0
        %4167 = vmatpush.bf16.msra.mxu0 0
        %4168 = vmatpush.bf16.msra.mxu0 0
        %4169 = vmatpush.bf16.msra.mxu0 0
        %4170 = vmatpush.bf16.msra.mxu0 0
        %4171 = vmatpush.bf16.msra.mxu0 %v4114
        %4172 = vmatpush.bf16.msra.mxu0 %v4113
        %4173 = vmatmul.bf16.gmra.mxu0 %v4118
        %v4174 = vpop.f32.mrf.mxu0
        %v4175 = vadd.f32 0.0, %v4174
        %v4176 = vpop.f32.mrf.mxu0
        %v4177 = vadd.f32 0.0, %v4176
        %4178 = vmatmul.bf16.gmra.mxu0 %v4121
        %v4179 = vpop.f32.mrf.mxu0
        %v4180 = vadd.f32 0.0, %v4179
        %v4181 = vpop.f32.mrf.mxu0
        %v4182 = vadd.f32 0.0, %v4181
        %4183 = vmatmul.bf16.gmra.mxu0 %v4124
        %v4184 = vpop.f32.mrf.mxu0
        %v4185 = vadd.f32 0.0, %v4184
        %v4186 = vpop.f32.mrf.mxu0
        %v4187 = vadd.f32 0.0, %v4186
        %4188 = vmatmul.bf16.gmra.mxu0 %v4127
        %v4189 = vpop.f32.mrf.mxu0
        %v4190 = vadd.f32 0.0, %v4189
        %v4191 = vpop.f32.mrf.mxu0
        %v4192 = vadd.f32 0.0, %v4191
        %4193 = vmatmul.bf16.gmra.mxu0 %v4130
        %v4194 = vpop.f32.mrf.mxu0
        %v4195 = vadd.f32 0.0, %v4194
        %v4196 = vpop.f32.mrf.mxu0
        %v4197 = vadd.f32 0.0, %v4196
        %4198 = vmatmul.bf16.gmra.mxu0 %v4133
        %v4199 = vpop.f32.mrf.mxu0
        %v4200 = vadd.f32 0.0, %v4199
        %v4201 = vpop.f32.mrf.mxu0
        %v4202 = vadd.f32 0.0, %v4201
        %4203 = vmatmul.bf16.gmra.mxu0 %v4136
        %v4204 = vpop.f32.mrf.mxu0
        %v4205 = vadd.f32 0.0, %v4204
        %v4206 = vpop.f32.mrf.mxu0
        %v4207 = vadd.f32 0.0, %v4206
        %4208 = vmatmul.bf16.gmra.mxu0 %v4139
        %v4209 = vpop.f32.mrf.mxu0
        %v4210 = vadd.f32 0.0, %v4209
        %v4211 = vpop.f32.mrf.mxu0
        %v4212 = vadd.f32 0.0, %v4211
        %4213 = vmatmul.bf16.gmra.mxu0 %v4142
        %v4214 = vpop.f32.mrf.mxu0
        %v4215 = vadd.f32 0.0, %v4214
        %v4216 = vpop.f32.mrf.mxu0
        %v4217 = vadd.f32 0.0, %v4216
        %4218 = vmatmul.bf16.gmra.mxu0 %v4145
        %v4219 = vpop.f32.mrf.mxu0
        %v4220 = vadd.f32 0.0, %v4219
        %v4221 = vpop.f32.mrf.mxu0
        %v4222 = vadd.f32 0.0, %v4221
        %4223 = vmatmul.bf16.gmra.mxu0 %v4148
        %v4224 = vpop.f32.mrf.mxu0
        %v4225 = vadd.f32 0.0, %v4224
        %v4226 = vpop.f32.mrf.mxu0
        %v4227 = vadd.f32 0.0, %v4226
        %4228 = vmatmul.bf16.gmra.mxu0 %v4151
        %v4229 = vpop.f32.mrf.mxu0
        %v4230 = vadd.f32 0.0, %v4229
        %v4231 = vpop.f32.mrf.mxu0
        %v4232 = vadd.f32 0.0, %v4231
        %4233 = vmatmul.bf16.gmra.mxu0 %v4154
        %v4234 = vpop.f32.mrf.mxu0
        %v4235 = vadd.f32 0.0, %v4234
        %v4236 = vpop.f32.mrf.mxu0
        %v4237 = vadd.f32 0.0, %v4236
        %4238 = vmatmul.bf16.gmra.mxu0 %v4157
        %v4239 = vpop.f32.mrf.mxu0
        %v4240 = vadd.f32 0.0, %v4239
        %v4241 = vpop.f32.mrf.mxu0
        %v4242 = vadd.f32 0.0, %v4241
        %4243 = vmatmul.bf16.gmra.mxu0 %v4160
        %v4244 = vpop.f32.mrf.mxu0
        %v4245 = vadd.f32 0.0, %v4244
        %v4246 = vpop.f32.mrf.mxu0
        %v4247 = vadd.f32 0.0, %v4246
        %4248 = vmatmul.bf16.gmra.mxu0 %v4163
        %v4249 = vpop.f32.mrf.mxu0
        %v4250 = vadd.f32 0.0, %v4249
        %v4251 = vpop.f32.mrf.mxu0
        %v4252 = vadd.f32 0.0, %v4251
        %4253 = vdwg.mxu0
        %v4254 = vadd.f32 %v3845, %v4175
        %v4255 = vadd.f32 %v3846, %v4177
        %v4256 = vadd.f32 %v3847, %v4180
        %v4257 = vadd.f32 %v3848, %v4182
        %v4258 = vadd.f32 %v3849, %v4185
        %v4259 = vadd.f32 %v3850, %v4187
        %v4260 = vadd.f32 %v3851, %v4190
        %v4261 = vadd.f32 %v3852, %v4192
        %v4262 = vadd.f32 %v3853, %v4195
        %v4263 = vadd.f32 %v3854, %v4197
        %v4264 = vadd.f32 %v3855, %v4200
        %v4265 = vadd.f32 %v3856, %v4202
        %v4266 = vadd.f32 %v3857, %v4205
        %v4267 = vadd.f32 %v3858, %v4207
        %v4268 = vadd.f32 %v3859, %v4210
        %v4269 = vadd.f32 %v3860, %v4212
        %v4270 = vadd.f32 %v3861, %v4215
        %v4271 = vadd.f32 %v3862, %v4217
        %v4272 = vadd.f32 %v3863, %v4220
        %v4273 = vadd.f32 %v3864, %v4222
        %v4274 = vadd.f32 %v3865, %v4225
        %v4275 = vadd.f32 %v3866, %v4227
        %v4276 = vadd.f32 %v3867, %v4230
        %v4277 = vadd.f32 %v3868, %v4232
        %v4278 = vadd.f32 %v3869, %v4235
        %v4279 = vadd.f32 %v3870, %v4237
        %v4280 = vadd.f32 %v3871, %v4240
        %v4281 = vadd.f32 %v3872, %v4242
        %v4282 = vadd.f32 %v3873, %v4245
        %v4283 = vadd.f32 %v3874, %v4247
        %v4284 = vadd.f32 %v3875, %v4250
        %v4285 = vadd.f32 %v3876, %v4252
        %v4286 = vld [vmem:[%s260] sm:$0x1]
        %v4288 = vperm.slane %v4286, 0
        %v4290 = vmul.f32 %v4254, %v4288
        %v4291 = vmul.f32 %v4255, %v4288
        %v4292 = vmul.f32 %v4256, %v4288
        %v4293 = vmul.f32 %v4257, %v4288
        %v4294 = vmul.f32 %v4258, %v4288
        %v4295 = vmul.f32 %v4259, %v4288
        %v4296 = vmul.f32 %v4260, %v4288
        %v4297 = vmul.f32 %v4261, %v4288
        %v4298 = vmul.f32 %v4262, %v4288
        %v4299 = vmul.f32 %v4263, %v4288
        %v4300 = vmul.f32 %v4264, %v4288
        %v4301 = vmul.f32 %v4265, %v4288
        %v4302 = vmul.f32 %v4266, %v4288
        %v4303 = vmul.f32 %v4267, %v4288
        %v4304 = vmul.f32 %v4268, %v4288
        %v4305 = vmul.f32 %v4269, %v4288
        %v4306 = vmul.f32 %v4270, %v4288
        %v4307 = vmul.f32 %v4271, %v4288
        %v4308 = vmul.f32 %v4272, %v4288
        %v4309 = vmul.f32 %v4273, %v4288
        %v4310 = vmul.f32 %v4274, %v4288
        %v4311 = vmul.f32 %v4275, %v4288
        %v4312 = vmul.f32 %v4276, %v4288
        %v4313 = vmul.f32 %v4277, %v4288
        %v4314 = vmul.f32 %v4278, %v4288
        %v4315 = vmul.f32 %v4279, %v4288
        %v4316 = vmul.f32 %v4280, %v4288
        %v4317 = vmul.f32 %v4281, %v4288
        %v4318 = vmul.f32 %v4282, %v4288
        %v4319 = vmul.f32 %v4283, %v4288
        %v4320 = vmul.f32 %v4284, %v4288
        %v4321 = vmul.f32 %v4285, %v4288
        %v4322 = vld [vmem:[%s263] sm:$0x1]
        %v4324 = vperm.slane %v4322, 0
        %v4326 = vadd.f32 %v4290, %v4324
        %v4327 = vadd.f32 %v4291, %v4324
        %v4328 = vadd.f32 %v4292, %v4324
        %v4329 = vadd.f32 %v4293, %v4324
        %v4330 = vadd.f32 %v4294, %v4324
        %v4331 = vadd.f32 %v4295, %v4324
        %v4332 = vadd.f32 %v4296, %v4324
        %v4333 = vadd.f32 %v4297, %v4324
        %v4334 = vadd.f32 %v4298, %v4324
        %v4335 = vadd.f32 %v4299, %v4324
        %v4336 = vadd.f32 %v4300, %v4324
        %v4337 = vadd.f32 %v4301, %v4324
        %v4338 = vadd.f32 %v4302, %v4324
        %v4339 = vadd.f32 %v4303, %v4324
        %v4340 = vadd.f32 %v4304, %v4324
        %v4341 = vadd.f32 %v4305, %v4324
        %v4342 = vadd.f32 %v4306, %v4324
        %v4343 = vadd.f32 %v4307, %v4324
        %v4344 = vadd.f32 %v4308, %v4324
        %v4345 = vadd.f32 %v4309, %v4324
        %v4346 = vadd.f32 %v4310, %v4324
        %v4347 = vadd.f32 %v4311, %v4324
        %v4348 = vadd.f32 %v4312, %v4324
        %v4349 = vadd.f32 %v4313, %v4324
        %v4350 = vadd.f32 %v4314, %v4324
        %v4351 = vadd.f32 %v4315, %v4324
        %v4352 = vadd.f32 %v4316, %v4324
        %v4353 = vadd.f32 %v4317, %v4324
        %v4354 = vadd.f32 %v4318, %v4324
        %v4355 = vadd.f32 %v4319, %v4324
        %v4356 = vadd.f32 %v4320, %v4324
        %v4357 = vadd.f32 %v4321, %v4324
        %vm4358 = vcmask 523264
        %4359 = vst.msk [vmem:[%s248] sm:$0xff] %vm4358, %v4326
        %4360 = vst.msk [vmem:[%s248 + $0x8] sm:$0xff] %vm4358, %v4327
        %4361 = vst.msk [vmem:[%s248 + $0x10] sm:$0xff] %vm4358, %v4328
        %4362 = vst.msk [vmem:[%s248 + $0x18] sm:$0xff] %vm4358, %v4329
        %4363 = vst.msk [vmem:[%s248 + $0x20] sm:$0xff] %vm4358, %v4330
        %4364 = vst.msk [vmem:[%s248 + $0x28] sm:$0xff] %vm4358, %v4331
        %4365 = vst.msk [vmem:[%s248 + $0x30] sm:$0xff] %vm4358, %v4332
        %4366 = vst.msk [vmem:[%s248 + $0x38] sm:$0xff] %vm4358, %v4333
        %4367 = vst.msk [vmem:[%s248 + $0x40] sm:$0xff] %vm4358, %v4334
        %4368 = vst.msk [vmem:[%s248 + $0x48] sm:$0xff] %vm4358, %v4335
        %4369 = vst.msk [vmem:[%s248 + $0x50] sm:$0xff] %vm4358, %v4336
        %4370 = vst.msk [vmem:[%s248 + $0x58] sm:$0xff] %vm4358, %v4337
        %4371 = vst.msk [vmem:[%s248 + $0x60] sm:$0xff] %vm4358, %v4338
        %4372 = vst.msk [vmem:[%s248 + $0x68] sm:$0xff] %vm4358, %v4339
        %4373 = vst.msk [vmem:[%s248 + $0x70] sm:$0xff] %vm4358, %v4340
        %4374 = vst.msk [vmem:[%s248 + $0x78] sm:$0xff] %vm4358, %v4341
        %4375 = vst.msk [vmem:[%s248 + $0x80] sm:$0xff] %vm4358, %v4342
        %4376 = vst.msk [vmem:[%s248 + $0x88] sm:$0xff] %vm4358, %v4343
        %4377 = vst.msk [vmem:[%s248 + $0x90] sm:$0xff] %vm4358, %v4344
        %4378 = vst.msk [vmem:[%s248 + $0x98] sm:$0xff] %vm4358, %v4345
        %4379 = vst.msk [vmem:[%s248 + $0xa0] sm:$0xff] %vm4358, %v4346
        %4380 = vst.msk [vmem:[%s248 + $0xa8] sm:$0xff] %vm4358, %v4347
        %4381 = vst.msk [vmem:[%s248 + $0xb0] sm:$0xff] %vm4358, %v4348
        %4382 = vst.msk [vmem:[%s248 + $0xb8] sm:$0xff] %vm4358, %v4349
        %4383 = vst.msk [vmem:[%s248 + $0xc0] sm:$0xff] %vm4358, %v4350
        %4384 = vst.msk [vmem:[%s248 + $0xc8] sm:$0xff] %vm4358, %v4351
        %4385 = vst.msk [vmem:[%s248 + $0xd0] sm:$0xff] %vm4358, %v4352
        %4386 = vst.msk [vmem:[%s248 + $0xd8] sm:$0xff] %vm4358, %v4353
        %4387 = vst.msk [vmem:[%s248 + $0xe0] sm:$0xff] %vm4358, %v4354
        %4388 = vst.msk [vmem:[%s248 + $0xe8] sm:$0xff] %vm4358, %v4355
        %4389 = vst.msk [vmem:[%s248 + $0xf0] sm:$0xff] %vm4358, %v4356
        %4390 = vst.msk [vmem:[%s248 + $0xf8] sm:$0xff] %vm4358, %v4357
        %s4391 = sand.u32 %s153, 1
        %s4392 = scalar_lea.sflag [#allocation3], %s4391
        %s4393 = sand.u32 %s153, 1
        %s4394 = smul.addr %s4393, 256
        %s4395 = scalar_lea.vmem [#allocation2], %s4394
        // Predicated region
        $region37: #{conv_norm_forward.1} parent=35 // pred_check
          %p4396 = pneg %p163
        $region38: #{conv_norm_forward.1} parent=35 // pred_check_branch
          %4398 = sbr.rel (%p4396) target = $region40
        $region39: #{conv_norm_forward.1} parent=35 // pred_region
          %s4399 = smul.u32 16, %s24
          %4401 = vsyncadd %s4392, 0
          %s4402 = smul.addr %s4399, 2
          %s4403 = sadd.s32 %s25, %s4402
          %s4404 = smul.addr %s23, 32
          %s4405 = sadd.s32 %s4403, %s4404
          %s4406 = smul.addr %s4405, 8
          %s4407 = scalar_lea.hbm %s4, %s4406
          %s4408 = sshll.u32 %s4395, 4
          %s4409 = int_to_ptr.vmem [resolvable:$true] %s4408
          %s4410 = sshll.u32 %s4407, 4
          %s4411 = int_to_ptr.hbm [resolvable:$true] %s4410
          %4416 = dma.vmem_to_hbm [thread:$0]  %s4409, 4096, %s4411, %s4392, 128, 128, 8
        $region40: #{conv_norm_forward.1} parent=35 // pred_fallthru
          _
      $region36: #{conv_norm_forward.1} parent=5 // pred_fallthru
        _
      %p4417 = scmp.le.s32.totalorder 2, %s13
      // Predicated region
      $region41: #{conv_norm_forward.1} parent=5 // pred_check
        %p4418 = pneg %p4417
      $region42: #{conv_norm_forward.1} parent=5 // pred_check_branch
        %4420 = sbr.rel (%p4418) target = $region44
      $region43: #{conv_norm_forward.1} parent=5 // pred_region
        %s4421 = ssub.s32 %s13, 2
        // Predicated region
        $region45: #{conv_norm_forward.1} parent=43 // pred_check
          %p4422 = pneg %p169
        $region46: #{conv_norm_forward.1} parent=43 // pred_check_branch
          %4424 = sbr.rel (%p4422) target = $region48
        $region47: #{conv_norm_forward.1} parent=43 // pred_region
          %s4425 = sand.u32 %s154, 1
          %s4426 = scalar_lea.sflag [#allocation3], %s4425
          %s4427 = sand.u32 %s154, 1
          %s4428 = smul.addr %s4427, 256
          %s4429 = scalar_lea.vmem [#allocation2], %s4428
          %4431 = dma.done %s4426, 4096
        $region48: #{conv_norm_forward.1} parent=43 // pred_fallthru
          _
      $region44: #{conv_norm_forward.1} parent=5 // pred_fallthru
        _
    $region6: #{conv_norm_forward.1} parent=1 // loop_footer
      %s17 = sadd.s32 1, %s13
    $region7: #{conv_norm_forward.1} parent=1 // loop_footer_branch
      %12 = sbr.rel target = $region3
    $region8: #{conv_norm_forward.1} parent=1 // loop_exit
      _
    %4432 = vsyncpa [#allocation3], 1
    %s4433 = scalar_lea.sflag [#allocation3], 1
    %4434 = vsyncpa %s4433, 1

</llo_original>
